<compile_context>
chip_gen: v7x
topology: tpu7x:2x2x1
jax: 0.10.0
libtpu: 0.0.40
codegen_flags: <defaults>
</compile_context>

<pallas_src>
import jax
import jax.numpy as jnp
from jax.experimental import pallas as pl
from jax.experimental.pallas import tpu as pltpu

EPS = 1e-5


def _conv3x3_bn_relu(h, w_ref, b_ref, g_ref, be_ref):
    """3x3 'same' conv + BatchNorm(train) + ReLU.

    h      : (Hp, Wp, N, Cin)  activations (value, f32)
    w_ref  : (9*Cin, Cout)     conv weights, rows ordered (dy*3+dx)*Cin + ci
    b_ref  : (1, Cout)         conv bias
    g_ref  : (1, Cout)         BN gamma
    be_ref : (1, Cout)         BN beta
    returns: (Hp*Wp*N, Cout) float32
    """
    Hp, Wp, n_batch, Cin = h.shape
    Cout = w_ref.shape[1]
    R = Hp * Wp * n_batch

    # Zero-pad the two leading spatial dims by 1 (leading-dim concats only;
    # last two dims (N, C) untouched -> no retiling).
    zrow = jnp.zeros((1, Wp, n_batch, Cin), jnp.float32)
    hp = jnp.concatenate([zrow, h, zrow], axis=0)               # (Hp+2, Wp, N, Cin)
    zcol = jnp.zeros((Hp + 2, 1, n_batch, Cin), jnp.float32)
    hp = jnp.concatenate([zcol, hp, zcol], axis=1)              # (Hp+2, Wp+2, N, Cin)

    # 3x3 conv as 9 MXU matmuls: contract Cin for each statically shifted tap.
    acc = jnp.zeros((R, Cout), jnp.float32)
    for dy in range(3):
        for dx in range(3):
            slab = hp[dy:dy + Hp, dx:dx + Wp, :, :].reshape(R, Cin)
            t = dy * 3 + dx
            w_tap = w_ref[t * Cin:(t + 1) * Cin, :]             # (Cin, Cout)
            acc = acc + jnp.dot(slab, w_tap,
                                preferred_element_type=jnp.float32)
    acc = acc + b_ref[...]                                      # (R, Cout)

    # BatchNorm2d, training mode: batch statistics over (N, H, W), biased var,
    # fused into a single scale/shift FMA.
    mean = jnp.mean(acc, axis=0, keepdims=True)                 # (1, Cout)
    var = jnp.mean((acc - mean) ** 2, axis=0, keepdims=True)    # (1, Cout)
    scale = g_ref[...] * jax.lax.rsqrt(var + EPS)
    shift = be_ref[...] - mean * scale
    return jnp.maximum(acc * scale + shift, 0.0)                # ReLU


def down_kernel(x_ref, w1_ref, b1_ref, g1_ref, be1_ref,
                w2_ref, b2_ref, g2_ref, be2_ref, o_ref):
    H, W, N, Cin = x_ref.shape
    Hp, Wp = H // 2, W // 2
    Cout = o_ref.shape[-1]

    # ---- MaxPool2d(kernel_size=2, stride=2) ----
    # Leading-dim reshapes only (last two dims (N, C) untouched).
    x = x_ref[...]
    m_h = jnp.max(x.reshape(Hp, 2, W, N, Cin), axis=1)          # pool over H
    pooled = jnp.max(m_h.reshape(Hp, Wp, 2, N, Cin), axis=2)    # pool over W

    # ---- DoubleConv ----
    h1 = _conv3x3_bn_relu(pooled, w1_ref, b1_ref, g1_ref, be1_ref)   # (R, Cout)
    h1 = h1.reshape(Hp, Wp, N, Cout)
    h2 = _conv3x3_bn_relu(h1, w2_ref, b2_ref, g2_ref, be2_ref)       # (R, Cout)
    o_ref[...] = h2


def down_forward(x_nchw, params):
    """x_nchw: (N, Cin, H, W) float32 -> (N, Cout, H/2, W/2) float32."""
    N, Cin, H, W = x_nchw.shape
    Cout = params["w1"].shape[0]
    Hp, Wp = H // 2, W // 2
    R = Hp * Wp * N

    # NCHW -> (H, W, N, C); PyTorch OIHW weights -> (9*Cin, Cout) im2col form
    # with row index (dy*3+dx)*Cin + ci (matching the kernel's tap slicing).
    x_hwnc = jnp.transpose(x_nchw, (2, 3, 0, 1)).astype(jnp.float32)
    w1 = jnp.transpose(params["w1"], (2, 3, 1, 0)).reshape(9 * Cin, Cout)
    w2 = jnp.transpose(params["w2"], (2, 3, 1, 0)).reshape(9 * Cout, Cout)

    def row(v):  # keep per-channel params 2-D for VMEM
        return v.reshape(1, -1).astype(jnp.float32)

    vmem = pl.BlockSpec(memory_space=pltpu.MemorySpace.VMEM)
    out2d = pl.pallas_call(
        down_kernel,
        out_shape=jax.ShapeDtypeStruct((R, Cout), jnp.float32),
        in_specs=[vmem] * 9,
        out_specs=vmem,
    )(x_hwnc, w1.astype(jnp.float32), row(params["b1"]), row(params["g1"]),
      row(params["be1"]),
      w2.astype(jnp.float32), row(params["b2"]), row(params["g2"]),
      row(params["be2"]))

    # (Hp*Wp*N, Cout) -> (N, Cout, Hp, Wp)
    return jnp.transpose(out2d.reshape(Hp, Wp, N, Cout), (2, 3, 0, 1))


def down_reference(x, p):
    """Pure-JAX reference with identical semantics (for the correctness check)."""
    x = jax.lax.reduce_window(x, -jnp.inf, jax.lax.max,
                              (1, 1, 2, 2), (1, 1, 2, 2), "VALID")

    def conv_bn_relu(h, w, b, g, be):
        h = jax.lax.conv_general_dilated(
            h, w, (1, 1), ((1, 1), (1, 1)),
            dimension_numbers=("NCHW", "OIHW", "NCHW"))
        h = h + b.reshape(1, -1, 1, 1)
        mean = jnp.mean(h, axis=(0, 2, 3), keepdims=True)
        var = jnp.mean((h - mean) ** 2, axis=(0, 2, 3), keepdims=True)
        h = (h - mean) * jax.lax.rsqrt(var + EPS)
        h = h * g.reshape(1, -1, 1, 1) + be.reshape(1, -1, 1, 1)
        return jnp.maximum(h, 0.0)

    h = conv_bn_relu(x, p["w1"], p["b1"], p["g1"], p["be1"])
    return conv_bn_relu(h, p["w2"], p["b2"], p["g2"], p["be2"])


if __name__ == "__main__":
    key = jax.random.PRNGKey(0)
    N, Cin, Cout, H, W = 2, 4, 8, 16, 16
    ks = jax.random.split(key, 5)

    x = jax.random.normal(ks[0], (N, Cin, H, W), jnp.float32)
    bound1 = 1.0 / jnp.sqrt(jnp.float32(Cin * 9))
    bound2 = 1.0 / jnp.sqrt(jnp.float32(Cout * 9))
    params = dict(
        w1=jax.random.uniform(ks[1], (Cout, Cin, 3, 3), jnp.float32, -bound1, bound1),
        b1=jax.random.uniform(ks[2], (Cout,), jnp.float32, -bound1, bound1),
        g1=jnp.ones((Cout,), jnp.float32),
        be1=jnp.zeros((Cout,), jnp.float32),
        w2=jax.random.uniform(ks[3], (Cout, Cout, 3, 3), jnp.float32, -bound2, bound2),
        b2=jax.random.uniform(ks[4], (Cout,), jnp.float32, -bound2, bound2),
        g2=jnp.ones((Cout,), jnp.float32),
        be2=jnp.zeros((Cout,), jnp.float32),
    )

    y = jax.block_until_ready(down_forward(x, params))
    y_ref = jax.block_until_ready(down_reference(x, params))

    assert y.shape == (N, Cout, H // 2, W // 2), y.shape
    assert jnp.allclose(y, y_ref, atol=2e-3, rtol=2e-3), float(jnp.abs(y - y_ref).max())
    print("KERNEL_OK")
</pallas_src>

<mosaic_0001>
module attributes {stable_mosaic.version = 11 : i64} {
  func.func @down_kernel(%arg0: memref<16x16x2x4xf32, #tpu.memory_space<vmem>>, %arg1: memref<36x8xf32, #tpu.memory_space<vmem>>, %arg2: memref<1x8xf32, #tpu.memory_space<vmem>>, %arg3: memref<1x8xf32, #tpu.memory_space<vmem>>, %arg4: memref<1x8xf32, #tpu.memory_space<vmem>>, %arg5: memref<72x8xf32, #tpu.memory_space<vmem>>, %arg6: memref<1x8xf32, #tpu.memory_space<vmem>>, %arg7: memref<1x8xf32, #tpu.memory_space<vmem>>, %arg8: memref<1x8xf32, #tpu.memory_space<vmem>>, %arg9: memref<128x8xf32, #tpu.memory_space<vmem>>) attributes {dimension_semantics = [], scalar_prefetch = 0 : i64, scratch_operands = 0 : i64, tpu.core_type = #tpu.core_type<tc>} {
    %c0 = arith.constant 0 : index
    %c0_0 = arith.constant 0 : index
    %c0_1 = arith.constant 0 : index
    %c0_2 = arith.constant 0 : index
    %0 = vector.load %arg0[%c0, %c0_0, %c0_1, %c0_2] : memref<16x16x2x4xf32, #tpu.memory_space<vmem>>, vector<16x16x2x4xf32>
    %1 = vector.shape_cast %0 : vector<16x16x2x4xf32> to vector<8x2x16x2x4xf32>
    %cst = arith.constant dense<0xFF800000> : vector<8x16x2x4xf32>
    %2 = vector.multi_reduction <maximumf>, %1, %cst [1] : vector<8x2x16x2x4xf32> to vector<8x16x2x4xf32>
    %3 = vector.shape_cast %2 : vector<8x16x2x4xf32> to vector<8x8x2x2x4xf32>
    %cst_3 = arith.constant dense<0xFF800000> : vector<8x8x2x4xf32>
    %4 = vector.multi_reduction <maximumf>, %3, %cst_3 [2] : vector<8x8x2x2x4xf32> to vector<8x8x2x4xf32>
    %cst_4 = arith.constant 0.000000e+00 : f32
    %5 = vector.broadcast %cst_4 : f32 to vector<1x8x2x4xf32>
    %6 = tpu.concatenate %5, %4, %5 in 0 : vector<1x8x2x4xf32>, vector<8x8x2x4xf32>, vector<1x8x2x4xf32> -> vector<10x8x2x4xf32>
    %cst_5 = arith.constant 0.000000e+00 : f32
    %7 = vector.broadcast %cst_5 : f32 to vector<10x1x2x4xf32>
    %8 = tpu.concatenate %7, %6, %7 in 1 : vector<10x1x2x4xf32>, vector<10x8x2x4xf32>, vector<10x1x2x4xf32> -> vector<10x10x2x4xf32>
    %cst_6 = arith.constant 0.000000e+00 : f32
    %9 = vector.broadcast %cst_6 : f32 to vector<128x8xf32>
    %10 = vector.extract_strided_slice %8 {offsets = [0, 0, 0, 0], sizes = [8, 8, 2, 4], strides = [1, 1, 1, 1]} : vector<10x10x2x4xf32> to vector<8x8x2x4xf32>
    %11 = vector.shape_cast %10 : vector<8x8x2x4xf32> to vector<128x4xf32>
    %c0_7 = arith.constant 0 : index
    %c0_8 = arith.constant 0 : index
    %12 = vector.load %arg1[%c0_7, %c0_8] : memref<36x8xf32, #tpu.memory_space<vmem>>, vector<4x8xf32>
    %cst_9 = arith.constant dense<0.000000e+00> : vector<128x8xf32>
    %13 = tpu.matmul %11, %12, %cst_9 {dimension_numbers = #tpu.dot_dimension_numbers<[1], [0], [0], [1], [0, 0, 1, 1], [], []>} : vector<128x4xf32>, vector<4x8xf32>, vector<128x8xf32> -> vector<128x8xf32>
    %14 = arith.addf %9, %13 : vector<128x8xf32>
    %15 = vector.extract_strided_slice %8 {offsets = [0, 1, 0, 0], sizes = [8, 8, 2, 4], strides = [1, 1, 1, 1]} : vector<10x10x2x4xf32> to vector<8x8x2x4xf32>
    %16 = vector.shape_cast %15 : vector<8x8x2x4xf32> to vector<128x4xf32>
    %c4 = arith.constant 4 : index
    %c0_10 = arith.constant 0 : index
    %17 = vector.load %arg1[%c4, %c0_10] : memref<36x8xf32, #tpu.memory_space<vmem>>, vector<4x8xf32>
    %cst_11 = arith.constant dense<0.000000e+00> : vector<128x8xf32>
    %18 = tpu.matmul %16, %17, %cst_11 {dimension_numbers = #tpu.dot_dimension_numbers<[1], [0], [0], [1], [0, 0, 1, 1], [], []>} : vector<128x4xf32>, vector<4x8xf32>, vector<128x8xf32> -> vector<128x8xf32>
    %19 = arith.addf %14, %18 : vector<128x8xf32>
    %20 = vector.extract_strided_slice %8 {offsets = [0, 2, 0, 0], sizes = [8, 8, 2, 4], strides = [1, 1, 1, 1]} : vector<10x10x2x4xf32> to vector<8x8x2x4xf32>
    %21 = vector.shape_cast %20 : vector<8x8x2x4xf32> to vector<128x4xf32>
    %c8 = arith.constant 8 : index
    %c0_12 = arith.constant 0 : index
    %22 = vector.load %arg1[%c8, %c0_12] : memref<36x8xf32, #tpu.memory_space<vmem>>, vector<4x8xf32>
    %cst_13 = arith.constant dense<0.000000e+00> : vector<128x8xf32>
    %23 = tpu.matmul %21, %22, %cst_13 {dimension_numbers = #tpu.dot_dimension_numbers<[1], [0], [0], [1], [0, 0, 1, 1], [], []>} : vector<128x4xf32>, vector<4x8xf32>, vector<128x8xf32> -> vector<128x8xf32>
    %24 = arith.addf %19, %23 : vector<128x8xf32>
    %25 = vector.extract_strided_slice %8 {offsets = [1, 0, 0, 0], sizes = [8, 8, 2, 4], strides = [1, 1, 1, 1]} : vector<10x10x2x4xf32> to vector<8x8x2x4xf32>
    %26 = vector.shape_cast %25 : vector<8x8x2x4xf32> to vector<128x4xf32>
    %c12 = arith.constant 12 : index
    %c0_14 = arith.constant 0 : index
    %27 = vector.load %arg1[%c12, %c0_14] : memref<36x8xf32, #tpu.memory_space<vmem>>, vector<4x8xf32>
    %cst_15 = arith.constant dense<0.000000e+00> : vector<128x8xf32>
    %28 = tpu.matmul %26, %27, %cst_15 {dimension_numbers = #tpu.dot_dimension_numbers<[1], [0], [0], [1], [0, 0, 1, 1], [], []>} : vector<128x4xf32>, vector<4x8xf32>, vector<128x8xf32> -> vector<128x8xf32>
    %29 = arith.addf %24, %28 : vector<128x8xf32>
    %30 = vector.extract_strided_slice %8 {offsets = [1, 1, 0, 0], sizes = [8, 8, 2, 4], strides = [1, 1, 1, 1]} : vector<10x10x2x4xf32> to vector<8x8x2x4xf32>
    %31 = vector.shape_cast %30 : vector<8x8x2x4xf32> to vector<128x4xf32>
    %c16 = arith.constant 16 : index
    %c0_16 = arith.constant 0 : index
    %32 = vector.load %arg1[%c16, %c0_16] : memref<36x8xf32, #tpu.memory_space<vmem>>, vector<4x8xf32>
    %cst_17 = arith.constant dense<0.000000e+00> : vector<128x8xf32>
    %33 = tpu.matmul %31, %32, %cst_17 {dimension_numbers = #tpu.dot_dimension_numbers<[1], [0], [0], [1], [0, 0, 1, 1], [], []>} : vector<128x4xf32>, vector<4x8xf32>, vector<128x8xf32> -> vector<128x8xf32>
    %34 = arith.addf %29, %33 : vector<128x8xf32>
    %35 = vector.extract_strided_slice %8 {offsets = [1, 2, 0, 0], sizes = [8, 8, 2, 4], strides = [1, 1, 1, 1]} : vector<10x10x2x4xf32> to vector<8x8x2x4xf32>
    %36 = vector.shape_cast %35 : vector<8x8x2x4xf32> to vector<128x4xf32>
    %c20 = arith.constant 20 : index
    %c0_18 = arith.constant 0 : index
    %37 = vector.load %arg1[%c20, %c0_18] : memref<36x8xf32, #tpu.memory_space<vmem>>, vector<4x8xf32>
    %cst_19 = arith.constant dense<0.000000e+00> : vector<128x8xf32>
    %38 = tpu.matmul %36, %37, %cst_19 {dimension_numbers = #tpu.dot_dimension_numbers<[1], [0], [0], [1], [0, 0, 1, 1], [], []>} : vector<128x4xf32>, vector<4x8xf32>, vector<128x8xf32> -> vector<128x8xf32>
    %39 = arith.addf %34, %38 : vector<128x8xf32>
    %40 = vector.extract_strided_slice %8 {offsets = [2, 0, 0, 0], sizes = [8, 8, 2, 4], strides = [1, 1, 1, 1]} : vector<10x10x2x4xf32> to vector<8x8x2x4xf32>
    %41 = vector.shape_cast %40 : vector<8x8x2x4xf32> to vector<128x4xf32>
    %c24 = arith.constant 24 : index
    %c0_20 = arith.constant 0 : index
    %42 = vector.load %arg1[%c24, %c0_20] : memref<36x8xf32, #tpu.memory_space<vmem>>, vector<4x8xf32>
    %cst_21 = arith.constant dense<0.000000e+00> : vector<128x8xf32>
    %43 = tpu.matmul %41, %42, %cst_21 {dimension_numbers = #tpu.dot_dimension_numbers<[1], [0], [0], [1], [0, 0, 1, 1], [], []>} : vector<128x4xf32>, vector<4x8xf32>, vector<128x8xf32> -> vector<128x8xf32>
    %44 = arith.addf %39, %43 : vector<128x8xf32>
    %45 = vector.extract_strided_slice %8 {offsets = [2, 1, 0, 0], sizes = [8, 8, 2, 4], strides = [1, 1, 1, 1]} : vector<10x10x2x4xf32> to vector<8x8x2x4xf32>
    %46 = vector.shape_cast %45 : vector<8x8x2x4xf32> to vector<128x4xf32>
    %c28 = arith.constant 28 : index
    %c0_22 = arith.constant 0 : index
    %47 = vector.load %arg1[%c28, %c0_22] : memref<36x8xf32, #tpu.memory_space<vmem>>, vector<4x8xf32>
    %cst_23 = arith.constant dense<0.000000e+00> : vector<128x8xf32>
    %48 = tpu.matmul %46, %47, %cst_23 {dimension_numbers = #tpu.dot_dimension_numbers<[1], [0], [0], [1], [0, 0, 1, 1], [], []>} : vector<128x4xf32>, vector<4x8xf32>, vector<128x8xf32> -> vector<128x8xf32>
    %49 = arith.addf %44, %48 : vector<128x8xf32>
    %50 = vector.extract_strided_slice %8 {offsets = [2, 2, 0, 0], sizes = [8, 8, 2, 4], strides = [1, 1, 1, 1]} : vector<10x10x2x4xf32> to vector<8x8x2x4xf32>
    %51 = vector.shape_cast %50 : vector<8x8x2x4xf32> to vector<128x4xf32>
    %c32 = arith.constant 32 : index
    %c0_24 = arith.constant 0 : index
    %52 = vector.load %arg1[%c32, %c0_24] : memref<36x8xf32, #tpu.memory_space<vmem>>, vector<4x8xf32>
    %cst_25 = arith.constant dense<0.000000e+00> : vector<128x8xf32>
    %53 = tpu.matmul %51, %52, %cst_25 {dimension_numbers = #tpu.dot_dimension_numbers<[1], [0], [0], [1], [0, 0, 1, 1], [], []>} : vector<128x4xf32>, vector<4x8xf32>, vector<128x8xf32> -> vector<128x8xf32>
    %54 = arith.addf %49, %53 : vector<128x8xf32>
    %c0_26 = arith.constant 0 : index
    %c0_27 = arith.constant 0 : index
    %55 = vector.load %arg2[%c0_26, %c0_27] : memref<1x8xf32, #tpu.memory_space<vmem>>, vector<1x8xf32>
    %56 = vector.broadcast %55 : vector<1x8xf32> to vector<128x8xf32>
    %57 = arith.addf %54, %56 : vector<128x8xf32>
    %cst_28 = arith.constant dense<0.000000e+00> : vector<8xf32>
    %58 = vector.multi_reduction <add>, %57, %cst_28 [0] : vector<128x8xf32> to vector<8xf32>
    %59 = vector.shape_cast %58 : vector<8xf32> to vector<1x8xf32>
    %cst_29 = arith.constant 1.280000e+02 : f32
    %60 = vector.broadcast %cst_29 : f32 to vector<1x8xf32>
    %61 = arith.divf %59, %60 : vector<1x8xf32>
    %62 = vector.broadcast %61 : vector<1x8xf32> to vector<128x8xf32>
    %63 = arith.subf %57, %62 : vector<128x8xf32>
    %64 = arith.mulf %63, %63 : vector<128x8xf32>
    %cst_30 = arith.constant dense<0.000000e+00> : vector<8xf32>
    %65 = vector.multi_reduction <add>, %64, %cst_30 [0] : vector<128x8xf32> to vector<8xf32>
    %66 = vector.shape_cast %65 : vector<8xf32> to vector<1x8xf32>
    %cst_31 = arith.constant 1.280000e+02 : f32
    %67 = vector.broadcast %cst_31 : f32 to vector<1x8xf32>
    %68 = arith.divf %66, %67 : vector<1x8xf32>
    %c0_32 = arith.constant 0 : index
    %c0_33 = arith.constant 0 : index
    %69 = vector.load %arg3[%c0_32, %c0_33] : memref<1x8xf32, #tpu.memory_space<vmem>>, vector<1x8xf32>
    %cst_34 = arith.constant 9.99999974E-6 : f32
    %70 = vector.broadcast %cst_34 : f32 to vector<1x8xf32>
    %71 = arith.addf %68, %70 : vector<1x8xf32>
    %72 = math.rsqrt %71 : vector<1x8xf32>
    %73 = arith.mulf %69, %72 : vector<1x8xf32>
    %c0_35 = arith.constant 0 : index
    %c0_36 = arith.constant 0 : index
    %74 = vector.load %arg4[%c0_35, %c0_36] : memref<1x8xf32, #tpu.memory_space<vmem>>, vector<1x8xf32>
    %75 = arith.mulf %61, %73 : vector<1x8xf32>
    %76 = arith.subf %74, %75 : vector<1x8xf32>
    %77 = vector.broadcast %73 : vector<1x8xf32> to vector<128x8xf32>
    %78 = arith.mulf %57, %77 : vector<128x8xf32>
    %79 = vector.broadcast %76 : vector<1x8xf32> to vector<128x8xf32>
    %80 = arith.addf %78, %79 : vector<128x8xf32>
    %cst_37 = arith.constant 0.000000e+00 : f32
    %81 = vector.broadcast %cst_37 : f32 to vector<128x8xf32>
    %82 = arith.maximumf %80, %81 : vector<128x8xf32>
    %83 = vector.shape_cast %82 : vector<128x8xf32> to vector<8x8x2x8xf32>
    %cst_38 = arith.constant 0.000000e+00 : f32
    %84 = vector.broadcast %cst_38 : f32 to vector<1x8x2x8xf32>
    %85 = tpu.concatenate %84, %83, %84 in 0 : vector<1x8x2x8xf32>, vector<8x8x2x8xf32>, vector<1x8x2x8xf32> -> vector<10x8x2x8xf32>
    %cst_39 = arith.constant 0.000000e+00 : f32
    %86 = vector.broadcast %cst_39 : f32 to vector<10x1x2x8xf32>
    %87 = tpu.concatenate %86, %85, %86 in 1 : vector<10x1x2x8xf32>, vector<10x8x2x8xf32>, vector<10x1x2x8xf32> -> vector<10x10x2x8xf32>
    %cst_40 = arith.constant 0.000000e+00 : f32
    %88 = vector.broadcast %cst_40 : f32 to vector<128x8xf32>
    %89 = vector.extract_strided_slice %87 {offsets = [0, 0, 0, 0], sizes = [8, 8, 2, 8], strides = [1, 1, 1, 1]} : vector<10x10x2x8xf32> to vector<8x8x2x8xf32>
    %90 = vector.shape_cast %89 : vector<8x8x2x8xf32> to vector<128x8xf32>
    %c0_41 = arith.constant 0 : index
    %c0_42 = arith.constant 0 : index
    %91 = vector.load %arg5[%c0_41, %c0_42] : memref<72x8xf32, #tpu.memory_space<vmem>>, vector<8x8xf32>
    %cst_43 = arith.constant dense<0.000000e+00> : vector<128x8xf32>
    %92 = tpu.matmul %90, %91, %cst_43 {dimension_numbers = #tpu.dot_dimension_numbers<[1], [0], [0], [1], [0, 0, 1, 1], [], []>} : vector<128x8xf32>, vector<8x8xf32>, vector<128x8xf32> -> vector<128x8xf32>
    %93 = arith.addf %88, %92 : vector<128x8xf32>
    %94 = vector.extract_strided_slice %87 {offsets = [0, 1, 0, 0], sizes = [8, 8, 2, 8], strides = [1, 1, 1, 1]} : vector<10x10x2x8xf32> to vector<8x8x2x8xf32>
    %95 = vector.shape_cast %94 : vector<8x8x2x8xf32> to vector<128x8xf32>
    %c8_44 = arith.constant 8 : index
    %c0_45 = arith.constant 0 : index
    %96 = vector.load %arg5[%c8_44, %c0_45] : memref<72x8xf32, #tpu.memory_space<vmem>>, vector<8x8xf32>
    %cst_46 = arith.constant dense<0.000000e+00> : vector<128x8xf32>
    %97 = tpu.matmul %95, %96, %cst_46 {dimension_numbers = #tpu.dot_dimension_numbers<[1], [0], [0], [1], [0, 0, 1, 1], [], []>} : vector<128x8xf32>, vector<8x8xf32>, vector<128x8xf32> -> vector<128x8xf32>
    %98 = arith.addf %93, %97 : vector<128x8xf32>
    %99 = vector.extract_strided_slice %87 {offsets = [0, 2, 0, 0], sizes = [8, 8, 2, 8], strides = [1, 1, 1, 1]} : vector<10x10x2x8xf32> to vector<8x8x2x8xf32>
    %100 = vector.shape_cast %99 : vector<8x8x2x8xf32> to vector<128x8xf32>
    %c16_47 = arith.constant 16 : index
    %c0_48 = arith.constant 0 : index
    %101 = vector.load %arg5[%c16_47, %c0_48] : memref<72x8xf32, #tpu.memory_space<vmem>>, vector<8x8xf32>
    %cst_49 = arith.constant dense<0.000000e+00> : vector<128x8xf32>
    %102 = tpu.matmul %100, %101, %cst_49 {dimension_numbers = #tpu.dot_dimension_numbers<[1], [0], [0], [1], [0, 0, 1, 1], [], []>} : vector<128x8xf32>, vector<8x8xf32>, vector<128x8xf32> -> vector<128x8xf32>
    %103 = arith.addf %98, %102 : vector<128x8xf32>
    %104 = vector.extract_strided_slice %87 {offsets = [1, 0, 0, 0], sizes = [8, 8, 2, 8], strides = [1, 1, 1, 1]} : vector<10x10x2x8xf32> to vector<8x8x2x8xf32>
    %105 = vector.shape_cast %104 : vector<8x8x2x8xf32> to vector<128x8xf32>
    %c24_50 = arith.constant 24 : index
    %c0_51 = arith.constant 0 : index
    %106 = vector.load %arg5[%c24_50, %c0_51] : memref<72x8xf32, #tpu.memory_space<vmem>>, vector<8x8xf32>
    %cst_52 = arith.constant dense<0.000000e+00> : vector<128x8xf32>
    %107 = tpu.matmul %105, %106, %cst_52 {dimension_numbers = #tpu.dot_dimension_numbers<[1], [0], [0], [1], [0, 0, 1, 1], [], []>} : vector<128x8xf32>, vector<8x8xf32>, vector<128x8xf32> -> vector<128x8xf32>
    %108 = arith.addf %103, %107 : vector<128x8xf32>
    %109 = vector.extract_strided_slice %87 {offsets = [1, 1, 0, 0], sizes = [8, 8, 2, 8], strides = [1, 1, 1, 1]} : vector<10x10x2x8xf32> to vector<8x8x2x8xf32>
    %110 = vector.shape_cast %109 : vector<8x8x2x8xf32> to vector<128x8xf32>
    %c32_53 = arith.constant 32 : index
    %c0_54 = arith.constant 0 : index
    %111 = vector.load %arg5[%c32_53, %c0_54] : memref<72x8xf32, #tpu.memory_space<vmem>>, vector<8x8xf32>
    %cst_55 = arith.constant dense<0.000000e+00> : vector<128x8xf32>
    %112 = tpu.matmul %110, %111, %cst_55 {dimension_numbers = #tpu.dot_dimension_numbers<[1], [0], [0], [1], [0, 0, 1, 1], [], []>} : vector<128x8xf32>, vector<8x8xf32>, vector<128x8xf32> -> vector<128x8xf32>
    %113 = arith.addf %108, %112 : vector<128x8xf32>
    %114 = vector.extract_strided_slice %87 {offsets = [1, 2, 0, 0], sizes = [8, 8, 2, 8], strides = [1, 1, 1, 1]} : vector<10x10x2x8xf32> to vector<8x8x2x8xf32>
    %115 = vector.shape_cast %114 : vector<8x8x2x8xf32> to vector<128x8xf32>
    %c40 = arith.constant 40 : index
    %c0_56 = arith.constant 0 : index
    %116 = vector.load %arg5[%c40, %c0_56] : memref<72x8xf32, #tpu.memory_space<vmem>>, vector<8x8xf32>
    %cst_57 = arith.constant dense<0.000000e+00> : vector<128x8xf32>
    %117 = tpu.matmul %115, %116, %cst_57 {dimension_numbers = #tpu.dot_dimension_numbers<[1], [0], [0], [1], [0, 0, 1, 1], [], []>} : vector<128x8xf32>, vector<8x8xf32>, vector<128x8xf32> -> vector<128x8xf32>
    %118 = arith.addf %113, %117 : vector<128x8xf32>
    %119 = vector.extract_strided_slice %87 {offsets = [2, 0, 0, 0], sizes = [8, 8, 2, 8], strides = [1, 1, 1, 1]} : vector<10x10x2x8xf32> to vector<8x8x2x8xf32>
    %120 = vector.shape_cast %119 : vector<8x8x2x8xf32> to vector<128x8xf32>
    %c48 = arith.constant 48 : index
    %c0_58 = arith.constant 0 : index
    %121 = vector.load %arg5[%c48, %c0_58] : memref<72x8xf32, #tpu.memory_space<vmem>>, vector<8x8xf32>
    %cst_59 = arith.constant dense<0.000000e+00> : vector<128x8xf32>
    %122 = tpu.matmul %120, %121, %cst_59 {dimension_numbers = #tpu.dot_dimension_numbers<[1], [0], [0], [1], [0, 0, 1, 1], [], []>} : vector<128x8xf32>, vector<8x8xf32>, vector<128x8xf32> -> vector<128x8xf32>
    %123 = arith.addf %118, %122 : vector<128x8xf32>
    %124 = vector.extract_strided_slice %87 {offsets = [2, 1, 0, 0], sizes = [8, 8, 2, 8], strides = [1, 1, 1, 1]} : vector<10x10x2x8xf32> to vector<8x8x2x8xf32>
    %125 = vector.shape_cast %124 : vector<8x8x2x8xf32> to vector<128x8xf32>
    %c56 = arith.constant 56 : index
    %c0_60 = arith.constant 0 : index
    %126 = vector.load %arg5[%c56, %c0_60] : memref<72x8xf32, #tpu.memory_space<vmem>>, vector<8x8xf32>
    %cst_61 = arith.constant dense<0.000000e+00> : vector<128x8xf32>
    %127 = tpu.matmul %125, %126, %cst_61 {dimension_numbers = #tpu.dot_dimension_numbers<[1], [0], [0], [1], [0, 0, 1, 1], [], []>} : vector<128x8xf32>, vector<8x8xf32>, vector<128x8xf32> -> vector<128x8xf32>
    %128 = arith.addf %123, %127 : vector<128x8xf32>
    %129 = vector.extract_strided_slice %87 {offsets = [2, 2, 0, 0], sizes = [8, 8, 2, 8], strides = [1, 1, 1, 1]} : vector<10x10x2x8xf32> to vector<8x8x2x8xf32>
    %130 = vector.shape_cast %129 : vector<8x8x2x8xf32> to vector<128x8xf32>
    %c64 = arith.constant 64 : index
    %c0_62 = arith.constant 0 : index
    %131 = vector.load %arg5[%c64, %c0_62] : memref<72x8xf32, #tpu.memory_space<vmem>>, vector<8x8xf32>
    %cst_63 = arith.constant dense<0.000000e+00> : vector<128x8xf32>
    %132 = tpu.matmul %130, %131, %cst_63 {dimension_numbers = #tpu.dot_dimension_numbers<[1], [0], [0], [1], [0, 0, 1, 1], [], []>} : vector<128x8xf32>, vector<8x8xf32>, vector<128x8xf32> -> vector<128x8xf32>
    %133 = arith.addf %128, %132 : vector<128x8xf32>
    %c0_64 = arith.constant 0 : index
    %c0_65 = arith.constant 0 : index
    %134 = vector.load %arg6[%c0_64, %c0_65] : memref<1x8xf32, #tpu.memory_space<vmem>>, vector<1x8xf32>
    %135 = vector.broadcast %134 : vector<1x8xf32> to vector<128x8xf32>
    %136 = arith.addf %133, %135 : vector<128x8xf32>
    %cst_66 = arith.constant dense<0.000000e+00> : vector<8xf32>
    %137 = vector.multi_reduction <add>, %136, %cst_66 [0] : vector<128x8xf32> to vector<8xf32>
    %138 = vector.shape_cast %137 : vector<8xf32> to vector<1x8xf32>
    %cst_67 = arith.constant 1.280000e+02 : f32
    %139 = vector.broadcast %cst_67 : f32 to vector<1x8xf32>
    %140 = arith.divf %138, %139 : vector<1x8xf32>
    %141 = vector.broadcast %140 : vector<1x8xf32> to vector<128x8xf32>
    %142 = arith.subf %136, %141 : vector<128x8xf32>
    %143 = arith.mulf %142, %142 : vector<128x8xf32>
    %cst_68 = arith.constant dense<0.000000e+00> : vector<8xf32>
    %144 = vector.multi_reduction <add>, %143, %cst_68 [0] : vector<128x8xf32> to vector<8xf32>
    %145 = vector.shape_cast %144 : vector<8xf32> to vector<1x8xf32>
    %cst_69 = arith.constant 1.280000e+02 : f32
    %146 = vector.broadcast %cst_69 : f32 to vector<1x8xf32>
    %147 = arith.divf %145, %146 : vector<1x8xf32>
    %c0_70 = arith.constant 0 : index
    %c0_71 = arith.constant 0 : index
    %148 = vector.load %arg7[%c0_70, %c0_71] : memref<1x8xf32, #tpu.memory_space<vmem>>, vector<1x8xf32>
    %cst_72 = arith.constant 9.99999974E-6 : f32
    %149 = vector.broadcast %cst_72 : f32 to vector<1x8xf32>
    %150 = arith.addf %147, %149 : vector<1x8xf32>
    %151 = math.rsqrt %150 : vector<1x8xf32>
    %152 = arith.mulf %148, %151 : vector<1x8xf32>
    %c0_73 = arith.constant 0 : index
    %c0_74 = arith.constant 0 : index
    %153 = vector.load %arg8[%c0_73, %c0_74] : memref<1x8xf32, #tpu.memory_space<vmem>>, vector<1x8xf32>
    %154 = arith.mulf %140, %152 : vector<1x8xf32>
    %155 = arith.subf %153, %154 : vector<1x8xf32>
    %156 = vector.broadcast %152 : vector<1x8xf32> to vector<128x8xf32>
    %157 = arith.mulf %136, %156 : vector<128x8xf32>
    %158 = vector.broadcast %155 : vector<1x8xf32> to vector<128x8xf32>
    %159 = arith.addf %157, %158 : vector<128x8xf32>
    %cst_75 = arith.constant 0.000000e+00 : f32
    %160 = vector.broadcast %cst_75 : f32 to vector<128x8xf32>
    %161 = arith.maximumf %159, %160 : vector<128x8xf32>
    %c0_76 = arith.constant 0 : index
    %c0_77 = arith.constant 0 : index
    %162 = vector.load %arg9[%c0_76, %c0_77] : memref<128x8xf32, #tpu.memory_space<vmem>>, vector<128x8xf32>
    tpu.vector_store %arg9[%c0_76, %c0_77], %161 {strides = array<i32>} : memref<128x8xf32, #tpu.memory_space<vmem>>, vector<128x8xf32>,
    return
  }
}

</mosaic_0001>

<llo_original>
// kernel: tpu_custom_call.1
$region0: #{tpu_custom_call.1}
  #allocation0 [shape = 'u32[]', space=smem, size = 0x4, offset = 0x4, fixed_abs, tag = 'smem constant byte address 0x4 - core index']
  #allocation1 [shape = 'u32[144,128]{1,0:T(1,128)}', space=vmem, size = 0x12000, scoped, tag = 'internal scratch']
  %s0 = inlined_call_operand.vmem [shape: f32[16,16,2,4], index: 0, kind: input, shape index: {}]
  %s1 = inlined_call_operand.vmem [shape: f32[36,8], index: 1, kind: input, shape index: {}]
  %s2 = inlined_call_operand.vmem [shape: f32[1,8], index: 2, kind: input, shape index: {}]
  %s3 = inlined_call_operand.vmem [shape: f32[1,8], index: 3, kind: input, shape index: {}]
  %s4 = inlined_call_operand.vmem [shape: f32[1,8], index: 4, kind: input, shape index: {}]
  %s5 = inlined_call_operand.vmem [shape: f32[72,8], index: 5, kind: input, shape index: {}]
  %s6 = inlined_call_operand.vmem [shape: f32[1,8], index: 6, kind: input, shape index: {}]
  %s7 = inlined_call_operand.vmem [shape: f32[1,8], index: 7, kind: input, shape index: {}]
  %s8 = inlined_call_operand.vmem [shape: f32[1,8], index: 8, kind: input, shape index: {}]
  %s9 = inlined_call_operand.vmem [shape: f32[128,8], index: 9, kind: output, shape index: {}]
  %s10 = sld [smem:[#allocation0]]
  $region46: #{tpu_custom_call.1} parent=0
    _
  %s12 = ssub.s32 1, %s10
  %s13 = scalar_select 0, %s12, %s10
  // Predicated region
  $region2: #{tpu_custom_call.1} parent=0 // pred_check
    _
  $region3: #{tpu_custom_call.1} parent=0 // pred_check_branch
    %15 = sbr.rel (0) target = $region5
  $region4: #{tpu_custom_call.1} parent=0 // pred_region
    _
  $region5: #{tpu_custom_call.1} parent=0 // pred_fallthru
    _
  // Predicated region
  $region6: #{tpu_custom_call.1} parent=0 // pred_check
    _
  $region7: #{tpu_custom_call.1} parent=0 // pred_check_branch
    %17 = sbr.rel (0) target = $region9
  $region8: #{tpu_custom_call.1} parent=0 // pred_region
    _
  $region9: #{tpu_custom_call.1} parent=0 // pred_fallthru
    _
  // Predicated region
  $region10: #{tpu_custom_call.1} parent=0 // pred_check
    _
  $region11: #{tpu_custom_call.1} parent=0 // pred_check_branch
    %19 = sbr.rel (0) target = $region13
  $region12: #{tpu_custom_call.1} parent=0 // pred_region
    _
  $region13: #{tpu_custom_call.1} parent=0 // pred_fallthru
    _
  // Predicated region
  $region14: #{tpu_custom_call.1} parent=0 // pred_check
    _
  $region15: #{tpu_custom_call.1} parent=0 // pred_check_branch
    %21 = sbr.rel (0) target = $region17
  $region16: #{tpu_custom_call.1} parent=0 // pred_region
    _
  $region17: #{tpu_custom_call.1} parent=0 // pred_fallthru
    _
  // Predicated region
  $region18: #{tpu_custom_call.1} parent=0 // pred_check
    _
  $region19: #{tpu_custom_call.1} parent=0 // pred_check_branch
    %23 = sbr.rel (0) target = $region21
  $region20: #{tpu_custom_call.1} parent=0 // pred_region
    _
  $region21: #{tpu_custom_call.1} parent=0 // pred_fallthru
    _
  // Predicated region
  $region22: #{tpu_custom_call.1} parent=0 // pred_check
    _
  $region23: #{tpu_custom_call.1} parent=0 // pred_check_branch
    %25 = sbr.rel (0) target = $region25
  $region24: #{tpu_custom_call.1} parent=0 // pred_region
    _
  $region25: #{tpu_custom_call.1} parent=0 // pred_fallthru
    _
  // Predicated region
  $region26: #{tpu_custom_call.1} parent=0 // pred_check
    _
  $region27: #{tpu_custom_call.1} parent=0 // pred_check_branch
    %27 = sbr.rel (0) target = $region29
  $region28: #{tpu_custom_call.1} parent=0 // pred_region
    _
  $region29: #{tpu_custom_call.1} parent=0 // pred_fallthru
    _
  // Predicated region
  $region30: #{tpu_custom_call.1} parent=0 // pred_check
    _
  $region31: #{tpu_custom_call.1} parent=0 // pred_check_branch
    %29 = sbr.rel (0) target = $region33
  $region32: #{tpu_custom_call.1} parent=0 // pred_region
    _
  $region33: #{tpu_custom_call.1} parent=0 // pred_fallthru
    _
  // Predicated region
  $region34: #{tpu_custom_call.1} parent=0 // pred_check
    _
  $region35: #{tpu_custom_call.1} parent=0 // pred_check_branch
    %31 = sbr.rel (0) target = $region37
  $region36: #{tpu_custom_call.1} parent=0 // pred_region
    _
  $region37: #{tpu_custom_call.1} parent=0 // pred_fallthru
    _
  %v32 = vld [vmem:[%s0] sm:$0x3]
  %v33 = vld [vmem:[%s0 + $0x2] sm:$0x3]
  %v34 = vld [vmem:[%s0 + $0x4] sm:$0x3]
  %v35 = vld [vmem:[%s0 + $0x6] sm:$0x3]
  %v36 = vld [vmem:[%s0 + $0x8] sm:$0x3]
  %v37 = vld [vmem:[%s0 + $0xa] sm:$0x3]
  %v38 = vld [vmem:[%s0 + $0xc] sm:$0x3]
  %v39 = vld [vmem:[%s0 + $0xe] sm:$0x3]
  %v40 = vld [vmem:[%s0 + $0x10] sm:$0x3]
  %v41 = vld [vmem:[%s0 + $0x12] sm:$0x3]
  %v42 = vld [vmem:[%s0 + $0x14] sm:$0x3]
  %v43 = vld [vmem:[%s0 + $0x16] sm:$0x3]
  %v44 = vld [vmem:[%s0 + $0x18] sm:$0x3]
  %v45 = vld [vmem:[%s0 + $0x1a] sm:$0x3]
  %v46 = vld [vmem:[%s0 + $0x1c] sm:$0x3]
  %v47 = vld [vmem:[%s0 + $0x1e] sm:$0x3]
  %v48 = vld [vmem:[%s0 + $0x20] sm:$0x3]
  %v49 = vld [vmem:[%s0 + $0x22] sm:$0x3]
  %v50 = vld [vmem:[%s0 + $0x24] sm:$0x3]
  %v51 = vld [vmem:[%s0 + $0x26] sm:$0x3]
  %v52 = vld [vmem:[%s0 + $0x28] sm:$0x3]
  %v53 = vld [vmem:[%s0 + $0x2a] sm:$0x3]
  %v54 = vld [vmem:[%s0 + $0x2c] sm:$0x3]
  %v55 = vld [vmem:[%s0 + $0x2e] sm:$0x3]
  %v56 = vld [vmem:[%s0 + $0x30] sm:$0x3]
  %v57 = vld [vmem:[%s0 + $0x32] sm:$0x3]
  %v58 = vld [vmem:[%s0 + $0x34] sm:$0x3]
  %v59 = vld [vmem:[%s0 + $0x36] sm:$0x3]
  %v60 = vld [vmem:[%s0 + $0x38] sm:$0x3]
  %v61 = vld [vmem:[%s0 + $0x3a] sm:$0x3]
  %v62 = vld [vmem:[%s0 + $0x3c] sm:$0x3]
  %v63 = vld [vmem:[%s0 + $0x3e] sm:$0x3]
  %v64 = vld [vmem:[%s0 + $0x40] sm:$0x3]
  %v65 = vld [vmem:[%s0 + $0x42] sm:$0x3]
  %v66 = vld [vmem:[%s0 + $0x44] sm:$0x3]
  %v67 = vld [vmem:[%s0 + $0x46] sm:$0x3]
  %v68 = vld [vmem:[%s0 + $0x48] sm:$0x3]
  %v69 = vld [vmem:[%s0 + $0x4a] sm:$0x3]
  %v70 = vld [vmem:[%s0 + $0x4c] sm:$0x3]
  %v71 = vld [vmem:[%s0 + $0x4e] sm:$0x3]
  %v72 = vld [vmem:[%s0 + $0x50] sm:$0x3]
  %v73 = vld [vmem:[%s0 + $0x52] sm:$0x3]
  %v74 = vld [vmem:[%s0 + $0x54] sm:$0x3]
  %v75 = vld [vmem:[%s0 + $0x56] sm:$0x3]
  %v76 = vld [vmem:[%s0 + $0x58] sm:$0x3]
  %v77 = vld [vmem:[%s0 + $0x5a] sm:$0x3]
  %v78 = vld [vmem:[%s0 + $0x5c] sm:$0x3]
  %v79 = vld [vmem:[%s0 + $0x5e] sm:$0x3]
  %v80 = vld [vmem:[%s0 + $0x60] sm:$0x3]
  %v81 = vld [vmem:[%s0 + $0x62] sm:$0x3]
  %v82 = vld [vmem:[%s0 + $0x64] sm:$0x3]
  %v83 = vld [vmem:[%s0 + $0x66] sm:$0x3]
  %v84 = vld [vmem:[%s0 + $0x68] sm:$0x3]
  %v85 = vld [vmem:[%s0 + $0x6a] sm:$0x3]
  %v86 = vld [vmem:[%s0 + $0x6c] sm:$0x3]
  %v87 = vld [vmem:[%s0 + $0x6e] sm:$0x3]
  %v88 = vld [vmem:[%s0 + $0x70] sm:$0x3]
  %v89 = vld [vmem:[%s0 + $0x72] sm:$0x3]
  %v90 = vld [vmem:[%s0 + $0x74] sm:$0x3]
  %v91 = vld [vmem:[%s0 + $0x76] sm:$0x3]
  %v92 = vld [vmem:[%s0 + $0x78] sm:$0x3]
  %v93 = vld [vmem:[%s0 + $0x7a] sm:$0x3]
  %v94 = vld [vmem:[%s0 + $0x7c] sm:$0x3]
  %v95 = vld [vmem:[%s0 + $0x7e] sm:$0x3]
  %v96 = vld [vmem:[%s0 + $0x80] sm:$0x3]
  %v97 = vld [vmem:[%s0 + $0x82] sm:$0x3]
  %v98 = vld [vmem:[%s0 + $0x84] sm:$0x3]
  %v99 = vld [vmem:[%s0 + $0x86] sm:$0x3]
  %v100 = vld [vmem:[%s0 + $0x88] sm:$0x3]
  %v101 = vld [vmem:[%s0 + $0x8a] sm:$0x3]
  %v102 = vld [vmem:[%s0 + $0x8c] sm:$0x3]
  %v103 = vld [vmem:[%s0 + $0x8e] sm:$0x3]
  %v104 = vld [vmem:[%s0 + $0x90] sm:$0x3]
  %v105 = vld [vmem:[%s0 + $0x92] sm:$0x3]
  %v106 = vld [vmem:[%s0 + $0x94] sm:$0x3]
  %v107 = vld [vmem:[%s0 + $0x96] sm:$0x3]
  %v108 = vld [vmem:[%s0 + $0x98] sm:$0x3]
  %v109 = vld [vmem:[%s0 + $0x9a] sm:$0x3]
  %v110 = vld [vmem:[%s0 + $0x9c] sm:$0x3]
  %v111 = vld [vmem:[%s0 + $0x9e] sm:$0x3]
  %v112 = vld [vmem:[%s0 + $0xa0] sm:$0x3]
  %v113 = vld [vmem:[%s0 + $0xa2] sm:$0x3]
  %v114 = vld [vmem:[%s0 + $0xa4] sm:$0x3]
  %v115 = vld [vmem:[%s0 + $0xa6] sm:$0x3]
  %v116 = vld [vmem:[%s0 + $0xa8] sm:$0x3]
  %v117 = vld [vmem:[%s0 + $0xaa] sm:$0x3]
  %v118 = vld [vmem:[%s0 + $0xac] sm:$0x3]
  %v119 = vld [vmem:[%s0 + $0xae] sm:$0x3]
  %v120 = vld [vmem:[%s0 + $0xb0] sm:$0x3]
  %v121 = vld [vmem:[%s0 + $0xb2] sm:$0x3]
  %v122 = vld [vmem:[%s0 + $0xb4] sm:$0x3]
  %v123 = vld [vmem:[%s0 + $0xb6] sm:$0x3]
  %v124 = vld [vmem:[%s0 + $0xb8] sm:$0x3]
  %v125 = vld [vmem:[%s0 + $0xba] sm:$0x3]
  %v126 = vld [vmem:[%s0 + $0xbc] sm:$0x3]
  %v127 = vld [vmem:[%s0 + $0xbe] sm:$0x3]
  %v128 = vld [vmem:[%s0 + $0xc0] sm:$0x3]
  %v129 = vld [vmem:[%s0 + $0xc2] sm:$0x3]
  %v130 = vld [vmem:[%s0 + $0xc4] sm:$0x3]
  %v131 = vld [vmem:[%s0 + $0xc6] sm:$0x3]
  %v132 = vld [vmem:[%s0 + $0xc8] sm:$0x3]
  %v133 = vld [vmem:[%s0 + $0xca] sm:$0x3]
  %v134 = vld [vmem:[%s0 + $0xcc] sm:$0x3]
  %v135 = vld [vmem:[%s0 + $0xce] sm:$0x3]
  %v136 = vld [vmem:[%s0 + $0xd0] sm:$0x3]
  %v137 = vld [vmem:[%s0 + $0xd2] sm:$0x3]
  %v138 = vld [vmem:[%s0 + $0xd4] sm:$0x3]
  %v139 = vld [vmem:[%s0 + $0xd6] sm:$0x3]
  %v140 = vld [vmem:[%s0 + $0xd8] sm:$0x3]
  %v141 = vld [vmem:[%s0 + $0xda] sm:$0x3]
  %v142 = vld [vmem:[%s0 + $0xdc] sm:$0x3]
  %v143 = vld [vmem:[%s0 + $0xde] sm:$0x3]
  %v144 = vld [vmem:[%s0 + $0xe0] sm:$0x3]
  %v145 = vld [vmem:[%s0 + $0xe2] sm:$0x3]
  %v146 = vld [vmem:[%s0 + $0xe4] sm:$0x3]
  %v147 = vld [vmem:[%s0 + $0xe6] sm:$0x3]
  %v148 = vld [vmem:[%s0 + $0xe8] sm:$0x3]
  %v149 = vld [vmem:[%s0 + $0xea] sm:$0x3]
  %v150 = vld [vmem:[%s0 + $0xec] sm:$0x3]
  %v151 = vld [vmem:[%s0 + $0xee] sm:$0x3]
  %v152 = vld [vmem:[%s0 + $0xf0] sm:$0x3]
  %v153 = vld [vmem:[%s0 + $0xf2] sm:$0x3]
  %v154 = vld [vmem:[%s0 + $0xf4] sm:$0x3]
  %v155 = vld [vmem:[%s0 + $0xf6] sm:$0x3]
  %v156 = vld [vmem:[%s0 + $0xf8] sm:$0x3]
  %v157 = vld [vmem:[%s0 + $0xfa] sm:$0x3]
  %v158 = vld [vmem:[%s0 + $0xfc] sm:$0x3]
  %v159 = vld [vmem:[%s0 + $0xfe] sm:$0x3]
  %v160 = vld [vmem:[%s0 + $0x100] sm:$0x3]
  %v161 = vld [vmem:[%s0 + $0x102] sm:$0x3]
  %v162 = vld [vmem:[%s0 + $0x104] sm:$0x3]
  %v163 = vld [vmem:[%s0 + $0x106] sm:$0x3]
  %v164 = vld [vmem:[%s0 + $0x108] sm:$0x3]
  %v165 = vld [vmem:[%s0 + $0x10a] sm:$0x3]
  %v166 = vld [vmem:[%s0 + $0x10c] sm:$0x3]
  %v167 = vld [vmem:[%s0 + $0x10e] sm:$0x3]
  %v168 = vld [vmem:[%s0 + $0x110] sm:$0x3]
  %v169 = vld [vmem:[%s0 + $0x112] sm:$0x3]
  %v170 = vld [vmem:[%s0 + $0x114] sm:$0x3]
  %v171 = vld [vmem:[%s0 + $0x116] sm:$0x3]
  %v172 = vld [vmem:[%s0 + $0x118] sm:$0x3]
  %v173 = vld [vmem:[%s0 + $0x11a] sm:$0x3]
  %v174 = vld [vmem:[%s0 + $0x11c] sm:$0x3]
  %v175 = vld [vmem:[%s0 + $0x11e] sm:$0x3]
  %v176 = vld [vmem:[%s0 + $0x120] sm:$0x3]
  %v177 = vld [vmem:[%s0 + $0x122] sm:$0x3]
  %v178 = vld [vmem:[%s0 + $0x124] sm:$0x3]
  %v179 = vld [vmem:[%s0 + $0x126] sm:$0x3]
  %v180 = vld [vmem:[%s0 + $0x128] sm:$0x3]
  %v181 = vld [vmem:[%s0 + $0x12a] sm:$0x3]
  %v182 = vld [vmem:[%s0 + $0x12c] sm:$0x3]
  %v183 = vld [vmem:[%s0 + $0x12e] sm:$0x3]
  %v184 = vld [vmem:[%s0 + $0x130] sm:$0x3]
  %v185 = vld [vmem:[%s0 + $0x132] sm:$0x3]
  %v186 = vld [vmem:[%s0 + $0x134] sm:$0x3]
  %v187 = vld [vmem:[%s0 + $0x136] sm:$0x3]
  %v188 = vld [vmem:[%s0 + $0x138] sm:$0x3]
  %v189 = vld [vmem:[%s0 + $0x13a] sm:$0x3]
  %v190 = vld [vmem:[%s0 + $0x13c] sm:$0x3]
  %v191 = vld [vmem:[%s0 + $0x13e] sm:$0x3]
  %v192 = vld [vmem:[%s0 + $0x140] sm:$0x3]
  %v193 = vld [vmem:[%s0 + $0x142] sm:$0x3]
  %v194 = vld [vmem:[%s0 + $0x144] sm:$0x3]
  %v195 = vld [vmem:[%s0 + $0x146] sm:$0x3]
  %v196 = vld [vmem:[%s0 + $0x148] sm:$0x3]
  %v197 = vld [vmem:[%s0 + $0x14a] sm:$0x3]
  %v198 = vld [vmem:[%s0 + $0x14c] sm:$0x3]
  %v199 = vld [vmem:[%s0 + $0x14e] sm:$0x3]
  %v200 = vld [vmem:[%s0 + $0x150] sm:$0x3]
  %v201 = vld [vmem:[%s0 + $0x152] sm:$0x3]
  %v202 = vld [vmem:[%s0 + $0x154] sm:$0x3]
  %v203 = vld [vmem:[%s0 + $0x156] sm:$0x3]
  %v204 = vld [vmem:[%s0 + $0x158] sm:$0x3]
  %v205 = vld [vmem:[%s0 + $0x15a] sm:$0x3]
  %v206 = vld [vmem:[%s0 + $0x15c] sm:$0x3]
  %v207 = vld [vmem:[%s0 + $0x15e] sm:$0x3]
  %v208 = vld [vmem:[%s0 + $0x160] sm:$0x3]
  %v209 = vld [vmem:[%s0 + $0x162] sm:$0x3]
  %v210 = vld [vmem:[%s0 + $0x164] sm:$0x3]
  %v211 = vld [vmem:[%s0 + $0x166] sm:$0x3]
  %v212 = vld [vmem:[%s0 + $0x168] sm:$0x3]
  %v213 = vld [vmem:[%s0 + $0x16a] sm:$0x3]
  %v214 = vld [vmem:[%s0 + $0x16c] sm:$0x3]
  %v215 = vld [vmem:[%s0 + $0x16e] sm:$0x3]
  %v216 = vld [vmem:[%s0 + $0x170] sm:$0x3]
  %v217 = vld [vmem:[%s0 + $0x172] sm:$0x3]
  %v218 = vld [vmem:[%s0 + $0x174] sm:$0x3]
  %v219 = vld [vmem:[%s0 + $0x176] sm:$0x3]
  %v220 = vld [vmem:[%s0 + $0x178] sm:$0x3]
  %v221 = vld [vmem:[%s0 + $0x17a] sm:$0x3]
  %v222 = vld [vmem:[%s0 + $0x17c] sm:$0x3]
  %v223 = vld [vmem:[%s0 + $0x17e] sm:$0x3]
  %v224 = vld [vmem:[%s0 + $0x180] sm:$0x3]
  %v225 = vld [vmem:[%s0 + $0x182] sm:$0x3]
  %v226 = vld [vmem:[%s0 + $0x184] sm:$0x3]
  %v227 = vld [vmem:[%s0 + $0x186] sm:$0x3]
  %v228 = vld [vmem:[%s0 + $0x188] sm:$0x3]
  %v229 = vld [vmem:[%s0 + $0x18a] sm:$0x3]
  %v230 = vld [vmem:[%s0 + $0x18c] sm:$0x3]
  %v231 = vld [vmem:[%s0 + $0x18e] sm:$0x3]
  %v232 = vld [vmem:[%s0 + $0x190] sm:$0x3]
  %v233 = vld [vmem:[%s0 + $0x192] sm:$0x3]
  %v234 = vld [vmem:[%s0 + $0x194] sm:$0x3]
  %v235 = vld [vmem:[%s0 + $0x196] sm:$0x3]
  %v236 = vld [vmem:[%s0 + $0x198] sm:$0x3]
  %v237 = vld [vmem:[%s0 + $0x19a] sm:$0x3]
  %v238 = vld [vmem:[%s0 + $0x19c] sm:$0x3]
  %v239 = vld [vmem:[%s0 + $0x19e] sm:$0x3]
  %v240 = vld [vmem:[%s0 + $0x1a0] sm:$0x3]
  %v241 = vld [vmem:[%s0 + $0x1a2] sm:$0x3]
  %v242 = vld [vmem:[%s0 + $0x1a4] sm:$0x3]
  %v243 = vld [vmem:[%s0 + $0x1a6] sm:$0x3]
  %v244 = vld [vmem:[%s0 + $0x1a8] sm:$0x3]
  %v245 = vld [vmem:[%s0 + $0x1aa] sm:$0x3]
  %v246 = vld [vmem:[%s0 + $0x1ac] sm:$0x3]
  %v247 = vld [vmem:[%s0 + $0x1ae] sm:$0x3]
  %v248 = vld [vmem:[%s0 + $0x1b0] sm:$0x3]
  %v249 = vld [vmem:[%s0 + $0x1b2] sm:$0x3]
  %v250 = vld [vmem:[%s0 + $0x1b4] sm:$0x3]
  %v251 = vld [vmem:[%s0 + $0x1b6] sm:$0x3]
  %v252 = vld [vmem:[%s0 + $0x1b8] sm:$0x3]
  %v253 = vld [vmem:[%s0 + $0x1ba] sm:$0x3]
  %v254 = vld [vmem:[%s0 + $0x1bc] sm:$0x3]
  %v255 = vld [vmem:[%s0 + $0x1be] sm:$0x3]
  %v256 = vld [vmem:[%s0 + $0x1c0] sm:$0x3]
  %v257 = vld [vmem:[%s0 + $0x1c2] sm:$0x3]
  %v258 = vld [vmem:[%s0 + $0x1c4] sm:$0x3]
  %v259 = vld [vmem:[%s0 + $0x1c6] sm:$0x3]
  %v260 = vld [vmem:[%s0 + $0x1c8] sm:$0x3]
  %v261 = vld [vmem:[%s0 + $0x1ca] sm:$0x3]
  %v262 = vld [vmem:[%s0 + $0x1cc] sm:$0x3]
  %v263 = vld [vmem:[%s0 + $0x1ce] sm:$0x3]
  %v264 = vld [vmem:[%s0 + $0x1d0] sm:$0x3]
  %v265 = vld [vmem:[%s0 + $0x1d2] sm:$0x3]
  %v266 = vld [vmem:[%s0 + $0x1d4] sm:$0x3]
  %v267 = vld [vmem:[%s0 + $0x1d6] sm:$0x3]
  %v268 = vld [vmem:[%s0 + $0x1d8] sm:$0x3]
  %v269 = vld [vmem:[%s0 + $0x1da] sm:$0x3]
  %v270 = vld [vmem:[%s0 + $0x1dc] sm:$0x3]
  %v271 = vld [vmem:[%s0 + $0x1de] sm:$0x3]
  %v272 = vld [vmem:[%s0 + $0x1e0] sm:$0x3]
  %v273 = vld [vmem:[%s0 + $0x1e2] sm:$0x3]
  %v274 = vld [vmem:[%s0 + $0x1e4] sm:$0x3]
  %v275 = vld [vmem:[%s0 + $0x1e6] sm:$0x3]
  %v276 = vld [vmem:[%s0 + $0x1e8] sm:$0x3]
  %v277 = vld [vmem:[%s0 + $0x1ea] sm:$0x3]
  %v278 = vld [vmem:[%s0 + $0x1ec] sm:$0x3]
  %v279 = vld [vmem:[%s0 + $0x1ee] sm:$0x3]
  %v280 = vld [vmem:[%s0 + $0x1f0] sm:$0x3]
  %v281 = vld [vmem:[%s0 + $0x1f2] sm:$0x3]
  %v282 = vld [vmem:[%s0 + $0x1f4] sm:$0x3]
  %v283 = vld [vmem:[%s0 + $0x1f6] sm:$0x3]
  %v284 = vld [vmem:[%s0 + $0x1f8] sm:$0x3]
  %v285 = vld [vmem:[%s0 + $0x1fa] sm:$0x3]
  %v286 = vld [vmem:[%s0 + $0x1fc] sm:$0x3]
  %v287 = vld [vmem:[%s0 + $0x1fe] sm:$0x3]
  %vm288 = vcmask 25600
  %v289 = vsel %vm288, %v32, -inf
  %v290 = vsel %vm288, %v48, -inf
  %v291 = vmax.f32 %v289, %v290
  %v292 = vsel %vm288, %v33, -inf
  %v293 = vsel %vm288, %v49, -inf
  %v294 = vmax.f32 %v292, %v293
  %v295 = vsel %vm288, %v34, -inf
  %v296 = vsel %vm288, %v50, -inf
  %v297 = vmax.f32 %v295, %v296
  %v298 = vsel %vm288, %v35, -inf
  %v299 = vsel %vm288, %v51, -inf
  %v300 = vmax.f32 %v298, %v299
  %v301 = vsel %vm288, %v36, -inf
  %v302 = vsel %vm288, %v52, -inf
  %v303 = vmax.f32 %v301, %v302
  %v304 = vsel %vm288, %v37, -inf
  %v305 = vsel %vm288, %v53, -inf
  %v306 = vmax.f32 %v304, %v305
  %v307 = vsel %vm288, %v38, -inf
  %v308 = vsel %vm288, %v54, -inf
  %v309 = vmax.f32 %v307, %v308
  %v310 = vsel %vm288, %v39, -inf
  %v311 = vsel %vm288, %v55, -inf
  %v312 = vmax.f32 %v310, %v311
  %v313 = vsel %vm288, %v40, -inf
  %v314 = vsel %vm288, %v56, -inf
  %v315 = vmax.f32 %v313, %v314
  %v316 = vsel %vm288, %v41, -inf
  %v317 = vsel %vm288, %v57, -inf
  %v318 = vmax.f32 %v316, %v317
  %v319 = vsel %vm288, %v42, -inf
  %v320 = vsel %vm288, %v58, -inf
  %v321 = vmax.f32 %v319, %v320
  %v322 = vsel %vm288, %v43, -inf
  %v323 = vsel %vm288, %v59, -inf
  %v324 = vmax.f32 %v322, %v323
  %v325 = vsel %vm288, %v44, -inf
  %v326 = vsel %vm288, %v60, -inf
  %v327 = vmax.f32 %v325, %v326
  %v328 = vsel %vm288, %v45, -inf
  %v329 = vsel %vm288, %v61, -inf
  %v330 = vmax.f32 %v328, %v329
  %v331 = vsel %vm288, %v46, -inf
  %v332 = vsel %vm288, %v62, -inf
  %v333 = vmax.f32 %v331, %v332
  %v334 = vsel %vm288, %v47, -inf
  %v335 = vsel %vm288, %v63, -inf
  %v336 = vmax.f32 %v334, %v335
  %v337 = vsel %vm288, %v64, -inf
  %v338 = vsel %vm288, %v80, -inf
  %v339 = vmax.f32 %v337, %v338
  %v340 = vsel %vm288, %v65, -inf
  %v341 = vsel %vm288, %v81, -inf
  %v342 = vmax.f32 %v340, %v341
  %v343 = vsel %vm288, %v66, -inf
  %v344 = vsel %vm288, %v82, -inf
  %v345 = vmax.f32 %v343, %v344
  %v346 = vsel %vm288, %v67, -inf
  %v347 = vsel %vm288, %v83, -inf
  %v348 = vmax.f32 %v346, %v347
  %v349 = vsel %vm288, %v68, -inf
  %v350 = vsel %vm288, %v84, -inf
  %v351 = vmax.f32 %v349, %v350
  %v352 = vsel %vm288, %v69, -inf
  %v353 = vsel %vm288, %v85, -inf
  %v354 = vmax.f32 %v352, %v353
  %v355 = vsel %vm288, %v70, -inf
  %v356 = vsel %vm288, %v86, -inf
  %v357 = vmax.f32 %v355, %v356
  %v358 = vsel %vm288, %v71, -inf
  %v359 = vsel %vm288, %v87, -inf
  %v360 = vmax.f32 %v358, %v359
  %v361 = vsel %vm288, %v72, -inf
  %v362 = vsel %vm288, %v88, -inf
  %v363 = vmax.f32 %v361, %v362
  %v364 = vsel %vm288, %v73, -inf
  %v365 = vsel %vm288, %v89, -inf
  %v366 = vmax.f32 %v364, %v365
  %v367 = vsel %vm288, %v74, -inf
  %v368 = vsel %vm288, %v90, -inf
  %v369 = vmax.f32 %v367, %v368
  %v370 = vsel %vm288, %v75, -inf
  %v371 = vsel %vm288, %v91, -inf
  %v372 = vmax.f32 %v370, %v371
  %v373 = vsel %vm288, %v76, -inf
  %v374 = vsel %vm288, %v92, -inf
  %v375 = vmax.f32 %v373, %v374
  %v376 = vsel %vm288, %v77, -inf
  %v377 = vsel %vm288, %v93, -inf
  %v378 = vmax.f32 %v376, %v377
  %v379 = vsel %vm288, %v78, -inf
  %v380 = vsel %vm288, %v94, -inf
  %v381 = vmax.f32 %v379, %v380
  %v382 = vsel %vm288, %v79, -inf
  %v383 = vsel %vm288, %v95, -inf
  %v384 = vmax.f32 %v382, %v383
  %v385 = vsel %vm288, %v96, -inf
  %v386 = vsel %vm288, %v112, -inf
  %v387 = vmax.f32 %v385, %v386
  %v388 = vsel %vm288, %v97, -inf
  %v389 = vsel %vm288, %v113, -inf
  %v390 = vmax.f32 %v388, %v389
  %v391 = vsel %vm288, %v98, -inf
  %v392 = vsel %vm288, %v114, -inf
  %v393 = vmax.f32 %v391, %v392
  %v394 = vsel %vm288, %v99, -inf
  %v395 = vsel %vm288, %v115, -inf
  %v396 = vmax.f32 %v394, %v395
  %v397 = vsel %vm288, %v100, -inf
  %v398 = vsel %vm288, %v116, -inf
  %v399 = vmax.f32 %v397, %v398
  %v400 = vsel %vm288, %v101, -inf
  %v401 = vsel %vm288, %v117, -inf
  %v402 = vmax.f32 %v400, %v401
  %v403 = vsel %vm288, %v102, -inf
  %v404 = vsel %vm288, %v118, -inf
  %v405 = vmax.f32 %v403, %v404
  %v406 = vsel %vm288, %v103, -inf
  %v407 = vsel %vm288, %v119, -inf
  %v408 = vmax.f32 %v406, %v407
  %v409 = vsel %vm288, %v104, -inf
  %v410 = vsel %vm288, %v120, -inf
  %v411 = vmax.f32 %v409, %v410
  %v412 = vsel %vm288, %v105, -inf
  %v413 = vsel %vm288, %v121, -inf
  %v414 = vmax.f32 %v412, %v413
  %v415 = vsel %vm288, %v106, -inf
  %v416 = vsel %vm288, %v122, -inf
  %v417 = vmax.f32 %v415, %v416
  %v418 = vsel %vm288, %v107, -inf
  %v419 = vsel %vm288, %v123, -inf
  %v420 = vmax.f32 %v418, %v419
  %v421 = vsel %vm288, %v108, -inf
  %v422 = vsel %vm288, %v124, -inf
  %v423 = vmax.f32 %v421, %v422
  %v424 = vsel %vm288, %v109, -inf
  %v425 = vsel %vm288, %v125, -inf
  %v426 = vmax.f32 %v424, %v425
  %v427 = vsel %vm288, %v110, -inf
  %v428 = vsel %vm288, %v126, -inf
  %v429 = vmax.f32 %v427, %v428
  %v430 = vsel %vm288, %v111, -inf
  %v431 = vsel %vm288, %v127, -inf
  %v432 = vmax.f32 %v430, %v431
  %v433 = vsel %vm288, %v128, -inf
  %v434 = vsel %vm288, %v144, -inf
  %v435 = vmax.f32 %v433, %v434
  %v436 = vsel %vm288, %v129, -inf
  %v437 = vsel %vm288, %v145, -inf
  %v438 = vmax.f32 %v436, %v437
  %v439 = vsel %vm288, %v130, -inf
  %v440 = vsel %vm288, %v146, -inf
  %v441 = vmax.f32 %v439, %v440
  %v442 = vsel %vm288, %v131, -inf
  %v443 = vsel %vm288, %v147, -inf
  %v444 = vmax.f32 %v442, %v443
  %v445 = vsel %vm288, %v132, -inf
  %v446 = vsel %vm288, %v148, -inf
  %v447 = vmax.f32 %v445, %v446
  %v448 = vsel %vm288, %v133, -inf
  %v449 = vsel %vm288, %v149, -inf
  %v450 = vmax.f32 %v448, %v449
  %v451 = vsel %vm288, %v134, -inf
  %v452 = vsel %vm288, %v150, -inf
  %v453 = vmax.f32 %v451, %v452
  %v454 = vsel %vm288, %v135, -inf
  %v455 = vsel %vm288, %v151, -inf
  %v456 = vmax.f32 %v454, %v455
  %v457 = vsel %vm288, %v136, -inf
  %v458 = vsel %vm288, %v152, -inf
  %v459 = vmax.f32 %v457, %v458
  %v460 = vsel %vm288, %v137, -inf
  %v461 = vsel %vm288, %v153, -inf
  %v462 = vmax.f32 %v460, %v461
  %v463 = vsel %vm288, %v138, -inf
  %v464 = vsel %vm288, %v154, -inf
  %v465 = vmax.f32 %v463, %v464
  %v466 = vsel %vm288, %v139, -inf
  %v467 = vsel %vm288, %v155, -inf
  %v468 = vmax.f32 %v466, %v467
  %v469 = vsel %vm288, %v140, -inf
  %v470 = vsel %vm288, %v156, -inf
  %v471 = vmax.f32 %v469, %v470
  %v472 = vsel %vm288, %v141, -inf
  %v473 = vsel %vm288, %v157, -inf
  %v474 = vmax.f32 %v472, %v473
  %v475 = vsel %vm288, %v142, -inf
  %v476 = vsel %vm288, %v158, -inf
  %v477 = vmax.f32 %v475, %v476
  %v478 = vsel %vm288, %v143, -inf
  %v479 = vsel %vm288, %v159, -inf
  %v480 = vmax.f32 %v478, %v479
  %v481 = vsel %vm288, %v160, -inf
  %v482 = vsel %vm288, %v176, -inf
  %v483 = vmax.f32 %v481, %v482
  %v484 = vsel %vm288, %v161, -inf
  %v485 = vsel %vm288, %v177, -inf
  %v486 = vmax.f32 %v484, %v485
  %v487 = vsel %vm288, %v162, -inf
  %v488 = vsel %vm288, %v178, -inf
  %v489 = vmax.f32 %v487, %v488
  %v490 = vsel %vm288, %v163, -inf
  %v491 = vsel %vm288, %v179, -inf
  %v492 = vmax.f32 %v490, %v491
  %v493 = vsel %vm288, %v164, -inf
  %v494 = vsel %vm288, %v180, -inf
  %v495 = vmax.f32 %v493, %v494
  %v496 = vsel %vm288, %v165, -inf
  %v497 = vsel %vm288, %v181, -inf
  %v498 = vmax.f32 %v496, %v497
  %v499 = vsel %vm288, %v166, -inf
  %v500 = vsel %vm288, %v182, -inf
  %v501 = vmax.f32 %v499, %v500
  %v502 = vsel %vm288, %v167, -inf
  %v503 = vsel %vm288, %v183, -inf
  %v504 = vmax.f32 %v502, %v503
  %v505 = vsel %vm288, %v168, -inf
  %v506 = vsel %vm288, %v184, -inf
  %v507 = vmax.f32 %v505, %v506
  %v508 = vsel %vm288, %v169, -inf
  %v509 = vsel %vm288, %v185, -inf
  %v510 = vmax.f32 %v508, %v509
  %v511 = vsel %vm288, %v170, -inf
  %v512 = vsel %vm288, %v186, -inf
  %v513 = vmax.f32 %v511, %v512
  %v514 = vsel %vm288, %v171, -inf
  %v515 = vsel %vm288, %v187, -inf
  %v516 = vmax.f32 %v514, %v515
  %v517 = vsel %vm288, %v172, -inf
  %v518 = vsel %vm288, %v188, -inf
  %v519 = vmax.f32 %v517, %v518
  %v520 = vsel %vm288, %v173, -inf
  %v521 = vsel %vm288, %v189, -inf
  %v522 = vmax.f32 %v520, %v521
  %v523 = vsel %vm288, %v174, -inf
  %v524 = vsel %vm288, %v190, -inf
  %v525 = vmax.f32 %v523, %v524
  %v526 = vsel %vm288, %v175, -inf
  %v527 = vsel %vm288, %v191, -inf
  %v528 = vmax.f32 %v526, %v527
  %v529 = vsel %vm288, %v192, -inf
  %v530 = vsel %vm288, %v208, -inf
  %v531 = vmax.f32 %v529, %v530
  %v532 = vsel %vm288, %v193, -inf
  %v533 = vsel %vm288, %v209, -inf
  %v534 = vmax.f32 %v532, %v533
  %v535 = vsel %vm288, %v194, -inf
  %v536 = vsel %vm288, %v210, -inf
  %v537 = vmax.f32 %v535, %v536
  %v538 = vsel %vm288, %v195, -inf
  %v539 = vsel %vm288, %v211, -inf
  %v540 = vmax.f32 %v538, %v539
  %v541 = vsel %vm288, %v196, -inf
  %v542 = vsel %vm288, %v212, -inf
  %v543 = vmax.f32 %v541, %v542
  %v544 = vsel %vm288, %v197, -inf
  %v545 = vsel %vm288, %v213, -inf
  %v546 = vmax.f32 %v544, %v545
  %v547 = vsel %vm288, %v198, -inf
  %v548 = vsel %vm288, %v214, -inf
  %v549 = vmax.f32 %v547, %v548
  %v550 = vsel %vm288, %v199, -inf
  %v551 = vsel %vm288, %v215, -inf
  %v552 = vmax.f32 %v550, %v551
  %v553 = vsel %vm288, %v200, -inf
  %v554 = vsel %vm288, %v216, -inf
  %v555 = vmax.f32 %v553, %v554
  %v556 = vsel %vm288, %v201, -inf
  %v557 = vsel %vm288, %v217, -inf
  %v558 = vmax.f32 %v556, %v557
  %v559 = vsel %vm288, %v202, -inf
  %v560 = vsel %vm288, %v218, -inf
  %v561 = vmax.f32 %v559, %v560
  %v562 = vsel %vm288, %v203, -inf
  %v563 = vsel %vm288, %v219, -inf
  %v564 = vmax.f32 %v562, %v563
  %v565 = vsel %vm288, %v204, -inf
  %v566 = vsel %vm288, %v220, -inf
  %v567 = vmax.f32 %v565, %v566
  %v568 = vsel %vm288, %v205, -inf
  %v569 = vsel %vm288, %v221, -inf
  %v570 = vmax.f32 %v568, %v569
  %v571 = vsel %vm288, %v206, -inf
  %v572 = vsel %vm288, %v222, -inf
  %v573 = vmax.f32 %v571, %v572
  %v574 = vsel %vm288, %v207, -inf
  %v575 = vsel %vm288, %v223, -inf
  %v576 = vmax.f32 %v574, %v575
  %v577 = vsel %vm288, %v224, -inf
  %v578 = vsel %vm288, %v240, -inf
  %v579 = vmax.f32 %v577, %v578
  %v580 = vsel %vm288, %v225, -inf
  %v581 = vsel %vm288, %v241, -inf
  %v582 = vmax.f32 %v580, %v581
  %v583 = vsel %vm288, %v226, -inf
  %v584 = vsel %vm288, %v242, -inf
  %v585 = vmax.f32 %v583, %v584
  %v586 = vsel %vm288, %v227, -inf
  %v587 = vsel %vm288, %v243, -inf
  %v588 = vmax.f32 %v586, %v587
  %v589 = vsel %vm288, %v228, -inf
  %v590 = vsel %vm288, %v244, -inf
  %v591 = vmax.f32 %v589, %v590
  %v592 = vsel %vm288, %v229, -inf
  %v593 = vsel %vm288, %v245, -inf
  %v594 = vmax.f32 %v592, %v593
  %v595 = vsel %vm288, %v230, -inf
  %v596 = vsel %vm288, %v246, -inf
  %v597 = vmax.f32 %v595, %v596
  %v598 = vsel %vm288, %v231, -inf
  %v599 = vsel %vm288, %v247, -inf
  %v600 = vmax.f32 %v598, %v599
  %v601 = vsel %vm288, %v232, -inf
  %v602 = vsel %vm288, %v248, -inf
  %v603 = vmax.f32 %v601, %v602
  %v604 = vsel %vm288, %v233, -inf
  %v605 = vsel %vm288, %v249, -inf
  %v606 = vmax.f32 %v604, %v605
  %v607 = vsel %vm288, %v234, -inf
  %v608 = vsel %vm288, %v250, -inf
  %v609 = vmax.f32 %v607, %v608
  %v610 = vsel %vm288, %v235, -inf
  %v611 = vsel %vm288, %v251, -inf
  %v612 = vmax.f32 %v610, %v611
  %v613 = vsel %vm288, %v236, -inf
  %v614 = vsel %vm288, %v252, -inf
  %v615 = vmax.f32 %v613, %v614
  %v616 = vsel %vm288, %v237, -inf
  %v617 = vsel %vm288, %v253, -inf
  %v618 = vmax.f32 %v616, %v617
  %v619 = vsel %vm288, %v238, -inf
  %v620 = vsel %vm288, %v254, -inf
  %v621 = vmax.f32 %v619, %v620
  %v622 = vsel %vm288, %v239, -inf
  %v623 = vsel %vm288, %v255, -inf
  %v624 = vmax.f32 %v622, %v623
  %v625 = vsel %vm288, %v256, -inf
  %v626 = vsel %vm288, %v272, -inf
  %v627 = vmax.f32 %v625, %v626
  %v628 = vsel %vm288, %v257, -inf
  %v629 = vsel %vm288, %v273, -inf
  %v630 = vmax.f32 %v628, %v629
  %v631 = vsel %vm288, %v258, -inf
  %v632 = vsel %vm288, %v274, -inf
  %v633 = vmax.f32 %v631, %v632
  %v634 = vsel %vm288, %v259, -inf
  %v635 = vsel %vm288, %v275, -inf
  %v636 = vmax.f32 %v634, %v635
  %v637 = vsel %vm288, %v260, -inf
  %v638 = vsel %vm288, %v276, -inf
  %v639 = vmax.f32 %v637, %v638
  %v640 = vsel %vm288, %v261, -inf
  %v641 = vsel %vm288, %v277, -inf
  %v642 = vmax.f32 %v640, %v641
  %v643 = vsel %vm288, %v262, -inf
  %v644 = vsel %vm288, %v278, -inf
  %v645 = vmax.f32 %v643, %v644
  %v646 = vsel %vm288, %v263, -inf
  %v647 = vsel %vm288, %v279, -inf
  %v648 = vmax.f32 %v646, %v647
  %v649 = vsel %vm288, %v264, -inf
  %v650 = vsel %vm288, %v280, -inf
  %v651 = vmax.f32 %v649, %v650
  %v652 = vsel %vm288, %v265, -inf
  %v653 = vsel %vm288, %v281, -inf
  %v654 = vmax.f32 %v652, %v653
  %v655 = vsel %vm288, %v266, -inf
  %v656 = vsel %vm288, %v282, -inf
  %v657 = vmax.f32 %v655, %v656
  %v658 = vsel %vm288, %v267, -inf
  %v659 = vsel %vm288, %v283, -inf
  %v660 = vmax.f32 %v658, %v659
  %v661 = vsel %vm288, %v268, -inf
  %v662 = vsel %vm288, %v284, -inf
  %v663 = vmax.f32 %v661, %v662
  %v664 = vsel %vm288, %v269, -inf
  %v665 = vsel %vm288, %v285, -inf
  %v666 = vmax.f32 %v664, %v665
  %v667 = vsel %vm288, %v270, -inf
  %v668 = vsel %vm288, %v286, -inf
  %v669 = vmax.f32 %v667, %v668
  %v670 = vsel %vm288, %v271, -inf
  %v671 = vsel %vm288, %v287, -inf
  %v672 = vmax.f32 %v670, %v671
  %v673 = vsel %vm288, %v291, -inf
  %v674 = vsel %vm288, %v294, -inf
  %v675 = vmax.f32 %v673, %v674
  %v676 = vsel %vm288, %v297, -inf
  %v677 = vsel %vm288, %v300, -inf
  %v678 = vmax.f32 %v676, %v677
  %v679 = vsel %vm288, %v303, -inf
  %v680 = vsel %vm288, %v306, -inf
  %v681 = vmax.f32 %v679, %v680
  %v682 = vsel %vm288, %v309, -inf
  %v683 = vsel %vm288, %v312, -inf
  %v684 = vmax.f32 %v682, %v683
  %v685 = vsel %vm288, %v315, -inf
  %v686 = vsel %vm288, %v318, -inf
  %v687 = vmax.f32 %v685, %v686
  %v688 = vsel %vm288, %v321, -inf
  %v689 = vsel %vm288, %v324, -inf
  %v690 = vmax.f32 %v688, %v689
  %v691 = vsel %vm288, %v327, -inf
  %v692 = vsel %vm288, %v330, -inf
  %v693 = vmax.f32 %v691, %v692
  %v694 = vsel %vm288, %v333, -inf
  %v695 = vsel %vm288, %v336, -inf
  %v696 = vmax.f32 %v694, %v695
  %v697 = vsel %vm288, %v339, -inf
  %v698 = vsel %vm288, %v342, -inf
  %v699 = vmax.f32 %v697, %v698
  %v700 = vsel %vm288, %v345, -inf
  %v701 = vsel %vm288, %v348, -inf
  %v702 = vmax.f32 %v700, %v701
  %v703 = vsel %vm288, %v351, -inf
  %v704 = vsel %vm288, %v354, -inf
  %v705 = vmax.f32 %v703, %v704
  %v706 = vsel %vm288, %v357, -inf
  %v707 = vsel %vm288, %v360, -inf
  %v708 = vmax.f32 %v706, %v707
  %v709 = vsel %vm288, %v363, -inf
  %v710 = vsel %vm288, %v366, -inf
  %v711 = vmax.f32 %v709, %v710
  %v712 = vsel %vm288, %v369, -inf
  %v713 = vsel %vm288, %v372, -inf
  %v714 = vmax.f32 %v712, %v713
  %v715 = vsel %vm288, %v375, -inf
  %v716 = vsel %vm288, %v378, -inf
  %v717 = vmax.f32 %v715, %v716
  %v718 = vsel %vm288, %v381, -inf
  %v719 = vsel %vm288, %v384, -inf
  %v720 = vmax.f32 %v718, %v719
  %v721 = vsel %vm288, %v387, -inf
  %v722 = vsel %vm288, %v390, -inf
  %v723 = vmax.f32 %v721, %v722
  %v724 = vsel %vm288, %v393, -inf
  %v725 = vsel %vm288, %v396, -inf
  %v726 = vmax.f32 %v724, %v725
  %v727 = vsel %vm288, %v399, -inf
  %v728 = vsel %vm288, %v402, -inf
  %v729 = vmax.f32 %v727, %v728
  %v730 = vsel %vm288, %v405, -inf
  %v731 = vsel %vm288, %v408, -inf
  %v732 = vmax.f32 %v730, %v731
  %v733 = vsel %vm288, %v411, -inf
  %v734 = vsel %vm288, %v414, -inf
  %v735 = vmax.f32 %v733, %v734
  %v736 = vsel %vm288, %v417, -inf
  %v737 = vsel %vm288, %v420, -inf
  %v738 = vmax.f32 %v736, %v737
  %v739 = vsel %vm288, %v423, -inf
  %v740 = vsel %vm288, %v426, -inf
  %v741 = vmax.f32 %v739, %v740
  %v742 = vsel %vm288, %v429, -inf
  %v743 = vsel %vm288, %v432, -inf
  %v744 = vmax.f32 %v742, %v743
  %v745 = vsel %vm288, %v435, -inf
  %v746 = vsel %vm288, %v438, -inf
  %v747 = vmax.f32 %v745, %v746
  %v748 = vsel %vm288, %v441, -inf
  %v749 = vsel %vm288, %v444, -inf
  %v750 = vmax.f32 %v748, %v749
  %v751 = vsel %vm288, %v447, -inf
  %v752 = vsel %vm288, %v450, -inf
  %v753 = vmax.f32 %v751, %v752
  %v754 = vsel %vm288, %v453, -inf
  %v755 = vsel %vm288, %v456, -inf
  %v756 = vmax.f32 %v754, %v755
  %v757 = vsel %vm288, %v459, -inf
  %v758 = vsel %vm288, %v462, -inf
  %v759 = vmax.f32 %v757, %v758
  %v760 = vsel %vm288, %v465, -inf
  %v761 = vsel %vm288, %v468, -inf
  %v762 = vmax.f32 %v760, %v761
  %v763 = vsel %vm288, %v471, -inf
  %v764 = vsel %vm288, %v474, -inf
  %v765 = vmax.f32 %v763, %v764
  %v766 = vsel %vm288, %v477, -inf
  %v767 = vsel %vm288, %v480, -inf
  %v768 = vmax.f32 %v766, %v767
  %v769 = vsel %vm288, %v483, -inf
  %v770 = vsel %vm288, %v486, -inf
  %v771 = vmax.f32 %v769, %v770
  %v772 = vsel %vm288, %v489, -inf
  %v773 = vsel %vm288, %v492, -inf
  %v774 = vmax.f32 %v772, %v773
  %v775 = vsel %vm288, %v495, -inf
  %v776 = vsel %vm288, %v498, -inf
  %v777 = vmax.f32 %v775, %v776
  %v778 = vsel %vm288, %v501, -inf
  %v779 = vsel %vm288, %v504, -inf
  %v780 = vmax.f32 %v778, %v779
  %v781 = vsel %vm288, %v507, -inf
  %v782 = vsel %vm288, %v510, -inf
  %v783 = vmax.f32 %v781, %v782
  %v784 = vsel %vm288, %v513, -inf
  %v785 = vsel %vm288, %v516, -inf
  %v786 = vmax.f32 %v784, %v785
  %v787 = vsel %vm288, %v519, -inf
  %v788 = vsel %vm288, %v522, -inf
  %v789 = vmax.f32 %v787, %v788
  %v790 = vsel %vm288, %v525, -inf
  %v791 = vsel %vm288, %v528, -inf
  %v792 = vmax.f32 %v790, %v791
  %v793 = vsel %vm288, %v531, -inf
  %v794 = vsel %vm288, %v534, -inf
  %v795 = vmax.f32 %v793, %v794
  %v796 = vsel %vm288, %v537, -inf
  %v797 = vsel %vm288, %v540, -inf
  %v798 = vmax.f32 %v796, %v797
  %v799 = vsel %vm288, %v543, -inf
  %v800 = vsel %vm288, %v546, -inf
  %v801 = vmax.f32 %v799, %v800
  %v802 = vsel %vm288, %v549, -inf
  %v803 = vsel %vm288, %v552, -inf
  %v804 = vmax.f32 %v802, %v803
  %v805 = vsel %vm288, %v555, -inf
  %v806 = vsel %vm288, %v558, -inf
  %v807 = vmax.f32 %v805, %v806
  %v808 = vsel %vm288, %v561, -inf
  %v809 = vsel %vm288, %v564, -inf
  %v810 = vmax.f32 %v808, %v809
  %v811 = vsel %vm288, %v567, -inf
  %v812 = vsel %vm288, %v570, -inf
  %v813 = vmax.f32 %v811, %v812
  %v814 = vsel %vm288, %v573, -inf
  %v815 = vsel %vm288, %v576, -inf
  %v816 = vmax.f32 %v814, %v815
  %v817 = vsel %vm288, %v579, -inf
  %v818 = vsel %vm288, %v582, -inf
  %v819 = vmax.f32 %v817, %v818
  %v820 = vsel %vm288, %v585, -inf
  %v821 = vsel %vm288, %v588, -inf
  %v822 = vmax.f32 %v820, %v821
  %v823 = vsel %vm288, %v591, -inf
  %v824 = vsel %vm288, %v594, -inf
  %v825 = vmax.f32 %v823, %v824
  %v826 = vsel %vm288, %v597, -inf
  %v827 = vsel %vm288, %v600, -inf
  %v828 = vmax.f32 %v826, %v827
  %v829 = vsel %vm288, %v603, -inf
  %v830 = vsel %vm288, %v606, -inf
  %v831 = vmax.f32 %v829, %v830
  %v832 = vsel %vm288, %v609, -inf
  %v833 = vsel %vm288, %v612, -inf
  %v834 = vmax.f32 %v832, %v833
  %v835 = vsel %vm288, %v615, -inf
  %v836 = vsel %vm288, %v618, -inf
  %v837 = vmax.f32 %v835, %v836
  %v838 = vsel %vm288, %v621, -inf
  %v839 = vsel %vm288, %v624, -inf
  %v840 = vmax.f32 %v838, %v839
  %v841 = vsel %vm288, %v627, -inf
  %v842 = vsel %vm288, %v630, -inf
  %v843 = vmax.f32 %v841, %v842
  %v844 = vsel %vm288, %v633, -inf
  %v845 = vsel %vm288, %v636, -inf
  %v846 = vmax.f32 %v844, %v845
  %v847 = vsel %vm288, %v639, -inf
  %v848 = vsel %vm288, %v642, -inf
  %v849 = vmax.f32 %v847, %v848
  %v850 = vsel %vm288, %v645, -inf
  %v851 = vsel %vm288, %v648, -inf
  %v852 = vmax.f32 %v850, %v851
  %v853 = vsel %vm288, %v651, -inf
  %v854 = vsel %vm288, %v654, -inf
  %v855 = vmax.f32 %v853, %v854
  %v856 = vsel %vm288, %v657, -inf
  %v857 = vsel %vm288, %v660, -inf
  %v858 = vmax.f32 %v856, %v857
  %v859 = vsel %vm288, %v663, -inf
  %v860 = vsel %vm288, %v666, -inf
  %v861 = vmax.f32 %v859, %v860
  %v862 = vsel %vm288, %v669, -inf
  %v863 = vsel %vm288, %v672, -inf
  %v864 = vmax.f32 %v862, %v863
  %v865 = vld [vmem:[%s1] sm:$0xf]
  %v866 = vld [vmem:[%s1 + $0x4] sm:$0xf]
  %v924 = vcombine.low 0.0, 0.0
  %v926 = vunpack.c.l.s4 1983009808
  %v927 = vunpack.c.0.s8 %v926
  %v928 = vlaneseq
  %v929 = vshrl.u32 %v928, 7
  %v930 = vsub.s32 %v927, %v929
  %v931 = vrot.slane %v924, %v930
  %v932 = vcombine.low %v931, %v931
  %v933 = vcombine.low %v675, %v678
  %v934 = vcombine.low %v681, %v684
  %v936 = vunpack.c.l.s4 1983009808
  %v937 = vunpack.c.0.s8 %v936
  %v938 = vlaneseq
  %v939 = vshrl.u32 %v938, 7
  %v940 = vsub.s32 %v937, %v939
  %v941 = vrot.slane %v933, %v940
  %v943 = vunpack.c.l.s4 1983009808
  %v944 = vunpack.c.0.s8 %v943
  %v945 = vlaneseq
  %v946 = vshrl.u32 %v945, 7
  %v947 = vsub.s32 %v944, %v946
  %v948 = vrot.slane %v934, %v947
  %v949 = vcombine.low %v941, %v948
  %v950 = vcombine.low %v687, %v690
  %v951 = vcombine.low %v693, %v696
  %v953 = vunpack.c.l.s4 1983009808
  %v954 = vunpack.c.0.s8 %v953
  %v955 = vlaneseq
  %v956 = vshrl.u32 %v955, 7
  %v957 = vsub.s32 %v954, %v956
  %v958 = vrot.slane %v950, %v957
  %v960 = vunpack.c.l.s4 1983009808
  %v961 = vunpack.c.0.s8 %v960
  %v962 = vlaneseq
  %v963 = vshrl.u32 %v962, 7
  %v964 = vsub.s32 %v961, %v963
  %v965 = vrot.slane %v951, %v964
  %v966 = vcombine.low %v958, %v965
  %v967 = vcombine.low %v699, %v702
  %v968 = vcombine.low %v705, %v708
  %v970 = vunpack.c.l.s4 1983009808
  %v971 = vunpack.c.0.s8 %v970
  %v972 = vlaneseq
  %v973 = vshrl.u32 %v972, 7
  %v974 = vsub.s32 %v971, %v973
  %v975 = vrot.slane %v967, %v974
  %v977 = vunpack.c.l.s4 1983009808
  %v978 = vunpack.c.0.s8 %v977
  %v979 = vlaneseq
  %v980 = vshrl.u32 %v979, 7
  %v981 = vsub.s32 %v978, %v980
  %v982 = vrot.slane %v968, %v981
  %v983 = vcombine.low %v975, %v982
  %v984 = vcombine.low %v711, %v714
  %v985 = vcombine.low %v717, %v720
  %v987 = vunpack.c.l.s4 1983009808
  %v988 = vunpack.c.0.s8 %v987
  %v989 = vlaneseq
  %v990 = vshrl.u32 %v989, 7
  %v991 = vsub.s32 %v988, %v990
  %v992 = vrot.slane %v984, %v991
  %v994 = vunpack.c.l.s4 1983009808
  %v995 = vunpack.c.0.s8 %v994
  %v996 = vlaneseq
  %v997 = vshrl.u32 %v996, 7
  %v998 = vsub.s32 %v995, %v997
  %v999 = vrot.slane %v985, %v998
  %v1000 = vcombine.low %v992, %v999
  %v1001 = vcombine.low %v723, %v726
  %v1002 = vcombine.low %v729, %v732
  %v1004 = vunpack.c.l.s4 1983009808
  %v1005 = vunpack.c.0.s8 %v1004
  %v1006 = vlaneseq
  %v1007 = vshrl.u32 %v1006, 7
  %v1008 = vsub.s32 %v1005, %v1007
  %v1009 = vrot.slane %v1001, %v1008
  %v1011 = vunpack.c.l.s4 1983009808
  %v1012 = vunpack.c.0.s8 %v1011
  %v1013 = vlaneseq
  %v1014 = vshrl.u32 %v1013, 7
  %v1015 = vsub.s32 %v1012, %v1014
  %v1016 = vrot.slane %v1002, %v1015
  %v1017 = vcombine.low %v1009, %v1016
  %v1018 = vcombine.low %v735, %v738
  %v1019 = vcombine.low %v741, %v744
  %v1021 = vunpack.c.l.s4 1983009808
  %v1022 = vunpack.c.0.s8 %v1021
  %v1023 = vlaneseq
  %v1024 = vshrl.u32 %v1023, 7
  %v1025 = vsub.s32 %v1022, %v1024
  %v1026 = vrot.slane %v1018, %v1025
  %v1028 = vunpack.c.l.s4 1983009808
  %v1029 = vunpack.c.0.s8 %v1028
  %v1030 = vlaneseq
  %v1031 = vshrl.u32 %v1030, 7
  %v1032 = vsub.s32 %v1029, %v1031
  %v1033 = vrot.slane %v1019, %v1032
  %v1034 = vcombine.low %v1026, %v1033
  %v1035 = vcombine.low %v747, %v750
  %v1036 = vcombine.low %v753, %v756
  %v1038 = vunpack.c.l.s4 1983009808
  %v1039 = vunpack.c.0.s8 %v1038
  %v1040 = vlaneseq
  %v1041 = vshrl.u32 %v1040, 7
  %v1042 = vsub.s32 %v1039, %v1041
  %v1043 = vrot.slane %v1035, %v1042
  %v1045 = vunpack.c.l.s4 1983009808
  %v1046 = vunpack.c.0.s8 %v1045
  %v1047 = vlaneseq
  %v1048 = vshrl.u32 %v1047, 7
  %v1049 = vsub.s32 %v1046, %v1048
  %v1050 = vrot.slane %v1036, %v1049
  %v1051 = vcombine.low %v1043, %v1050
  %v1052 = vcombine.low %v759, %v762
  %v1053 = vcombine.low %v765, %v768
  %v1055 = vunpack.c.l.s4 1983009808
  %v1056 = vunpack.c.0.s8 %v1055
  %v1057 = vlaneseq
  %v1058 = vshrl.u32 %v1057, 7
  %v1059 = vsub.s32 %v1056, %v1058
  %v1060 = vrot.slane %v1052, %v1059
  %v1062 = vunpack.c.l.s4 1983009808
  %v1063 = vunpack.c.0.s8 %v1062
  %v1064 = vlaneseq
  %v1065 = vshrl.u32 %v1064, 7
  %v1066 = vsub.s32 %v1063, %v1065
  %v1067 = vrot.slane %v1053, %v1066
  %v1068 = vcombine.low %v1060, %v1067
  %v1069 = vcombine.low %v771, %v774
  %v1070 = vcombine.low %v777, %v780
  %v1072 = vunpack.c.l.s4 1983009808
  %v1073 = vunpack.c.0.s8 %v1072
  %v1074 = vlaneseq
  %v1075 = vshrl.u32 %v1074, 7
  %v1076 = vsub.s32 %v1073, %v1075
  %v1077 = vrot.slane %v1069, %v1076
  %v1079 = vunpack.c.l.s4 1983009808
  %v1080 = vunpack.c.0.s8 %v1079
  %v1081 = vlaneseq
  %v1082 = vshrl.u32 %v1081, 7
  %v1083 = vsub.s32 %v1080, %v1082
  %v1084 = vrot.slane %v1070, %v1083
  %v1085 = vcombine.low %v1077, %v1084
  %v1086 = vcombine.low %v783, %v786
  %v1087 = vcombine.low %v789, %v792
  %v1089 = vunpack.c.l.s4 1983009808
  %v1090 = vunpack.c.0.s8 %v1089
  %v1091 = vlaneseq
  %v1092 = vshrl.u32 %v1091, 7
  %v1093 = vsub.s32 %v1090, %v1092
  %v1094 = vrot.slane %v1086, %v1093
  %v1096 = vunpack.c.l.s4 1983009808
  %v1097 = vunpack.c.0.s8 %v1096
  %v1098 = vlaneseq
  %v1099 = vshrl.u32 %v1098, 7
  %v1100 = vsub.s32 %v1097, %v1099
  %v1101 = vrot.slane %v1087, %v1100
  %v1102 = vcombine.low %v1094, %v1101
  %v1103 = vcombine.low %v795, %v798
  %v1104 = vcombine.low %v801, %v804
  %v1106 = vunpack.c.l.s4 1983009808
  %v1107 = vunpack.c.0.s8 %v1106
  %v1108 = vlaneseq
  %v1109 = vshrl.u32 %v1108, 7
  %v1110 = vsub.s32 %v1107, %v1109
  %v1111 = vrot.slane %v1103, %v1110
  %v1113 = vunpack.c.l.s4 1983009808
  %v1114 = vunpack.c.0.s8 %v1113
  %v1115 = vlaneseq
  %v1116 = vshrl.u32 %v1115, 7
  %v1117 = vsub.s32 %v1114, %v1116
  %v1118 = vrot.slane %v1104, %v1117
  %v1119 = vcombine.low %v1111, %v1118
  %v1120 = vcombine.low %v807, %v810
  %v1121 = vcombine.low %v813, %v816
  %v1123 = vunpack.c.l.s4 1983009808
  %v1124 = vunpack.c.0.s8 %v1123
  %v1125 = vlaneseq
  %v1126 = vshrl.u32 %v1125, 7
  %v1127 = vsub.s32 %v1124, %v1126
  %v1128 = vrot.slane %v1120, %v1127
  %v1130 = vunpack.c.l.s4 1983009808
  %v1131 = vunpack.c.0.s8 %v1130
  %v1132 = vlaneseq
  %v1133 = vshrl.u32 %v1132, 7
  %v1134 = vsub.s32 %v1131, %v1133
  %v1135 = vrot.slane %v1121, %v1134
  %v1136 = vcombine.low %v1128, %v1135
  %v1137 = vcombine.low %v819, %v822
  %v1138 = vcombine.low %v825, %v828
  %v1140 = vunpack.c.l.s4 1983009808
  %v1141 = vunpack.c.0.s8 %v1140
  %v1142 = vlaneseq
  %v1143 = vshrl.u32 %v1142, 7
  %v1144 = vsub.s32 %v1141, %v1143
  %v1145 = vrot.slane %v1137, %v1144
  %v1147 = vunpack.c.l.s4 1983009808
  %v1148 = vunpack.c.0.s8 %v1147
  %v1149 = vlaneseq
  %v1150 = vshrl.u32 %v1149, 7
  %v1151 = vsub.s32 %v1148, %v1150
  %v1152 = vrot.slane %v1138, %v1151
  %v1153 = vcombine.low %v1145, %v1152
  %v1154 = vcombine.low %v831, %v834
  %v1155 = vcombine.low %v837, %v840
  %v1157 = vunpack.c.l.s4 1983009808
  %v1158 = vunpack.c.0.s8 %v1157
  %v1159 = vlaneseq
  %v1160 = vshrl.u32 %v1159, 7
  %v1161 = vsub.s32 %v1158, %v1160
  %v1162 = vrot.slane %v1154, %v1161
  %v1164 = vunpack.c.l.s4 1983009808
  %v1165 = vunpack.c.0.s8 %v1164
  %v1166 = vlaneseq
  %v1167 = vshrl.u32 %v1166, 7
  %v1168 = vsub.s32 %v1165, %v1167
  %v1169 = vrot.slane %v1155, %v1168
  %v1170 = vcombine.low %v1162, %v1169
  %vm1171 = vcmask 31744
  %v1172 = vsel %vm1171, %v932, 0
  %v1174 = vsel %vm1171, %v949, 0
  %v1176 = vsel %vm1171, %v966, 0
  %v1178 = vsel %vm1171, %v983, 0
  %v1180 = vsel %vm1171, %v1000, 0
  %v1182 = vsel %vm1171, %v1017, 0
  %v1184 = vsel %vm1171, %v1034, 0
  %v1186 = vsel %vm1171, %v1051, 0
  %v1188 = vsel %vm1171, %v1068, 0
  %v1190 = vsel %vm1171, %v1085, 0
  %v1192 = vsel %vm1171, %v1102, 0
  %v1194 = vsel %vm1171, %v1119, 0
  %v1196 = vsel %vm1171, %v1136, 0
  %v1198 = vsel %vm1171, %v1153, 0
  %v1200 = vsel %vm1171, %v1170, 0
  %vm1202 = vcmask 1043456
  %v1204 = vsel %vm1202, %v866, 0
  %1206 = vmatprep.subr.mxu0 0.0
  %1207 = vmatpush1.msra.mxu0 %v1204
  %1208 = vmatprep.subr.mxu0 0.0
  %1209 = vmatpush1.msra.mxu0 0.0
  %1210 = vmatprep.subr.mxu0 0.0
  %1211 = vmatpush1.msra.mxu0 0.0
  %1212 = vmatprep.subr.mxu0 0.0
  %1213 = vmatpush1.msra.mxu0 0.0
  %1214 = vmatprep.subr.mxu0 0.0
  %1215 = vmatpush1.msra.mxu0 0.0
  %1216 = vmatprep.subr.mxu0 0.0
  %1217 = vmatpush1.msra.mxu0 0.0
  %1218 = vmatprep.subr.mxu0 0.0
  %1219 = vmatpush1.msra.mxu0 0.0
  %1220 = vmatprep.subr.mxu0 0.0
  %1221 = vmatpush1.msra.mxu0 0.0
  %1222 = vmatprep.subr.mxu0 0.0
  %1223 = vmatpush1.msra.mxu0 0.0
  %1224 = vmatprep.subr.mxu0 0.0
  %1225 = vmatpush1.msra.mxu0 0.0
  %1226 = vmatprep.subr.mxu0 0.0
  %1227 = vmatpush1.msra.mxu0 0.0
  %1228 = vmatprep.subr.mxu0 0.0
  %1229 = vmatpush1.msra.mxu0 0.0
  %1230 = vmatprep.subr.mxu0 0.0
  %1231 = vmatpush1.msra.mxu0 0.0
  %1232 = vmatprep.subr.mxu0 0.0
  %1233 = vmatpush1.msra.mxu0 0.0
  %1234 = vmatprep.subr.mxu0 0.0
  %1235 = vmatpush1.msra.mxu0 0.0
  %1236 = vmatprep.subr.mxu0 0.0
  %1237 = vmatpush1.msra.mxu0 0.0
  %1238 = vmatprep.subr.mxu0 0.0
  %1239 = vmatpush1.msra.mxu0 0.0
  %1240 = vmatprep.subr.mxu0 0.0
  %1241 = vmatpush1.msra.mxu0 0.0
  %1242 = vmatprep.subr.mxu0 0.0
  %1243 = vmatpush1.msra.mxu0 0.0
  %1244 = vmatprep.subr.mxu0 0.0
  %1245 = vmatpush1.msra.mxu0 0.0
  %1246 = vmatprep.subr.mxu0 0.0
  %1247 = vmatpush1.msra.mxu0 0.0
  %1248 = vmatprep.subr.mxu0 0.0
  %1249 = vmatpush1.msra.mxu0 0.0
  %1250 = vmatprep.subr.mxu0 0.0
  %1251 = vmatpush1.msra.mxu0 0.0
  %1252 = vmatprep.subr.mxu0 0.0
  %1253 = vmatpush1.msra.mxu0 0.0
  %1254 = vmatprep.subr.mxu0 0.0
  %1255 = vmatpush1.msra.mxu0 0.0
  %1256 = vmatprep.subr.mxu0 0.0
  %1257 = vmatpush1.msra.mxu0 0.0
  %1258 = vmatprep.subr.mxu0 0.0
  %1259 = vmatpush1.msra.mxu0 0.0
  %1260 = vmatprep.subr.mxu0 0.0
  %1261 = vmatpush1.msra.mxu0 0.0
  %1262 = vmatprep.subr.mxu0 0.0
  %1263 = vmatpush1.msra.mxu0 0.0
  %1264 = vmatprep.subr.mxu0 0.0
  %1265 = vmatpush1.msra.mxu0 0.0
  %1266 = vmatprep.subr.mxu0 0.0
  %1267 = vmatpush1.msra.mxu0 0.0
  %1268 = vmatprep.subr.mxu0 0.0
  %1269 = vmatpush1.msra.mxu0 0.0
  %1270 = vmatprep.mubr.f32.mxu0 0.0
  %1271 = vmatmul.mubr.f32.gmra.mrb[0].mxu0 %v1172
  %v1272 = vpop.f32.mrb[0].mxu0
  %v1273 = vadd.f32 0.0, %v1272
  %v1274 = vpop.f32.mrb[0].mxu0
  %1275 = vmatprep.mubr.f32.mxu0 0.0
  %1276 = vmatmul.mubr.f32.gmra.mrb[0].mxu0 %v1172
  %v1277 = vpop.f32.mrb[0].mxu0
  %v1278 = vadd.f32 0.0, %v1277
  %v1279 = vpop.f32.mrb[0].mxu0
  %1280 = vmatprep.mubr.f32.mxu0 0.0
  %1281 = vmatmul.mubr.f32.gmra.mrb[0].mxu0 %v1174
  %v1282 = vpop.f32.mrb[0].mxu0
  %v1283 = vadd.f32 0.0, %v1282
  %v1284 = vpop.f32.mrb[0].mxu0
  %1285 = vmatprep.mubr.f32.mxu0 0.0
  %1286 = vmatmul.mubr.f32.gmra.mrb[0].mxu0 %v1176
  %v1287 = vpop.f32.mrb[0].mxu0
  %v1288 = vadd.f32 0.0, %v1287
  %v1289 = vpop.f32.mrb[0].mxu0
  %1290 = vmatprep.mubr.f32.mxu0 0.0
  %1291 = vmatmul.mubr.f32.gmra.mrb[0].mxu0 %v1178
  %v1292 = vpop.f32.mrb[0].mxu0
  %v1293 = vadd.f32 0.0, %v1292
  %v1294 = vpop.f32.mrb[0].mxu0
  %1295 = vmatprep.mubr.f32.mxu0 0.0
  %1296 = vmatmul.mubr.f32.gmra.mrb[0].mxu0 %v1180
  %v1297 = vpop.f32.mrb[0].mxu0
  %v1298 = vadd.f32 0.0, %v1297
  %v1299 = vpop.f32.mrb[0].mxu0
  %1300 = vmatprep.mubr.f32.mxu0 0.0
  %1301 = vmatmul.mubr.f32.gmra.mrb[0].mxu0 %v1182
  %v1302 = vpop.f32.mrb[0].mxu0
  %v1303 = vadd.f32 0.0, %v1302
  %v1304 = vpop.f32.mrb[0].mxu0
  %1305 = vmatprep.mubr.f32.mxu0 0.0
  %1306 = vmatmul.mubr.f32.gmra.mrb[0].mxu0 %v1184
  %v1307 = vpop.f32.mrb[0].mxu0
  %v1308 = vadd.f32 0.0, %v1307
  %v1309 = vpop.f32.mrb[0].mxu0
  %1310 = vmatprep.mubr.f32.mxu0 0.0
  %1311 = vmatmul.mubr.f32.gmra.mrb[0].mxu0 %v1186
  %v1312 = vpop.f32.mrb[0].mxu0
  %v1313 = vadd.f32 0.0, %v1312
  %v1314 = vpop.f32.mrb[0].mxu0
  %1315 = vmatprep.mubr.f32.mxu0 0.0
  %1316 = vmatmul.mubr.f32.gmra.mrb[0].mxu0 %v1188
  %v1317 = vpop.f32.mrb[0].mxu0
  %v1318 = vadd.f32 0.0, %v1317
  %v1319 = vpop.f32.mrb[0].mxu0
  %1320 = vmatprep.mubr.f32.mxu0 0.0
  %1321 = vmatmul.mubr.f32.gmra.mrb[0].mxu0 %v1190
  %v1322 = vpop.f32.mrb[0].mxu0
  %v1323 = vadd.f32 0.0, %v1322
  %v1324 = vpop.f32.mrb[0].mxu0
  %1325 = vmatprep.mubr.f32.mxu0 0.0
  %1326 = vmatmul.mubr.f32.gmra.mrb[0].mxu0 %v1192
  %v1327 = vpop.f32.mrb[0].mxu0
  %v1328 = vadd.f32 0.0, %v1327
  %v1329 = vpop.f32.mrb[0].mxu0
  %1330 = vmatprep.mubr.f32.mxu0 0.0
  %1331 = vmatmul.mubr.f32.gmra.mrb[0].mxu0 %v1194
  %v1332 = vpop.f32.mrb[0].mxu0
  %v1333 = vadd.f32 0.0, %v1332
  %v1334 = vpop.f32.mrb[0].mxu0
  %1335 = vmatprep.mubr.f32.mxu0 0.0
  %1336 = vmatmul.mubr.f32.gmra.mrb[0].mxu0 %v1196
  %v1337 = vpop.f32.mrb[0].mxu0
  %v1338 = vadd.f32 0.0, %v1337
  %v1339 = vpop.f32.mrb[0].mxu0
  %1340 = vmatprep.mubr.f32.mxu0 0.0
  %1341 = vmatmul.mubr.f32.gmra.mrb[0].mxu0 %v1198
  %v1342 = vpop.f32.mrb[0].mxu0
  %v1343 = vadd.f32 0.0, %v1342
  %v1344 = vpop.f32.mrb[0].mxu0
  %1345 = vmatprep.mubr.f32.mxu0 0.0
  %1346 = vmatmul.mubr.f32.gmra.mrb[0].mxu0 %v1200
  %v1347 = vpop.f32.mrb[0].mxu0
  %v1348 = vadd.f32 0.0, %v1347
  %v1349 = vpop.f32.mrb[0].mxu0
  %1350 = vdwg.mxu0
  %v1351 = vcombine.low 0.0, %v675
  %v1352 = vcombine.low %v678, %v681
  %v1354 = vunpack.c.l.s4 1983009808
  %v1355 = vunpack.c.0.s8 %v1354
  %v1356 = vlaneseq
  %v1357 = vshrl.u32 %v1356, 7
  %v1358 = vsub.s32 %v1355, %v1357
  %v1359 = vrot.slane %v1351, %v1358
  %v1361 = vunpack.c.l.s4 1983009808
  %v1362 = vunpack.c.0.s8 %v1361
  %v1363 = vlaneseq
  %v1364 = vshrl.u32 %v1363, 7
  %v1365 = vsub.s32 %v1362, %v1364
  %v1366 = vrot.slane %v1352, %v1365
  %v1367 = vcombine.low %v1359, %v1366
  %v1368 = vcombine.low %v684, %v687
  %v1369 = vcombine.low %v690, %v693
  %v1371 = vunpack.c.l.s4 1983009808
  %v1372 = vunpack.c.0.s8 %v1371
  %v1373 = vlaneseq
  %v1374 = vshrl.u32 %v1373, 7
  %v1375 = vsub.s32 %v1372, %v1374
  %v1376 = vrot.slane %v1368, %v1375
  %v1378 = vunpack.c.l.s4 1983009808
  %v1379 = vunpack.c.0.s8 %v1378
  %v1380 = vlaneseq
  %v1381 = vshrl.u32 %v1380, 7
  %v1382 = vsub.s32 %v1379, %v1381
  %v1383 = vrot.slane %v1369, %v1382
  %v1384 = vcombine.low %v1376, %v1383
  %v1385 = vcombine.low 0.0, %v699
  %v1386 = vcombine.low %v702, %v705
  %v1388 = vunpack.c.l.s4 1983009808
  %v1389 = vunpack.c.0.s8 %v1388
  %v1390 = vlaneseq
  %v1391 = vshrl.u32 %v1390, 7
  %v1392 = vsub.s32 %v1389, %v1391
  %v1393 = vrot.slane %v1385, %v1392
  %v1395 = vunpack.c.l.s4 1983009808
  %v1396 = vunpack.c.0.s8 %v1395
  %v1397 = vlaneseq
  %v1398 = vshrl.u32 %v1397, 7
  %v1399 = vsub.s32 %v1396, %v1398
  %v1400 = vrot.slane %v1386, %v1399
  %v1401 = vcombine.low %v1393, %v1400
  %v1402 = vcombine.low %v708, %v711
  %v1403 = vcombine.low %v714, %v717
  %v1405 = vunpack.c.l.s4 1983009808
  %v1406 = vunpack.c.0.s8 %v1405
  %v1407 = vlaneseq
  %v1408 = vshrl.u32 %v1407, 7
  %v1409 = vsub.s32 %v1406, %v1408
  %v1410 = vrot.slane %v1402, %v1409
  %v1412 = vunpack.c.l.s4 1983009808
  %v1413 = vunpack.c.0.s8 %v1412
  %v1414 = vlaneseq
  %v1415 = vshrl.u32 %v1414, 7
  %v1416 = vsub.s32 %v1413, %v1415
  %v1417 = vrot.slane %v1403, %v1416
  %v1418 = vcombine.low %v1410, %v1417
  %v1419 = vcombine.low 0.0, %v723
  %v1420 = vcombine.low %v726, %v729
  %v1422 = vunpack.c.l.s4 1983009808
  %v1423 = vunpack.c.0.s8 %v1422
  %v1424 = vlaneseq
  %v1425 = vshrl.u32 %v1424, 7
  %v1426 = vsub.s32 %v1423, %v1425
  %v1427 = vrot.slane %v1419, %v1426
  %v1429 = vunpack.c.l.s4 1983009808
  %v1430 = vunpack.c.0.s8 %v1429
  %v1431 = vlaneseq
  %v1432 = vshrl.u32 %v1431, 7
  %v1433 = vsub.s32 %v1430, %v1432
  %v1434 = vrot.slane %v1420, %v1433
  %v1435 = vcombine.low %v1427, %v1434
  %v1436 = vcombine.low %v732, %v735
  %v1437 = vcombine.low %v738, %v741
  %v1439 = vunpack.c.l.s4 1983009808
  %v1440 = vunpack.c.0.s8 %v1439
  %v1441 = vlaneseq
  %v1442 = vshrl.u32 %v1441, 7
  %v1443 = vsub.s32 %v1440, %v1442
  %v1444 = vrot.slane %v1436, %v1443
  %v1446 = vunpack.c.l.s4 1983009808
  %v1447 = vunpack.c.0.s8 %v1446
  %v1448 = vlaneseq
  %v1449 = vshrl.u32 %v1448, 7
  %v1450 = vsub.s32 %v1447, %v1449
  %v1451 = vrot.slane %v1437, %v1450
  %v1452 = vcombine.low %v1444, %v1451
  %v1453 = vcombine.low 0.0, %v747
  %v1454 = vcombine.low %v750, %v753
  %v1456 = vunpack.c.l.s4 1983009808
  %v1457 = vunpack.c.0.s8 %v1456
  %v1458 = vlaneseq
  %v1459 = vshrl.u32 %v1458, 7
  %v1460 = vsub.s32 %v1457, %v1459
  %v1461 = vrot.slane %v1453, %v1460
  %v1463 = vunpack.c.l.s4 1983009808
  %v1464 = vunpack.c.0.s8 %v1463
  %v1465 = vlaneseq
  %v1466 = vshrl.u32 %v1465, 7
  %v1467 = vsub.s32 %v1464, %v1466
  %v1468 = vrot.slane %v1454, %v1467
  %v1469 = vcombine.low %v1461, %v1468
  %v1470 = vcombine.low %v756, %v759
  %v1471 = vcombine.low %v762, %v765
  %v1473 = vunpack.c.l.s4 1983009808
  %v1474 = vunpack.c.0.s8 %v1473
  %v1475 = vlaneseq
  %v1476 = vshrl.u32 %v1475, 7
  %v1477 = vsub.s32 %v1474, %v1476
  %v1478 = vrot.slane %v1470, %v1477
  %v1480 = vunpack.c.l.s4 1983009808
  %v1481 = vunpack.c.0.s8 %v1480
  %v1482 = vlaneseq
  %v1483 = vshrl.u32 %v1482, 7
  %v1484 = vsub.s32 %v1481, %v1483
  %v1485 = vrot.slane %v1471, %v1484
  %v1486 = vcombine.low %v1478, %v1485
  %v1487 = vcombine.low 0.0, %v771
  %v1488 = vcombine.low %v774, %v777
  %v1490 = vunpack.c.l.s4 1983009808
  %v1491 = vunpack.c.0.s8 %v1490
  %v1492 = vlaneseq
  %v1493 = vshrl.u32 %v1492, 7
  %v1494 = vsub.s32 %v1491, %v1493
  %v1495 = vrot.slane %v1487, %v1494
  %v1497 = vunpack.c.l.s4 1983009808
  %v1498 = vunpack.c.0.s8 %v1497
  %v1499 = vlaneseq
  %v1500 = vshrl.u32 %v1499, 7
  %v1501 = vsub.s32 %v1498, %v1500
  %v1502 = vrot.slane %v1488, %v1501
  %v1503 = vcombine.low %v1495, %v1502
  %v1504 = vcombine.low %v780, %v783
  %v1505 = vcombine.low %v786, %v789
  %v1507 = vunpack.c.l.s4 1983009808
  %v1508 = vunpack.c.0.s8 %v1507
  %v1509 = vlaneseq
  %v1510 = vshrl.u32 %v1509, 7
  %v1511 = vsub.s32 %v1508, %v1510
  %v1512 = vrot.slane %v1504, %v1511
  %v1514 = vunpack.c.l.s4 1983009808
  %v1515 = vunpack.c.0.s8 %v1514
  %v1516 = vlaneseq
  %v1517 = vshrl.u32 %v1516, 7
  %v1518 = vsub.s32 %v1515, %v1517
  %v1519 = vrot.slane %v1505, %v1518
  %v1520 = vcombine.low %v1512, %v1519
  %v1521 = vcombine.low 0.0, %v795
  %v1522 = vcombine.low %v798, %v801
  %v1524 = vunpack.c.l.s4 1983009808
  %v1525 = vunpack.c.0.s8 %v1524
  %v1526 = vlaneseq
  %v1527 = vshrl.u32 %v1526, 7
  %v1528 = vsub.s32 %v1525, %v1527
  %v1529 = vrot.slane %v1521, %v1528
  %v1531 = vunpack.c.l.s4 1983009808
  %v1532 = vunpack.c.0.s8 %v1531
  %v1533 = vlaneseq
  %v1534 = vshrl.u32 %v1533, 7
  %v1535 = vsub.s32 %v1532, %v1534
  %v1536 = vrot.slane %v1522, %v1535
  %v1537 = vcombine.low %v1529, %v1536
  %v1538 = vcombine.low %v804, %v807
  %v1539 = vcombine.low %v810, %v813
  %v1541 = vunpack.c.l.s4 1983009808
  %v1542 = vunpack.c.0.s8 %v1541
  %v1543 = vlaneseq
  %v1544 = vshrl.u32 %v1543, 7
  %v1545 = vsub.s32 %v1542, %v1544
  %v1546 = vrot.slane %v1538, %v1545
  %v1548 = vunpack.c.l.s4 1983009808
  %v1549 = vunpack.c.0.s8 %v1548
  %v1550 = vlaneseq
  %v1551 = vshrl.u32 %v1550, 7
  %v1552 = vsub.s32 %v1549, %v1551
  %v1553 = vrot.slane %v1539, %v1552
  %v1554 = vcombine.low %v1546, %v1553
  %v1555 = vcombine.low 0.0, %v819
  %v1556 = vcombine.low %v822, %v825
  %v1558 = vunpack.c.l.s4 1983009808
  %v1559 = vunpack.c.0.s8 %v1558
  %v1560 = vlaneseq
  %v1561 = vshrl.u32 %v1560, 7
  %v1562 = vsub.s32 %v1559, %v1561
  %v1563 = vrot.slane %v1555, %v1562
  %v1565 = vunpack.c.l.s4 1983009808
  %v1566 = vunpack.c.0.s8 %v1565
  %v1567 = vlaneseq
  %v1568 = vshrl.u32 %v1567, 7
  %v1569 = vsub.s32 %v1566, %v1568
  %v1570 = vrot.slane %v1556, %v1569
  %v1571 = vcombine.low %v1563, %v1570
  %v1572 = vcombine.low %v828, %v831
  %v1573 = vcombine.low %v834, %v837
  %v1575 = vunpack.c.l.s4 1983009808
  %v1576 = vunpack.c.0.s8 %v1575
  %v1577 = vlaneseq
  %v1578 = vshrl.u32 %v1577, 7
  %v1579 = vsub.s32 %v1576, %v1578
  %v1580 = vrot.slane %v1572, %v1579
  %v1582 = vunpack.c.l.s4 1983009808
  %v1583 = vunpack.c.0.s8 %v1582
  %v1584 = vlaneseq
  %v1585 = vshrl.u32 %v1584, 7
  %v1586 = vsub.s32 %v1583, %v1585
  %v1587 = vrot.slane %v1573, %v1586
  %v1588 = vcombine.low %v1580, %v1587
  %v1589 = vsel %vm1171, %v1367, 0
  %v1591 = vsel %vm1171, %v1384, 0
  %v1593 = vsel %vm1171, %v1401, 0
  %v1595 = vsel %vm1171, %v1418, 0
  %v1597 = vsel %vm1171, %v1435, 0
  %v1599 = vsel %vm1171, %v1452, 0
  %v1601 = vsel %vm1171, %v1469, 0
  %v1603 = vsel %vm1171, %v1486, 0
  %v1605 = vsel %vm1171, %v1503, 0
  %v1607 = vsel %vm1171, %v1520, 0
  %v1609 = vsel %vm1171, %v1537, 0
  %v1611 = vsel %vm1171, %v1554, 0
  %v1613 = vsel %vm1171, %v1571, 0
  %v1615 = vsel %vm1171, %v1588, 0
  %v1618 = vsel %vm1202, %v865, 0
  %1620 = vmatprep.subr.mxu0 0.0
  %1621 = vmatpush1.msra.mxu0 %v1618
  %1622 = vmatprep.subr.mxu0 0.0
  %1623 = vmatpush1.msra.mxu0 0.0
  %1624 = vmatprep.subr.mxu0 0.0
  %1625 = vmatpush1.msra.mxu0 0.0
  %1626 = vmatprep.subr.mxu0 0.0
  %1627 = vmatpush1.msra.mxu0 0.0
  %1628 = vmatprep.subr.mxu0 0.0
  %1629 = vmatpush1.msra.mxu0 0.0
  %1630 = vmatprep.subr.mxu0 0.0
  %1631 = vmatpush1.msra.mxu0 0.0
  %1632 = vmatprep.subr.mxu0 0.0
  %1633 = vmatpush1.msra.mxu0 0.0
  %1634 = vmatprep.subr.mxu0 0.0
  %1635 = vmatpush1.msra.mxu0 0.0
  %1636 = vmatprep.subr.mxu0 0.0
  %1637 = vmatpush1.msra.mxu0 0.0
  %1638 = vmatprep.subr.mxu0 0.0
  %1639 = vmatpush1.msra.mxu0 0.0
  %1640 = vmatprep.subr.mxu0 0.0
  %1641 = vmatpush1.msra.mxu0 0.0
  %1642 = vmatprep.subr.mxu0 0.0
  %1643 = vmatpush1.msra.mxu0 0.0
  %1644 = vmatprep.subr.mxu0 0.0
  %1645 = vmatpush1.msra.mxu0 0.0
  %1646 = vmatprep.subr.mxu0 0.0
  %1647 = vmatpush1.msra.mxu0 0.0
  %1648 = vmatprep.subr.mxu0 0.0
  %1649 = vmatpush1.msra.mxu0 0.0
  %1650 = vmatprep.subr.mxu0 0.0
  %1651 = vmatpush1.msra.mxu0 0.0
  %1652 = vmatprep.subr.mxu0 0.0
  %1653 = vmatpush1.msra.mxu0 0.0
  %1654 = vmatprep.subr.mxu0 0.0
  %1655 = vmatpush1.msra.mxu0 0.0
  %1656 = vmatprep.subr.mxu0 0.0
  %1657 = vmatpush1.msra.mxu0 0.0
  %1658 = vmatprep.subr.mxu0 0.0
  %1659 = vmatpush1.msra.mxu0 0.0
  %1660 = vmatprep.subr.mxu0 0.0
  %1661 = vmatpush1.msra.mxu0 0.0
  %1662 = vmatprep.subr.mxu0 0.0
  %1663 = vmatpush1.msra.mxu0 0.0
  %1664 = vmatprep.subr.mxu0 0.0
  %1665 = vmatpush1.msra.mxu0 0.0
  %1666 = vmatprep.subr.mxu0 0.0
  %1667 = vmatpush1.msra.mxu0 0.0
  %1668 = vmatprep.subr.mxu0 0.0
  %1669 = vmatpush1.msra.mxu0 0.0
  %1670 = vmatprep.subr.mxu0 0.0
  %1671 = vmatpush1.msra.mxu0 0.0
  %1672 = vmatprep.subr.mxu0 0.0
  %1673 = vmatpush1.msra.mxu0 0.0
  %1674 = vmatprep.subr.mxu0 0.0
  %1675 = vmatpush1.msra.mxu0 0.0
  %1676 = vmatprep.subr.mxu0 0.0
  %1677 = vmatpush1.msra.mxu0 0.0
  %1678 = vmatprep.subr.mxu0 0.0
  %1679 = vmatpush1.msra.mxu0 0.0
  %1680 = vmatprep.subr.mxu0 0.0
  %1681 = vmatpush1.msra.mxu0 0.0
  %1682 = vmatprep.subr.mxu0 0.0
  %1683 = vmatpush1.msra.mxu0 0.0
  %1684 = vmatprep.mubr.f32.mxu0 0.0
  %1685 = vmatmul.mubr.f32.gmra.mrb[0].mxu0 %v1172
  %v1686 = vpop.f32.mrb[0].mxu0
  %v1687 = vadd.f32 %v1273, %v1686
  %v1688 = vpop.f32.mrb[0].mxu0
  %1689 = vmatprep.mubr.f32.mxu0 0.0
  %1690 = vmatmul.mubr.f32.gmra.mrb[0].mxu0 %v1172
  %v1691 = vpop.f32.mrb[0].mxu0
  %v1692 = vadd.f32 %v1278, %v1691
  %v1693 = vpop.f32.mrb[0].mxu0
  %1694 = vmatprep.mubr.f32.mxu0 0.0
  %1695 = vmatmul.mubr.f32.gmra.mrb[0].mxu0 %v1589
  %v1696 = vpop.f32.mrb[0].mxu0
  %v1697 = vadd.f32 %v1283, %v1696
  %v1698 = vpop.f32.mrb[0].mxu0
  %1699 = vmatprep.mubr.f32.mxu0 0.0
  %1700 = vmatmul.mubr.f32.gmra.mrb[0].mxu0 %v1591
  %v1701 = vpop.f32.mrb[0].mxu0
  %v1702 = vadd.f32 %v1288, %v1701
  %v1703 = vpop.f32.mrb[0].mxu0
  %1704 = vmatprep.mubr.f32.mxu0 0.0
  %1705 = vmatmul.mubr.f32.gmra.mrb[0].mxu0 %v1593
  %v1706 = vpop.f32.mrb[0].mxu0
  %v1707 = vadd.f32 %v1293, %v1706
  %v1708 = vpop.f32.mrb[0].mxu0
  %1709 = vmatprep.mubr.f32.mxu0 0.0
  %1710 = vmatmul.mubr.f32.gmra.mrb[0].mxu0 %v1595
  %v1711 = vpop.f32.mrb[0].mxu0
  %v1712 = vadd.f32 %v1298, %v1711
  %v1713 = vpop.f32.mrb[0].mxu0
  %1714 = vmatprep.mubr.f32.mxu0 0.0
  %1715 = vmatmul.mubr.f32.gmra.mrb[0].mxu0 %v1597
  %v1716 = vpop.f32.mrb[0].mxu0
  %v1717 = vadd.f32 %v1303, %v1716
  %v1718 = vpop.f32.mrb[0].mxu0
  %1719 = vmatprep.mubr.f32.mxu0 0.0
  %1720 = vmatmul.mubr.f32.gmra.mrb[0].mxu0 %v1599
  %v1721 = vpop.f32.mrb[0].mxu0
  %v1722 = vadd.f32 %v1308, %v1721
  %v1723 = vpop.f32.mrb[0].mxu0
  %1724 = vmatprep.mubr.f32.mxu0 0.0
  %1725 = vmatmul.mubr.f32.gmra.mrb[0].mxu0 %v1601
  %v1726 = vpop.f32.mrb[0].mxu0
  %v1727 = vadd.f32 %v1313, %v1726
  %v1728 = vpop.f32.mrb[0].mxu0
  %1729 = vmatprep.mubr.f32.mxu0 0.0
  %1730 = vmatmul.mubr.f32.gmra.mrb[0].mxu0 %v1603
  %v1731 = vpop.f32.mrb[0].mxu0
  %v1732 = vadd.f32 %v1318, %v1731
  %v1733 = vpop.f32.mrb[0].mxu0
  %1734 = vmatprep.mubr.f32.mxu0 0.0
  %1735 = vmatmul.mubr.f32.gmra.mrb[0].mxu0 %v1605
  %v1736 = vpop.f32.mrb[0].mxu0
  %v1737 = vadd.f32 %v1323, %v1736
  %v1738 = vpop.f32.mrb[0].mxu0
  %1739 = vmatprep.mubr.f32.mxu0 0.0
  %1740 = vmatmul.mubr.f32.gmra.mrb[0].mxu0 %v1607
  %v1741 = vpop.f32.mrb[0].mxu0
  %v1742 = vadd.f32 %v1328, %v1741
  %v1743 = vpop.f32.mrb[0].mxu0
  %1744 = vmatprep.mubr.f32.mxu0 0.0
  %1745 = vmatmul.mubr.f32.gmra.mrb[0].mxu0 %v1609
  %v1746 = vpop.f32.mrb[0].mxu0
  %v1747 = vadd.f32 %v1333, %v1746
  %v1748 = vpop.f32.mrb[0].mxu0
  %1749 = vmatprep.mubr.f32.mxu0 0.0
  %1750 = vmatmul.mubr.f32.gmra.mrb[0].mxu0 %v1611
  %v1751 = vpop.f32.mrb[0].mxu0
  %v1752 = vadd.f32 %v1338, %v1751
  %v1753 = vpop.f32.mrb[0].mxu0
  %1754 = vmatprep.mubr.f32.mxu0 0.0
  %1755 = vmatmul.mubr.f32.gmra.mrb[0].mxu0 %v1613
  %v1756 = vpop.f32.mrb[0].mxu0
  %v1757 = vadd.f32 %v1343, %v1756
  %v1758 = vpop.f32.mrb[0].mxu0
  %1759 = vmatprep.mubr.f32.mxu0 0.0
  %1760 = vmatmul.mubr.f32.gmra.mrb[0].mxu0 %v1615
  %v1761 = vpop.f32.mrb[0].mxu0
  %v1762 = vadd.f32 %v1348, %v1761
  %v1763 = vpop.f32.mrb[0].mxu0
  %1764 = vdwg.mxu0
  %v1765 = vld [vmem:[%s1 + $0x8] sm:$0xf]
  %v1766 = vcombine.low %v1366, %v1376
  %v1767 = vcombine.low %v696, 0.0
  %v1769 = vunpack.c.l.s4 1983009808
  %v1770 = vunpack.c.0.s8 %v1769
  %v1771 = vlaneseq
  %v1772 = vshrl.u32 %v1771, 7
  %v1773 = vsub.s32 %v1770, %v1772
  %v1774 = vrot.slane %v1767, %v1773
  %v1775 = vcombine.low %v1383, %v1774
  %v1776 = vcombine.low %v1400, %v1410
  %v1777 = vcombine.low %v720, 0.0
  %v1779 = vunpack.c.l.s4 1983009808
  %v1780 = vunpack.c.0.s8 %v1779
  %v1781 = vlaneseq
  %v1782 = vshrl.u32 %v1781, 7
  %v1783 = vsub.s32 %v1780, %v1782
  %v1784 = vrot.slane %v1777, %v1783
  %v1785 = vcombine.low %v1417, %v1784
  %v1786 = vcombine.low %v1434, %v1444
  %v1787 = vcombine.low %v744, 0.0
  %v1789 = vunpack.c.l.s4 1983009808
  %v1790 = vunpack.c.0.s8 %v1789
  %v1791 = vlaneseq
  %v1792 = vshrl.u32 %v1791, 7
  %v1793 = vsub.s32 %v1790, %v1792
  %v1794 = vrot.slane %v1787, %v1793
  %v1795 = vcombine.low %v1451, %v1794
  %v1796 = vcombine.low %v1468, %v1478
  %v1797 = vcombine.low %v768, 0.0
  %v1799 = vunpack.c.l.s4 1983009808
  %v1800 = vunpack.c.0.s8 %v1799
  %v1801 = vlaneseq
  %v1802 = vshrl.u32 %v1801, 7
  %v1803 = vsub.s32 %v1800, %v1802
  %v1804 = vrot.slane %v1797, %v1803
  %v1805 = vcombine.low %v1485, %v1804
  %v1806 = vcombine.low %v1502, %v1512
  %v1807 = vcombine.low %v792, 0.0
  %v1809 = vunpack.c.l.s4 1983009808
  %v1810 = vunpack.c.0.s8 %v1809
  %v1811 = vlaneseq
  %v1812 = vshrl.u32 %v1811, 7
  %v1813 = vsub.s32 %v1810, %v1812
  %v1814 = vrot.slane %v1807, %v1813
  %v1815 = vcombine.low %v1519, %v1814
  %v1816 = vcombine.low %v1536, %v1546
  %v1817 = vcombine.low %v816, 0.0
  %v1819 = vunpack.c.l.s4 1983009808
  %v1820 = vunpack.c.0.s8 %v1819
  %v1821 = vlaneseq
  %v1822 = vshrl.u32 %v1821, 7
  %v1823 = vsub.s32 %v1820, %v1822
  %v1824 = vrot.slane %v1817, %v1823
  %v1825 = vcombine.low %v1553, %v1824
  %v1826 = vcombine.low %v1570, %v1580
  %v1827 = vcombine.low %v840, 0.0
  %v1829 = vunpack.c.l.s4 1983009808
  %v1830 = vunpack.c.0.s8 %v1829
  %v1831 = vlaneseq
  %v1832 = vshrl.u32 %v1831, 7
  %v1833 = vsub.s32 %v1830, %v1832
  %v1834 = vrot.slane %v1827, %v1833
  %v1835 = vcombine.low %v1587, %v1834
  %v1836 = vsel %vm1171, %v1766, 0
  %v1838 = vsel %vm1171, %v1775, 0
  %v1840 = vsel %vm1171, %v1776, 0
  %v1842 = vsel %vm1171, %v1785, 0
  %v1844 = vsel %vm1171, %v1786, 0
  %v1846 = vsel %vm1171, %v1795, 0
  %v1848 = vsel %vm1171, %v1796, 0
  %v1850 = vsel %vm1171, %v1805, 0
  %v1852 = vsel %vm1171, %v1806, 0
  %v1854 = vsel %vm1171, %v1815, 0
  %v1856 = vsel %vm1171, %v1816, 0
  %v1858 = vsel %vm1171, %v1825, 0
  %v1860 = vsel %vm1171, %v1826, 0
  %v1862 = vsel %vm1171, %v1835, 0
  %v1865 = vsel %vm1202, %v1765, 0
  %1867 = vmatprep.subr.mxu0 0.0
  %1868 = vmatpush1.msra.mxu0 %v1865
  %1869 = vmatprep.subr.mxu0 0.0
  %1870 = vmatpush1.msra.mxu0 0.0
  %1871 = vmatprep.subr.mxu0 0.0
  %1872 = vmatpush1.msra.mxu0 0.0
  %1873 = vmatprep.subr.mxu0 0.0
  %1874 = vmatpush1.msra.mxu0 0.0
  %1875 = vmatprep.subr.mxu0 0.0
  %1876 = vmatpush1.msra.mxu0 0.0
  %1877 = vmatprep.subr.mxu0 0.0
  %1878 = vmatpush1.msra.mxu0 0.0
  %1879 = vmatprep.subr.mxu0 0.0
  %1880 = vmatpush1.msra.mxu0 0.0
  %1881 = vmatprep.subr.mxu0 0.0
  %1882 = vmatpush1.msra.mxu0 0.0
  %1883 = vmatprep.subr.mxu0 0.0
  %1884 = vmatpush1.msra.mxu0 0.0
  %1885 = vmatprep.subr.mxu0 0.0
  %1886 = vmatpush1.msra.mxu0 0.0
  %1887 = vmatprep.subr.mxu0 0.0
  %1888 = vmatpush1.msra.mxu0 0.0
  %1889 = vmatprep.subr.mxu0 0.0
  %1890 = vmatpush1.msra.mxu0 0.0
  %1891 = vmatprep.subr.mxu0 0.0
  %1892 = vmatpush1.msra.mxu0 0.0
  %1893 = vmatprep.subr.mxu0 0.0
  %1894 = vmatpush1.msra.mxu0 0.0
  %1895 = vmatprep.subr.mxu0 0.0
  %1896 = vmatpush1.msra.mxu0 0.0
  %1897 = vmatprep.subr.mxu0 0.0
  %1898 = vmatpush1.msra.mxu0 0.0
  %1899 = vmatprep.subr.mxu0 0.0
  %1900 = vmatpush1.msra.mxu0 0.0
  %1901 = vmatprep.subr.mxu0 0.0
  %1902 = vmatpush1.msra.mxu0 0.0
  %1903 = vmatprep.subr.mxu0 0.0
  %1904 = vmatpush1.msra.mxu0 0.0
  %1905 = vmatprep.subr.mxu0 0.0
  %1906 = vmatpush1.msra.mxu0 0.0
  %1907 = vmatprep.subr.mxu0 0.0
  %1908 = vmatpush1.msra.mxu0 0.0
  %1909 = vmatprep.subr.mxu0 0.0
  %1910 = vmatpush1.msra.mxu0 0.0
  %1911 = vmatprep.subr.mxu0 0.0
  %1912 = vmatpush1.msra.mxu0 0.0
  %1913 = vmatprep.subr.mxu0 0.0
  %1914 = vmatpush1.msra.mxu0 0.0
  %1915 = vmatprep.subr.mxu0 0.0
  %1916 = vmatpush1.msra.mxu0 0.0
  %1917 = vmatprep.subr.mxu0 0.0
  %1918 = vmatpush1.msra.mxu0 0.0
  %1919 = vmatprep.subr.mxu0 0.0
  %1920 = vmatpush1.msra.mxu0 0.0
  %1921 = vmatprep.subr.mxu0 0.0
  %1922 = vmatpush1.msra.mxu0 0.0
  %1923 = vmatprep.subr.mxu0 0.0
  %1924 = vmatpush1.msra.mxu0 0.0
  %1925 = vmatprep.subr.mxu0 0.0
  %1926 = vmatpush1.msra.mxu0 0.0
  %1927 = vmatprep.subr.mxu0 0.0
  %1928 = vmatpush1.msra.mxu0 0.0
  %1929 = vmatprep.subr.mxu0 0.0
  %1930 = vmatpush1.msra.mxu0 0.0
  %1931 = vmatprep.mubr.f32.mxu0 0.0
  %1932 = vmatmul.mubr.f32.gmra.mrb[0].mxu0 %v1172
  %v1933 = vpop.f32.mrb[0].mxu0
  %v1934 = vadd.f32 0.0, %v1933
  %v1935 = vpop.f32.mrb[0].mxu0
  %1936 = vmatprep.mubr.f32.mxu0 0.0
  %1937 = vmatmul.mubr.f32.gmra.mrb[0].mxu0 %v1172
  %v1938 = vpop.f32.mrb[0].mxu0
  %v1939 = vadd.f32 0.0, %v1938
  %v1940 = vpop.f32.mrb[0].mxu0
  %1941 = vmatprep.mubr.f32.mxu0 0.0
  %1942 = vmatmul.mubr.f32.gmra.mrb[0].mxu0 %v1836
  %v1943 = vpop.f32.mrb[0].mxu0
  %v1944 = vadd.f32 0.0, %v1943
  %v1945 = vpop.f32.mrb[0].mxu0
  %1946 = vmatprep.mubr.f32.mxu0 0.0
  %1947 = vmatmul.mubr.f32.gmra.mrb[0].mxu0 %v1838
  %v1948 = vpop.f32.mrb[0].mxu0
  %v1949 = vadd.f32 0.0, %v1948
  %v1950 = vpop.f32.mrb[0].mxu0
  %1951 = vmatprep.mubr.f32.mxu0 0.0
  %1952 = vmatmul.mubr.f32.gmra.mrb[0].mxu0 %v1840
  %v1953 = vpop.f32.mrb[0].mxu0
  %v1954 = vadd.f32 0.0, %v1953
  %v1955 = vpop.f32.mrb[0].mxu0
  %1956 = vmatprep.mubr.f32.mxu0 0.0
  %1957 = vmatmul.mubr.f32.gmra.mrb[0].mxu0 %v1842
  %v1958 = vpop.f32.mrb[0].mxu0
  %v1959 = vadd.f32 0.0, %v1958
  %v1960 = vpop.f32.mrb[0].mxu0
  %1961 = vmatprep.mubr.f32.mxu0 0.0
  %1962 = vmatmul.mubr.f32.gmra.mrb[0].mxu0 %v1844
  %v1963 = vpop.f32.mrb[0].mxu0
  %v1964 = vadd.f32 0.0, %v1963
  %v1965 = vpop.f32.mrb[0].mxu0
  %1966 = vmatprep.mubr.f32.mxu0 0.0
  %1967 = vmatmul.mubr.f32.gmra.mrb[0].mxu0 %v1846
  %v1968 = vpop.f32.mrb[0].mxu0
  %v1969 = vadd.f32 0.0, %v1968
  %v1970 = vpop.f32.mrb[0].mxu0
  %1971 = vmatprep.mubr.f32.mxu0 0.0
  %1972 = vmatmul.mubr.f32.gmra.mrb[0].mxu0 %v1848
  %v1973 = vpop.f32.mrb[0].mxu0
  %v1974 = vadd.f32 0.0, %v1973
  %v1975 = vpop.f32.mrb[0].mxu0
  %1976 = vmatprep.mubr.f32.mxu0 0.0
  %1977 = vmatmul.mubr.f32.gmra.mrb[0].mxu0 %v1850
  %v1978 = vpop.f32.mrb[0].mxu0
  %v1979 = vadd.f32 0.0, %v1978
  %v1980 = vpop.f32.mrb[0].mxu0
  %1981 = vmatprep.mubr.f32.mxu0 0.0
  %1982 = vmatmul.mubr.f32.gmra.mrb[0].mxu0 %v1852
  %v1983 = vpop.f32.mrb[0].mxu0
  %v1984 = vadd.f32 0.0, %v1983
  %v1985 = vpop.f32.mrb[0].mxu0
  %1986 = vmatprep.mubr.f32.mxu0 0.0
  %1987 = vmatmul.mubr.f32.gmra.mrb[0].mxu0 %v1854
  %v1988 = vpop.f32.mrb[0].mxu0
  %v1989 = vadd.f32 0.0, %v1988
  %v1990 = vpop.f32.mrb[0].mxu0
  %1991 = vmatprep.mubr.f32.mxu0 0.0
  %1992 = vmatmul.mubr.f32.gmra.mrb[0].mxu0 %v1856
  %v1993 = vpop.f32.mrb[0].mxu0
  %v1994 = vadd.f32 0.0, %v1993
  %v1995 = vpop.f32.mrb[0].mxu0
  %1996 = vmatprep.mubr.f32.mxu0 0.0
  %1997 = vmatmul.mubr.f32.gmra.mrb[0].mxu0 %v1858
  %v1998 = vpop.f32.mrb[0].mxu0
  %v1999 = vadd.f32 0.0, %v1998
  %v2000 = vpop.f32.mrb[0].mxu0
  %2001 = vmatprep.mubr.f32.mxu0 0.0
  %2002 = vmatmul.mubr.f32.gmra.mrb[0].mxu0 %v1860
  %v2003 = vpop.f32.mrb[0].mxu0
  %v2004 = vadd.f32 0.0, %v2003
  %v2005 = vpop.f32.mrb[0].mxu0
  %2006 = vmatprep.mubr.f32.mxu0 0.0
  %2007 = vmatmul.mubr.f32.gmra.mrb[0].mxu0 %v1862
  %v2008 = vpop.f32.mrb[0].mxu0
  %v2009 = vadd.f32 0.0, %v2008
  %v2010 = vpop.f32.mrb[0].mxu0
  %2011 = vdwg.mxu0
  %v2012 = vadd.f32 %v1687, %v1934
  %v2013 = vadd.f32 %v1692, %v1939
  %v2014 = vadd.f32 %v1697, %v1944
  %v2015 = vadd.f32 %v1702, %v1949
  %v2016 = vadd.f32 %v1707, %v1954
  %v2017 = vadd.f32 %v1712, %v1959
  %v2018 = vadd.f32 %v1717, %v1964
  %v2019 = vadd.f32 %v1722, %v1969
  %v2020 = vadd.f32 %v1727, %v1974
  %v2021 = vadd.f32 %v1732, %v1979
  %v2022 = vadd.f32 %v1737, %v1984
  %v2023 = vadd.f32 %v1742, %v1989
  %v2024 = vadd.f32 %v1747, %v1994
  %v2025 = vadd.f32 %v1752, %v1999
  %v2026 = vadd.f32 %v1757, %v2004
  %v2027 = vadd.f32 %v1762, %v2009
  %v2028 = vld [vmem:[%s1 + $0xc] sm:$0xf]
  %v2036 = vcombine.low 0.0, %v843
  %v2037 = vcombine.low %v846, %v849
  %v2039 = vunpack.c.l.s4 1983009808
  %v2040 = vunpack.c.0.s8 %v2039
  %v2041 = vlaneseq
  %v2042 = vshrl.u32 %v2041, 7
  %v2043 = vsub.s32 %v2040, %v2042
  %v2044 = vrot.slane %v2036, %v2043
  %v2046 = vunpack.c.l.s4 1983009808
  %v2047 = vunpack.c.0.s8 %v2046
  %v2048 = vlaneseq
  %v2049 = vshrl.u32 %v2048, 7
  %v2050 = vsub.s32 %v2047, %v2049
  %v2051 = vrot.slane %v2037, %v2050
  %v2052 = vcombine.low %v2044, %v2051
  %v2053 = vcombine.low %v852, %v855
  %v2054 = vcombine.low %v858, %v861
  %v2056 = vunpack.c.l.s4 1983009808
  %v2057 = vunpack.c.0.s8 %v2056
  %v2058 = vlaneseq
  %v2059 = vshrl.u32 %v2058, 7
  %v2060 = vsub.s32 %v2057, %v2059
  %v2061 = vrot.slane %v2053, %v2060
  %v2063 = vunpack.c.l.s4 1983009808
  %v2064 = vunpack.c.0.s8 %v2063
  %v2065 = vlaneseq
  %v2066 = vshrl.u32 %v2065, 7
  %v2067 = vsub.s32 %v2064, %v2066
  %v2068 = vrot.slane %v2054, %v2067
  %v2069 = vcombine.low %v2061, %v2068
  %v2070 = vsel %vm1171, %v2052, 0
  %v2072 = vsel %vm1171, %v2069, 0
  %v2075 = vsel %vm1202, %v2028, 0
  %2077 = vmatprep.subr.mxu0 0.0
  %2078 = vmatpush1.msra.mxu0 %v2075
  %2079 = vmatprep.subr.mxu0 0.0
  %2080 = vmatpush1.msra.mxu0 0.0
  %2081 = vmatprep.subr.mxu0 0.0
  %2082 = vmatpush1.msra.mxu0 0.0
  %2083 = vmatprep.subr.mxu0 0.0
  %2084 = vmatpush1.msra.mxu0 0.0
  %2085 = vmatprep.subr.mxu0 0.0
  %2086 = vmatpush1.msra.mxu0 0.0
  %2087 = vmatprep.subr.mxu0 0.0
  %2088 = vmatpush1.msra.mxu0 0.0
  %2089 = vmatprep.subr.mxu0 0.0
  %2090 = vmatpush1.msra.mxu0 0.0
  %2091 = vmatprep.subr.mxu0 0.0
  %2092 = vmatpush1.msra.mxu0 0.0
  %2093 = vmatprep.subr.mxu0 0.0
  %2094 = vmatpush1.msra.mxu0 0.0
  %2095 = vmatprep.subr.mxu0 0.0
  %2096 = vmatpush1.msra.mxu0 0.0
  %2097 = vmatprep.subr.mxu0 0.0
  %2098 = vmatpush1.msra.mxu0 0.0
  %2099 = vmatprep.subr.mxu0 0.0
  %2100 = vmatpush1.msra.mxu0 0.0
  %2101 = vmatprep.subr.mxu0 0.0
  %2102 = vmatpush1.msra.mxu0 0.0
  %2103 = vmatprep.subr.mxu0 0.0
  %2104 = vmatpush1.msra.mxu0 0.0
  %2105 = vmatprep.subr.mxu0 0.0
  %2106 = vmatpush1.msra.mxu0 0.0
  %2107 = vmatprep.subr.mxu0 0.0
  %2108 = vmatpush1.msra.mxu0 0.0
  %2109 = vmatprep.subr.mxu0 0.0
  %2110 = vmatpush1.msra.mxu0 0.0
  %2111 = vmatprep.subr.mxu0 0.0
  %2112 = vmatpush1.msra.mxu0 0.0
  %2113 = vmatprep.subr.mxu0 0.0
  %2114 = vmatpush1.msra.mxu0 0.0
  %2115 = vmatprep.subr.mxu0 0.0
  %2116 = vmatpush1.msra.mxu0 0.0
  %2117 = vmatprep.subr.mxu0 0.0
  %2118 = vmatpush1.msra.mxu0 0.0
  %2119 = vmatprep.subr.mxu0 0.0
  %2120 = vmatpush1.msra.mxu0 0.0
  %2121 = vmatprep.subr.mxu0 0.0
  %2122 = vmatpush1.msra.mxu0 0.0
  %2123 = vmatprep.subr.mxu0 0.0
  %2124 = vmatpush1.msra.mxu0 0.0
  %2125 = vmatprep.subr.mxu0 0.0
  %2126 = vmatpush1.msra.mxu0 0.0
  %2127 = vmatprep.subr.mxu0 0.0
  %2128 = vmatpush1.msra.mxu0 0.0
  %2129 = vmatprep.subr.mxu0 0.0
  %2130 = vmatpush1.msra.mxu0 0.0
  %2131 = vmatprep.subr.mxu0 0.0
  %2132 = vmatpush1.msra.mxu0 0.0
  %2133 = vmatprep.subr.mxu0 0.0
  %2134 = vmatpush1.msra.mxu0 0.0
  %2135 = vmatprep.subr.mxu0 0.0
  %2136 = vmatpush1.msra.mxu0 0.0
  %2137 = vmatprep.subr.mxu0 0.0
  %2138 = vmatpush1.msra.mxu0 0.0
  %2139 = vmatprep.subr.mxu0 0.0
  %2140 = vmatpush1.msra.mxu0 0.0
  %2141 = vmatprep.mubr.f32.mxu0 0.0
  %2142 = vmatmul.mubr.f32.gmra.mrb[0].mxu0 %v1589
  %v2143 = vpop.f32.mrb[0].mxu0
  %v2144 = vadd.f32 0.0, %v2143
  %v2145 = vpop.f32.mrb[0].mxu0
  %2146 = vmatprep.mubr.f32.mxu0 0.0
  %2147 = vmatmul.mubr.f32.gmra.mrb[0].mxu0 %v1591
  %v2148 = vpop.f32.mrb[0].mxu0
  %v2149 = vadd.f32 0.0, %v2148
  %v2150 = vpop.f32.mrb[0].mxu0
  %2151 = vmatprep.mubr.f32.mxu0 0.0
  %2152 = vmatmul.mubr.f32.gmra.mrb[0].mxu0 %v1593
  %v2153 = vpop.f32.mrb[0].mxu0
  %v2154 = vadd.f32 0.0, %v2153
  %v2155 = vpop.f32.mrb[0].mxu0
  %2156 = vmatprep.mubr.f32.mxu0 0.0
  %2157 = vmatmul.mubr.f32.gmra.mrb[0].mxu0 %v1595
  %v2158 = vpop.f32.mrb[0].mxu0
  %v2159 = vadd.f32 0.0, %v2158
  %v2160 = vpop.f32.mrb[0].mxu0
  %2161 = vmatprep.mubr.f32.mxu0 0.0
  %2162 = vmatmul.mubr.f32.gmra.mrb[0].mxu0 %v1597
  %v2163 = vpop.f32.mrb[0].mxu0
  %v2164 = vadd.f32 0.0, %v2163
  %v2165 = vpop.f32.mrb[0].mxu0
  %2166 = vmatprep.mubr.f32.mxu0 0.0
  %2167 = vmatmul.mubr.f32.gmra.mrb[0].mxu0 %v1599
  %v2168 = vpop.f32.mrb[0].mxu0
  %v2169 = vadd.f32 0.0, %v2168
  %v2170 = vpop.f32.mrb[0].mxu0
  %2171 = vmatprep.mubr.f32.mxu0 0.0
  %2172 = vmatmul.mubr.f32.gmra.mrb[0].mxu0 %v1601
  %v2173 = vpop.f32.mrb[0].mxu0
  %v2174 = vadd.f32 0.0, %v2173
  %v2175 = vpop.f32.mrb[0].mxu0
  %2176 = vmatprep.mubr.f32.mxu0 0.0
  %2177 = vmatmul.mubr.f32.gmra.mrb[0].mxu0 %v1603
  %v2178 = vpop.f32.mrb[0].mxu0
  %v2179 = vadd.f32 0.0, %v2178
  %v2180 = vpop.f32.mrb[0].mxu0
  %2181 = vmatprep.mubr.f32.mxu0 0.0
  %2182 = vmatmul.mubr.f32.gmra.mrb[0].mxu0 %v1605
  %v2183 = vpop.f32.mrb[0].mxu0
  %v2184 = vadd.f32 0.0, %v2183
  %v2185 = vpop.f32.mrb[0].mxu0
  %2186 = vmatprep.mubr.f32.mxu0 0.0
  %2187 = vmatmul.mubr.f32.gmra.mrb[0].mxu0 %v1607
  %v2188 = vpop.f32.mrb[0].mxu0
  %v2189 = vadd.f32 0.0, %v2188
  %v2190 = vpop.f32.mrb[0].mxu0
  %2191 = vmatprep.mubr.f32.mxu0 0.0
  %2192 = vmatmul.mubr.f32.gmra.mrb[0].mxu0 %v1609
  %v2193 = vpop.f32.mrb[0].mxu0
  %v2194 = vadd.f32 0.0, %v2193
  %v2195 = vpop.f32.mrb[0].mxu0
  %2196 = vmatprep.mubr.f32.mxu0 0.0
  %2197 = vmatmul.mubr.f32.gmra.mrb[0].mxu0 %v1611
  %v2198 = vpop.f32.mrb[0].mxu0
  %v2199 = vadd.f32 0.0, %v2198
  %v2200 = vpop.f32.mrb[0].mxu0
  %2201 = vmatprep.mubr.f32.mxu0 0.0
  %2202 = vmatmul.mubr.f32.gmra.mrb[0].mxu0 %v1613
  %v2203 = vpop.f32.mrb[0].mxu0
  %v2204 = vadd.f32 0.0, %v2203
  %v2205 = vpop.f32.mrb[0].mxu0
  %2206 = vmatprep.mubr.f32.mxu0 0.0
  %2207 = vmatmul.mubr.f32.gmra.mrb[0].mxu0 %v1615
  %v2208 = vpop.f32.mrb[0].mxu0
  %v2209 = vadd.f32 0.0, %v2208
  %v2210 = vpop.f32.mrb[0].mxu0
  %2211 = vmatprep.mubr.f32.mxu0 0.0
  %2212 = vmatmul.mubr.f32.gmra.mrb[0].mxu0 %v2070
  %v2213 = vpop.f32.mrb[0].mxu0
  %v2214 = vadd.f32 0.0, %v2213
  %v2215 = vpop.f32.mrb[0].mxu0
  %2216 = vmatprep.mubr.f32.mxu0 0.0
  %2217 = vmatmul.mubr.f32.gmra.mrb[0].mxu0 %v2072
  %v2218 = vpop.f32.mrb[0].mxu0
  %v2219 = vadd.f32 0.0, %v2218
  %v2220 = vpop.f32.mrb[0].mxu0
  %2221 = vdwg.mxu0
  %v2222 = vadd.f32 %v2012, %v2144
  %v2223 = vadd.f32 %v2013, %v2149
  %v2224 = vadd.f32 %v2014, %v2154
  %v2225 = vadd.f32 %v2015, %v2159
  %v2226 = vadd.f32 %v2016, %v2164
  %v2227 = vadd.f32 %v2017, %v2169
  %v2228 = vadd.f32 %v2018, %v2174
  %v2229 = vadd.f32 %v2019, %v2179
  %v2230 = vadd.f32 %v2020, %v2184
  %v2231 = vadd.f32 %v2021, %v2189
  %v2232 = vadd.f32 %v2022, %v2194
  %v2233 = vadd.f32 %v2023, %v2199
  %v2234 = vadd.f32 %v2024, %v2204
  %v2235 = vadd.f32 %v2025, %v2209
  %v2236 = vadd.f32 %v2026, %v2214
  %v2237 = vadd.f32 %v2027, %v2219
  %v2238 = vld [vmem:[%s1 + $0x10] sm:$0xf]
  %v2240 = vcombine.low %v843, %v846
  %v2241 = vcombine.low %v849, %v852
  %v2243 = vunpack.c.l.s4 1983009808
  %v2244 = vunpack.c.0.s8 %v2243
  %v2245 = vlaneseq
  %v2246 = vshrl.u32 %v2245, 7
  %v2247 = vsub.s32 %v2244, %v2246
  %v2248 = vrot.slane %v2240, %v2247
  %v2250 = vunpack.c.l.s4 1983009808
  %v2251 = vunpack.c.0.s8 %v2250
  %v2252 = vlaneseq
  %v2253 = vshrl.u32 %v2252, 7
  %v2254 = vsub.s32 %v2251, %v2253
  %v2255 = vrot.slane %v2241, %v2254
  %v2256 = vcombine.low %v2248, %v2255
  %v2257 = vcombine.low %v855, %v858
  %v2258 = vcombine.low %v861, %v864
  %v2260 = vunpack.c.l.s4 1983009808
  %v2261 = vunpack.c.0.s8 %v2260
  %v2262 = vlaneseq
  %v2263 = vshrl.u32 %v2262, 7
  %v2264 = vsub.s32 %v2261, %v2263
  %v2265 = vrot.slane %v2257, %v2264
  %v2267 = vunpack.c.l.s4 1983009808
  %v2268 = vunpack.c.0.s8 %v2267
  %v2269 = vlaneseq
  %v2270 = vshrl.u32 %v2269, 7
  %v2271 = vsub.s32 %v2268, %v2270
  %v2272 = vrot.slane %v2258, %v2271
  %v2273 = vcombine.low %v2265, %v2272
  %v2274 = vsel %vm1171, %v2256, 0
  %v2276 = vsel %vm1171, %v2273, 0
  %v2279 = vsel %vm1202, %v2238, 0
  %2281 = vmatprep.subr.mxu0 0.0
  %2282 = vmatpush1.msra.mxu0 %v2279
  %2283 = vmatprep.subr.mxu0 0.0
  %2284 = vmatpush1.msra.mxu0 0.0
  %2285 = vmatprep.subr.mxu0 0.0
  %2286 = vmatpush1.msra.mxu0 0.0
  %2287 = vmatprep.subr.mxu0 0.0
  %2288 = vmatpush1.msra.mxu0 0.0
  %2289 = vmatprep.subr.mxu0 0.0
  %2290 = vmatpush1.msra.mxu0 0.0
  %2291 = vmatprep.subr.mxu0 0.0
  %2292 = vmatpush1.msra.mxu0 0.0
  %2293 = vmatprep.subr.mxu0 0.0
  %2294 = vmatpush1.msra.mxu0 0.0
  %2295 = vmatprep.subr.mxu0 0.0
  %2296 = vmatpush1.msra.mxu0 0.0
  %2297 = vmatprep.subr.mxu0 0.0
  %2298 = vmatpush1.msra.mxu0 0.0
  %2299 = vmatprep.subr.mxu0 0.0
  %2300 = vmatpush1.msra.mxu0 0.0
  %2301 = vmatprep.subr.mxu0 0.0
  %2302 = vmatpush1.msra.mxu0 0.0
  %2303 = vmatprep.subr.mxu0 0.0
  %2304 = vmatpush1.msra.mxu0 0.0
  %2305 = vmatprep.subr.mxu0 0.0
  %2306 = vmatpush1.msra.mxu0 0.0
  %2307 = vmatprep.subr.mxu0 0.0
  %2308 = vmatpush1.msra.mxu0 0.0
  %2309 = vmatprep.subr.mxu0 0.0
  %2310 = vmatpush1.msra.mxu0 0.0
  %2311 = vmatprep.subr.mxu0 0.0
  %2312 = vmatpush1.msra.mxu0 0.0
  %2313 = vmatprep.subr.mxu0 0.0
  %2314 = vmatpush1.msra.mxu0 0.0
  %2315 = vmatprep.subr.mxu0 0.0
  %2316 = vmatpush1.msra.mxu0 0.0
  %2317 = vmatprep.subr.mxu0 0.0
  %2318 = vmatpush1.msra.mxu0 0.0
  %2319 = vmatprep.subr.mxu0 0.0
  %2320 = vmatpush1.msra.mxu0 0.0
  %2321 = vmatprep.subr.mxu0 0.0
  %2322 = vmatpush1.msra.mxu0 0.0
  %2323 = vmatprep.subr.mxu0 0.0
  %2324 = vmatpush1.msra.mxu0 0.0
  %2325 = vmatprep.subr.mxu0 0.0
  %2326 = vmatpush1.msra.mxu0 0.0
  %2327 = vmatprep.subr.mxu0 0.0
  %2328 = vmatpush1.msra.mxu0 0.0
  %2329 = vmatprep.subr.mxu0 0.0
  %2330 = vmatpush1.msra.mxu0 0.0
  %2331 = vmatprep.subr.mxu0 0.0
  %2332 = vmatpush1.msra.mxu0 0.0
  %2333 = vmatprep.subr.mxu0 0.0
  %2334 = vmatpush1.msra.mxu0 0.0
  %2335 = vmatprep.subr.mxu0 0.0
  %2336 = vmatpush1.msra.mxu0 0.0
  %2337 = vmatprep.subr.mxu0 0.0
  %2338 = vmatpush1.msra.mxu0 0.0
  %2339 = vmatprep.subr.mxu0 0.0
  %2340 = vmatpush1.msra.mxu0 0.0
  %2341 = vmatprep.subr.mxu0 0.0
  %2342 = vmatpush1.msra.mxu0 0.0
  %2343 = vmatprep.subr.mxu0 0.0
  %2344 = vmatpush1.msra.mxu0 0.0
  %2345 = vmatprep.mubr.f32.mxu0 0.0
  %2346 = vmatmul.mubr.f32.gmra.mrb[0].mxu0 %v1174
  %v2347 = vpop.f32.mrb[0].mxu0
  %v2348 = vadd.f32 0.0, %v2347
  %v2349 = vpop.f32.mrb[0].mxu0
  %2350 = vmatprep.mubr.f32.mxu0 0.0
  %2351 = vmatmul.mubr.f32.gmra.mrb[0].mxu0 %v1176
  %v2352 = vpop.f32.mrb[0].mxu0
  %v2353 = vadd.f32 0.0, %v2352
  %v2354 = vpop.f32.mrb[0].mxu0
  %2355 = vmatprep.mubr.f32.mxu0 0.0
  %2356 = vmatmul.mubr.f32.gmra.mrb[0].mxu0 %v1178
  %v2357 = vpop.f32.mrb[0].mxu0
  %v2358 = vadd.f32 0.0, %v2357
  %v2359 = vpop.f32.mrb[0].mxu0
  %2360 = vmatprep.mubr.f32.mxu0 0.0
  %2361 = vmatmul.mubr.f32.gmra.mrb[0].mxu0 %v1180
  %v2362 = vpop.f32.mrb[0].mxu0
  %v2363 = vadd.f32 0.0, %v2362
  %v2364 = vpop.f32.mrb[0].mxu0
  %2365 = vmatprep.mubr.f32.mxu0 0.0
  %2366 = vmatmul.mubr.f32.gmra.mrb[0].mxu0 %v1182
  %v2367 = vpop.f32.mrb[0].mxu0
  %v2368 = vadd.f32 0.0, %v2367
  %v2369 = vpop.f32.mrb[0].mxu0
  %2370 = vmatprep.mubr.f32.mxu0 0.0
  %2371 = vmatmul.mubr.f32.gmra.mrb[0].mxu0 %v1184
  %v2372 = vpop.f32.mrb[0].mxu0
  %v2373 = vadd.f32 0.0, %v2372
  %v2374 = vpop.f32.mrb[0].mxu0
  %2375 = vmatprep.mubr.f32.mxu0 0.0
  %2376 = vmatmul.mubr.f32.gmra.mrb[0].mxu0 %v1186
  %v2377 = vpop.f32.mrb[0].mxu0
  %v2378 = vadd.f32 0.0, %v2377
  %v2379 = vpop.f32.mrb[0].mxu0
  %2380 = vmatprep.mubr.f32.mxu0 0.0
  %2381 = vmatmul.mubr.f32.gmra.mrb[0].mxu0 %v1188
  %v2382 = vpop.f32.mrb[0].mxu0
  %v2383 = vadd.f32 0.0, %v2382
  %v2384 = vpop.f32.mrb[0].mxu0
  %2385 = vmatprep.mubr.f32.mxu0 0.0
  %2386 = vmatmul.mubr.f32.gmra.mrb[0].mxu0 %v1190
  %v2387 = vpop.f32.mrb[0].mxu0
  %v2388 = vadd.f32 0.0, %v2387
  %v2389 = vpop.f32.mrb[0].mxu0
  %2390 = vmatprep.mubr.f32.mxu0 0.0
  %2391 = vmatmul.mubr.f32.gmra.mrb[0].mxu0 %v1192
  %v2392 = vpop.f32.mrb[0].mxu0
  %v2393 = vadd.f32 0.0, %v2392
  %v2394 = vpop.f32.mrb[0].mxu0
  %2395 = vmatprep.mubr.f32.mxu0 0.0
  %2396 = vmatmul.mubr.f32.gmra.mrb[0].mxu0 %v1194
  %v2397 = vpop.f32.mrb[0].mxu0
  %v2398 = vadd.f32 0.0, %v2397
  %v2399 = vpop.f32.mrb[0].mxu0
  %2400 = vmatprep.mubr.f32.mxu0 0.0
  %2401 = vmatmul.mubr.f32.gmra.mrb[0].mxu0 %v1196
  %v2402 = vpop.f32.mrb[0].mxu0
  %v2403 = vadd.f32 0.0, %v2402
  %v2404 = vpop.f32.mrb[0].mxu0
  %2405 = vmatprep.mubr.f32.mxu0 0.0
  %2406 = vmatmul.mubr.f32.gmra.mrb[0].mxu0 %v1198
  %v2407 = vpop.f32.mrb[0].mxu0
  %v2408 = vadd.f32 0.0, %v2407
  %v2409 = vpop.f32.mrb[0].mxu0
  %2410 = vmatprep.mubr.f32.mxu0 0.0
  %2411 = vmatmul.mubr.f32.gmra.mrb[0].mxu0 %v1200
  %v2412 = vpop.f32.mrb[0].mxu0
  %v2413 = vadd.f32 0.0, %v2412
  %v2414 = vpop.f32.mrb[0].mxu0
  %2415 = vmatprep.mubr.f32.mxu0 0.0
  %2416 = vmatmul.mubr.f32.gmra.mrb[0].mxu0 %v2274
  %v2417 = vpop.f32.mrb[0].mxu0
  %v2418 = vadd.f32 0.0, %v2417
  %v2419 = vpop.f32.mrb[0].mxu0
  %2420 = vmatprep.mubr.f32.mxu0 0.0
  %2421 = vmatmul.mubr.f32.gmra.mrb[0].mxu0 %v2276
  %v2422 = vpop.f32.mrb[0].mxu0
  %v2423 = vadd.f32 0.0, %v2422
  %v2424 = vpop.f32.mrb[0].mxu0
  %2425 = vdwg.mxu0
  %v2426 = vadd.f32 %v2222, %v2348
  %v2427 = vadd.f32 %v2223, %v2353
  %v2428 = vadd.f32 %v2224, %v2358
  %v2429 = vadd.f32 %v2225, %v2363
  %v2430 = vadd.f32 %v2226, %v2368
  %v2431 = vadd.f32 %v2227, %v2373
  %v2432 = vadd.f32 %v2228, %v2378
  %v2433 = vadd.f32 %v2229, %v2383
  %v2434 = vadd.f32 %v2230, %v2388
  %v2435 = vadd.f32 %v2231, %v2393
  %v2436 = vadd.f32 %v2232, %v2398
  %v2437 = vadd.f32 %v2233, %v2403
  %v2438 = vadd.f32 %v2234, %v2408
  %v2439 = vadd.f32 %v2235, %v2413
  %v2440 = vadd.f32 %v2236, %v2418
  %v2441 = vadd.f32 %v2237, %v2423
  %v2442 = vld [vmem:[%s1 + $0x14] sm:$0xf]
  %v2443 = vcombine.low %v2051, %v2061
  %v2444 = vcombine.low %v864, 0.0
  %v2446 = vunpack.c.l.s4 1983009808
  %v2447 = vunpack.c.0.s8 %v2446
  %v2448 = vlaneseq
  %v2449 = vshrl.u32 %v2448, 7
  %v2450 = vsub.s32 %v2447, %v2449
  %v2451 = vrot.slane %v2444, %v2450
  %v2452 = vcombine.low %v2068, %v2451
  %v2453 = vsel %vm1171, %v2443, 0
  %v2455 = vsel %vm1171, %v2452, 0
  %v2458 = vsel %vm1202, %v2442, 0
  %2460 = vmatprep.subr.mxu0 0.0
  %2461 = vmatpush1.msra.mxu0 %v2458
  %2462 = vmatprep.subr.mxu0 0.0
  %2463 = vmatpush1.msra.mxu0 0.0
  %2464 = vmatprep.subr.mxu0 0.0
  %2465 = vmatpush1.msra.mxu0 0.0
  %2466 = vmatprep.subr.mxu0 0.0
  %2467 = vmatpush1.msra.mxu0 0.0
  %2468 = vmatprep.subr.mxu0 0.0
  %2469 = vmatpush1.msra.mxu0 0.0
  %2470 = vmatprep.subr.mxu0 0.0
  %2471 = vmatpush1.msra.mxu0 0.0
  %2472 = vmatprep.subr.mxu0 0.0
  %2473 = vmatpush1.msra.mxu0 0.0
  %2474 = vmatprep.subr.mxu0 0.0
  %2475 = vmatpush1.msra.mxu0 0.0
  %2476 = vmatprep.subr.mxu0 0.0
  %2477 = vmatpush1.msra.mxu0 0.0
  %2478 = vmatprep.subr.mxu0 0.0
  %2479 = vmatpush1.msra.mxu0 0.0
  %2480 = vmatprep.subr.mxu0 0.0
  %2481 = vmatpush1.msra.mxu0 0.0
  %2482 = vmatprep.subr.mxu0 0.0
  %2483 = vmatpush1.msra.mxu0 0.0
  %2484 = vmatprep.subr.mxu0 0.0
  %2485 = vmatpush1.msra.mxu0 0.0
  %2486 = vmatprep.subr.mxu0 0.0
  %2487 = vmatpush1.msra.mxu0 0.0
  %2488 = vmatprep.subr.mxu0 0.0
  %2489 = vmatpush1.msra.mxu0 0.0
  %2490 = vmatprep.subr.mxu0 0.0
  %2491 = vmatpush1.msra.mxu0 0.0
  %2492 = vmatprep.subr.mxu0 0.0
  %2493 = vmatpush1.msra.mxu0 0.0
  %2494 = vmatprep.subr.mxu0 0.0
  %2495 = vmatpush1.msra.mxu0 0.0
  %2496 = vmatprep.subr.mxu0 0.0
  %2497 = vmatpush1.msra.mxu0 0.0
  %2498 = vmatprep.subr.mxu0 0.0
  %2499 = vmatpush1.msra.mxu0 0.0
  %2500 = vmatprep.subr.mxu0 0.0
  %2501 = vmatpush1.msra.mxu0 0.0
  %2502 = vmatprep.subr.mxu0 0.0
  %2503 = vmatpush1.msra.mxu0 0.0
  %2504 = vmatprep.subr.mxu0 0.0
  %2505 = vmatpush1.msra.mxu0 0.0
  %2506 = vmatprep.subr.mxu0 0.0
  %2507 = vmatpush1.msra.mxu0 0.0
  %2508 = vmatprep.subr.mxu0 0.0
  %2509 = vmatpush1.msra.mxu0 0.0
  %2510 = vmatprep.subr.mxu0 0.0
  %2511 = vmatpush1.msra.mxu0 0.0
  %2512 = vmatprep.subr.mxu0 0.0
  %2513 = vmatpush1.msra.mxu0 0.0
  %2514 = vmatprep.subr.mxu0 0.0
  %2515 = vmatpush1.msra.mxu0 0.0
  %2516 = vmatprep.subr.mxu0 0.0
  %2517 = vmatpush1.msra.mxu0 0.0
  %2518 = vmatprep.subr.mxu0 0.0
  %2519 = vmatpush1.msra.mxu0 0.0
  %2520 = vmatprep.subr.mxu0 0.0
  %2521 = vmatpush1.msra.mxu0 0.0
  %2522 = vmatprep.subr.mxu0 0.0
  %2523 = vmatpush1.msra.mxu0 0.0
  %2524 = vmatprep.mubr.f32.mxu0 0.0
  %2525 = vmatmul.mubr.f32.gmra.mrb[0].mxu0 %v1836
  %v2526 = vpop.f32.mrb[0].mxu0
  %v2527 = vadd.f32 0.0, %v2526
  %v2528 = vpop.f32.mrb[0].mxu0
  %2529 = vmatprep.mubr.f32.mxu0 0.0
  %2530 = vmatmul.mubr.f32.gmra.mrb[0].mxu0 %v1838
  %v2531 = vpop.f32.mrb[0].mxu0
  %v2532 = vadd.f32 0.0, %v2531
  %v2533 = vpop.f32.mrb[0].mxu0
  %2534 = vmatprep.mubr.f32.mxu0 0.0
  %2535 = vmatmul.mubr.f32.gmra.mrb[0].mxu0 %v1840
  %v2536 = vpop.f32.mrb[0].mxu0
  %v2537 = vadd.f32 0.0, %v2536
  %v2538 = vpop.f32.mrb[0].mxu0
  %2539 = vmatprep.mubr.f32.mxu0 0.0
  %2540 = vmatmul.mubr.f32.gmra.mrb[0].mxu0 %v1842
  %v2541 = vpop.f32.mrb[0].mxu0
  %v2542 = vadd.f32 0.0, %v2541
  %v2543 = vpop.f32.mrb[0].mxu0
  %2544 = vmatprep.mubr.f32.mxu0 0.0
  %2545 = vmatmul.mubr.f32.gmra.mrb[0].mxu0 %v1844
  %v2546 = vpop.f32.mrb[0].mxu0
  %v2547 = vadd.f32 0.0, %v2546
  %v2548 = vpop.f32.mrb[0].mxu0
  %2549 = vmatprep.mubr.f32.mxu0 0.0
  %2550 = vmatmul.mubr.f32.gmra.mrb[0].mxu0 %v1846
  %v2551 = vpop.f32.mrb[0].mxu0
  %v2552 = vadd.f32 0.0, %v2551
  %v2553 = vpop.f32.mrb[0].mxu0
  %2554 = vmatprep.mubr.f32.mxu0 0.0
  %2555 = vmatmul.mubr.f32.gmra.mrb[0].mxu0 %v1848
  %v2556 = vpop.f32.mrb[0].mxu0
  %v2557 = vadd.f32 0.0, %v2556
  %v2558 = vpop.f32.mrb[0].mxu0
  %2559 = vmatprep.mubr.f32.mxu0 0.0
  %2560 = vmatmul.mubr.f32.gmra.mrb[0].mxu0 %v1850
  %v2561 = vpop.f32.mrb[0].mxu0
  %v2562 = vadd.f32 0.0, %v2561
  %v2563 = vpop.f32.mrb[0].mxu0
  %2564 = vmatprep.mubr.f32.mxu0 0.0
  %2565 = vmatmul.mubr.f32.gmra.mrb[0].mxu0 %v1852
  %v2566 = vpop.f32.mrb[0].mxu0
  %v2567 = vadd.f32 0.0, %v2566
  %v2568 = vpop.f32.mrb[0].mxu0
  %2569 = vmatprep.mubr.f32.mxu0 0.0
  %2570 = vmatmul.mubr.f32.gmra.mrb[0].mxu0 %v1854
  %v2571 = vpop.f32.mrb[0].mxu0
  %v2572 = vadd.f32 0.0, %v2571
  %v2573 = vpop.f32.mrb[0].mxu0
  %2574 = vmatprep.mubr.f32.mxu0 0.0
  %2575 = vmatmul.mubr.f32.gmra.mrb[0].mxu0 %v1856
  %v2576 = vpop.f32.mrb[0].mxu0
  %v2577 = vadd.f32 0.0, %v2576
  %v2578 = vpop.f32.mrb[0].mxu0
  %2579 = vmatprep.mubr.f32.mxu0 0.0
  %2580 = vmatmul.mubr.f32.gmra.mrb[0].mxu0 %v1858
  %v2581 = vpop.f32.mrb[0].mxu0
  %v2582 = vadd.f32 0.0, %v2581
  %v2583 = vpop.f32.mrb[0].mxu0
  %2584 = vmatprep.mubr.f32.mxu0 0.0
  %2585 = vmatmul.mubr.f32.gmra.mrb[0].mxu0 %v1860
  %v2586 = vpop.f32.mrb[0].mxu0
  %v2587 = vadd.f32 0.0, %v2586
  %v2588 = vpop.f32.mrb[0].mxu0
  %2589 = vmatprep.mubr.f32.mxu0 0.0
  %2590 = vmatmul.mubr.f32.gmra.mrb[0].mxu0 %v1862
  %v2591 = vpop.f32.mrb[0].mxu0
  %v2592 = vadd.f32 0.0, %v2591
  %v2593 = vpop.f32.mrb[0].mxu0
  %2594 = vmatprep.mubr.f32.mxu0 0.0
  %2595 = vmatmul.mubr.f32.gmra.mrb[0].mxu0 %v2453
  %v2596 = vpop.f32.mrb[0].mxu0
  %v2597 = vadd.f32 0.0, %v2596
  %v2598 = vpop.f32.mrb[0].mxu0
  %2599 = vmatprep.mubr.f32.mxu0 0.0
  %2600 = vmatmul.mubr.f32.gmra.mrb[0].mxu0 %v2455
  %v2601 = vpop.f32.mrb[0].mxu0
  %v2602 = vadd.f32 0.0, %v2601
  %v2603 = vpop.f32.mrb[0].mxu0
  %2604 = vdwg.mxu0
  %v2605 = vadd.f32 %v2426, %v2527
  %v2606 = vadd.f32 %v2427, %v2532
  %v2607 = vadd.f32 %v2428, %v2537
  %v2608 = vadd.f32 %v2429, %v2542
  %v2609 = vadd.f32 %v2430, %v2547
  %v2610 = vadd.f32 %v2431, %v2552
  %v2611 = vadd.f32 %v2432, %v2557
  %v2612 = vadd.f32 %v2433, %v2562
  %v2613 = vadd.f32 %v2434, %v2567
  %v2614 = vadd.f32 %v2435, %v2572
  %v2615 = vadd.f32 %v2436, %v2577
  %v2616 = vadd.f32 %v2437, %v2582
  %v2617 = vadd.f32 %v2438, %v2587
  %v2618 = vadd.f32 %v2439, %v2592
  %v2619 = vadd.f32 %v2440, %v2597
  %v2620 = vadd.f32 %v2441, %v2602
  %v2621 = vld [vmem:[%s1 + $0x18] sm:$0xf]
  %v2623 = vsel %vm1202, %v2621, 0
  %2625 = vmatprep.subr.mxu0 0.0
  %2626 = vmatpush1.msra.mxu0 %v2623
  %2627 = vmatprep.subr.mxu0 0.0
  %2628 = vmatpush1.msra.mxu0 0.0
  %2629 = vmatprep.subr.mxu0 0.0
  %2630 = vmatpush1.msra.mxu0 0.0
  %2631 = vmatprep.subr.mxu0 0.0
  %2632 = vmatpush1.msra.mxu0 0.0
  %2633 = vmatprep.subr.mxu0 0.0
  %2634 = vmatpush1.msra.mxu0 0.0
  %2635 = vmatprep.subr.mxu0 0.0
  %2636 = vmatpush1.msra.mxu0 0.0
  %2637 = vmatprep.subr.mxu0 0.0
  %2638 = vmatpush1.msra.mxu0 0.0
  %2639 = vmatprep.subr.mxu0 0.0
  %2640 = vmatpush1.msra.mxu0 0.0
  %2641 = vmatprep.subr.mxu0 0.0
  %2642 = vmatpush1.msra.mxu0 0.0
  %2643 = vmatprep.subr.mxu0 0.0
  %2644 = vmatpush1.msra.mxu0 0.0
  %2645 = vmatprep.subr.mxu0 0.0
  %2646 = vmatpush1.msra.mxu0 0.0
  %2647 = vmatprep.subr.mxu0 0.0
  %2648 = vmatpush1.msra.mxu0 0.0
  %2649 = vmatprep.subr.mxu0 0.0
  %2650 = vmatpush1.msra.mxu0 0.0
  %2651 = vmatprep.subr.mxu0 0.0
  %2652 = vmatpush1.msra.mxu0 0.0
  %2653 = vmatprep.subr.mxu0 0.0
  %2654 = vmatpush1.msra.mxu0 0.0
  %2655 = vmatprep.subr.mxu0 0.0
  %2656 = vmatpush1.msra.mxu0 0.0
  %2657 = vmatprep.subr.mxu0 0.0
  %2658 = vmatpush1.msra.mxu0 0.0
  %2659 = vmatprep.subr.mxu0 0.0
  %2660 = vmatpush1.msra.mxu0 0.0
  %2661 = vmatprep.subr.mxu0 0.0
  %2662 = vmatpush1.msra.mxu0 0.0
  %2663 = vmatprep.subr.mxu0 0.0
  %2664 = vmatpush1.msra.mxu0 0.0
  %2665 = vmatprep.subr.mxu0 0.0
  %2666 = vmatpush1.msra.mxu0 0.0
  %2667 = vmatprep.subr.mxu0 0.0
  %2668 = vmatpush1.msra.mxu0 0.0
  %2669 = vmatprep.subr.mxu0 0.0
  %2670 = vmatpush1.msra.mxu0 0.0
  %2671 = vmatprep.subr.mxu0 0.0
  %2672 = vmatpush1.msra.mxu0 0.0
  %2673 = vmatprep.subr.mxu0 0.0
  %2674 = vmatpush1.msra.mxu0 0.0
  %2675 = vmatprep.subr.mxu0 0.0
  %2676 = vmatpush1.msra.mxu0 0.0
  %2677 = vmatprep.subr.mxu0 0.0
  %2678 = vmatpush1.msra.mxu0 0.0
  %2679 = vmatprep.subr.mxu0 0.0
  %2680 = vmatpush1.msra.mxu0 0.0
  %2681 = vmatprep.subr.mxu0 0.0
  %2682 = vmatpush1.msra.mxu0 0.0
  %2683 = vmatprep.subr.mxu0 0.0
  %2684 = vmatpush1.msra.mxu0 0.0
  %2685 = vmatprep.subr.mxu0 0.0
  %2686 = vmatpush1.msra.mxu0 0.0
  %2687 = vmatprep.subr.mxu0 0.0
  %2688 = vmatpush1.msra.mxu0 0.0
  %2689 = vmatprep.mubr.f32.mxu0 0.0
  %2690 = vmatmul.mubr.f32.gmra.mrb[0].mxu0 %v1593
  %v2691 = vpop.f32.mrb[0].mxu0
  %v2692 = vadd.f32 0.0, %v2691
  %v2693 = vpop.f32.mrb[0].mxu0
  %2694 = vmatprep.mubr.f32.mxu0 0.0
  %2695 = vmatmul.mubr.f32.gmra.mrb[0].mxu0 %v1595
  %v2696 = vpop.f32.mrb[0].mxu0
  %v2697 = vadd.f32 0.0, %v2696
  %v2698 = vpop.f32.mrb[0].mxu0
  %2699 = vmatprep.mubr.f32.mxu0 0.0
  %2700 = vmatmul.mubr.f32.gmra.mrb[0].mxu0 %v1597
  %v2701 = vpop.f32.mrb[0].mxu0
  %v2702 = vadd.f32 0.0, %v2701
  %v2703 = vpop.f32.mrb[0].mxu0
  %2704 = vmatprep.mubr.f32.mxu0 0.0
  %2705 = vmatmul.mubr.f32.gmra.mrb[0].mxu0 %v1599
  %v2706 = vpop.f32.mrb[0].mxu0
  %v2707 = vadd.f32 0.0, %v2706
  %v2708 = vpop.f32.mrb[0].mxu0
  %2709 = vmatprep.mubr.f32.mxu0 0.0
  %2710 = vmatmul.mubr.f32.gmra.mrb[0].mxu0 %v1601
  %v2711 = vpop.f32.mrb[0].mxu0
  %v2712 = vadd.f32 0.0, %v2711
  %v2713 = vpop.f32.mrb[0].mxu0
  %2714 = vmatprep.mubr.f32.mxu0 0.0
  %2715 = vmatmul.mubr.f32.gmra.mrb[0].mxu0 %v1603
  %v2716 = vpop.f32.mrb[0].mxu0
  %v2717 = vadd.f32 0.0, %v2716
  %v2718 = vpop.f32.mrb[0].mxu0
  %2719 = vmatprep.mubr.f32.mxu0 0.0
  %2720 = vmatmul.mubr.f32.gmra.mrb[0].mxu0 %v1605
  %v2721 = vpop.f32.mrb[0].mxu0
  %v2722 = vadd.f32 0.0, %v2721
  %v2723 = vpop.f32.mrb[0].mxu0
  %2724 = vmatprep.mubr.f32.mxu0 0.0
  %2725 = vmatmul.mubr.f32.gmra.mrb[0].mxu0 %v1607
  %v2726 = vpop.f32.mrb[0].mxu0
  %v2727 = vadd.f32 0.0, %v2726
  %v2728 = vpop.f32.mrb[0].mxu0
  %2729 = vmatprep.mubr.f32.mxu0 0.0
  %2730 = vmatmul.mubr.f32.gmra.mrb[0].mxu0 %v1609
  %v2731 = vpop.f32.mrb[0].mxu0
  %v2732 = vadd.f32 0.0, %v2731
  %v2733 = vpop.f32.mrb[0].mxu0
  %2734 = vmatprep.mubr.f32.mxu0 0.0
  %2735 = vmatmul.mubr.f32.gmra.mrb[0].mxu0 %v1611
  %v2736 = vpop.f32.mrb[0].mxu0
  %v2737 = vadd.f32 0.0, %v2736
  %v2738 = vpop.f32.mrb[0].mxu0
  %2739 = vmatprep.mubr.f32.mxu0 0.0
  %2740 = vmatmul.mubr.f32.gmra.mrb[0].mxu0 %v1613
  %v2741 = vpop.f32.mrb[0].mxu0
  %v2742 = vadd.f32 0.0, %v2741
  %v2743 = vpop.f32.mrb[0].mxu0
  %2744 = vmatprep.mubr.f32.mxu0 0.0
  %2745 = vmatmul.mubr.f32.gmra.mrb[0].mxu0 %v1615
  %v2746 = vpop.f32.mrb[0].mxu0
  %v2747 = vadd.f32 0.0, %v2746
  %v2748 = vpop.f32.mrb[0].mxu0
  %2749 = vmatprep.mubr.f32.mxu0 0.0
  %2750 = vmatmul.mubr.f32.gmra.mrb[0].mxu0 %v2070
  %v2751 = vpop.f32.mrb[0].mxu0
  %v2752 = vadd.f32 0.0, %v2751
  %v2753 = vpop.f32.mrb[0].mxu0
  %2754 = vmatprep.mubr.f32.mxu0 0.0
  %2755 = vmatmul.mubr.f32.gmra.mrb[0].mxu0 %v2072
  %v2756 = vpop.f32.mrb[0].mxu0
  %v2757 = vadd.f32 0.0, %v2756
  %v2758 = vpop.f32.mrb[0].mxu0
  %2759 = vmatprep.mubr.f32.mxu0 0.0
  %2760 = vmatmul.mubr.f32.gmra.mrb[0].mxu0 %v1172
  %v2761 = vpop.f32.mrb[0].mxu0
  %v2762 = vadd.f32 0.0, %v2761
  %v2763 = vpop.f32.mrb[0].mxu0
  %2764 = vmatprep.mubr.f32.mxu0 0.0
  %2765 = vmatmul.mubr.f32.gmra.mrb[0].mxu0 %v1172
  %v2766 = vpop.f32.mrb[0].mxu0
  %v2767 = vadd.f32 0.0, %v2766
  %v2768 = vpop.f32.mrb[0].mxu0
  %2769 = vdwg.mxu0
  %v2770 = vadd.f32 %v2605, %v2692
  %v2771 = vadd.f32 %v2606, %v2697
  %v2772 = vadd.f32 %v2607, %v2702
  %v2773 = vadd.f32 %v2608, %v2707
  %v2774 = vadd.f32 %v2609, %v2712
  %v2775 = vadd.f32 %v2610, %v2717
  %v2776 = vadd.f32 %v2611, %v2722
  %v2777 = vadd.f32 %v2612, %v2727
  %v2778 = vadd.f32 %v2613, %v2732
  %v2779 = vadd.f32 %v2614, %v2737
  %v2780 = vadd.f32 %v2615, %v2742
  %v2781 = vadd.f32 %v2616, %v2747
  %v2782 = vadd.f32 %v2617, %v2752
  %v2783 = vadd.f32 %v2618, %v2757
  %v2784 = vadd.f32 %v2619, %v2762
  %v2785 = vadd.f32 %v2620, %v2767
  %v2786 = vld [vmem:[%s1 + $0x1c] sm:$0xf]
  %v2788 = vsel %vm1202, %v2786, 0
  %2790 = vmatprep.subr.mxu0 0.0
  %2791 = vmatpush1.msra.mxu0 %v2788
  %2792 = vmatprep.subr.mxu0 0.0
  %2793 = vmatpush1.msra.mxu0 0.0
  %2794 = vmatprep.subr.mxu0 0.0
  %2795 = vmatpush1.msra.mxu0 0.0
  %2796 = vmatprep.subr.mxu0 0.0
  %2797 = vmatpush1.msra.mxu0 0.0
  %2798 = vmatprep.subr.mxu0 0.0
  %2799 = vmatpush1.msra.mxu0 0.0
  %2800 = vmatprep.subr.mxu0 0.0
  %2801 = vmatpush1.msra.mxu0 0.0
  %2802 = vmatprep.subr.mxu0 0.0
  %2803 = vmatpush1.msra.mxu0 0.0
  %2804 = vmatprep.subr.mxu0 0.0
  %2805 = vmatpush1.msra.mxu0 0.0
  %2806 = vmatprep.subr.mxu0 0.0
  %2807 = vmatpush1.msra.mxu0 0.0
  %2808 = vmatprep.subr.mxu0 0.0
  %2809 = vmatpush1.msra.mxu0 0.0
  %2810 = vmatprep.subr.mxu0 0.0
  %2811 = vmatpush1.msra.mxu0 0.0
  %2812 = vmatprep.subr.mxu0 0.0
  %2813 = vmatpush1.msra.mxu0 0.0
  %2814 = vmatprep.subr.mxu0 0.0
  %2815 = vmatpush1.msra.mxu0 0.0
  %2816 = vmatprep.subr.mxu0 0.0
  %2817 = vmatpush1.msra.mxu0 0.0
  %2818 = vmatprep.subr.mxu0 0.0
  %2819 = vmatpush1.msra.mxu0 0.0
  %2820 = vmatprep.subr.mxu0 0.0
  %2821 = vmatpush1.msra.mxu0 0.0
  %2822 = vmatprep.subr.mxu0 0.0
  %2823 = vmatpush1.msra.mxu0 0.0
  %2824 = vmatprep.subr.mxu0 0.0
  %2825 = vmatpush1.msra.mxu0 0.0
  %2826 = vmatprep.subr.mxu0 0.0
  %2827 = vmatpush1.msra.mxu0 0.0
  %2828 = vmatprep.subr.mxu0 0.0
  %2829 = vmatpush1.msra.mxu0 0.0
  %2830 = vmatprep.subr.mxu0 0.0
  %2831 = vmatpush1.msra.mxu0 0.0
  %2832 = vmatprep.subr.mxu0 0.0
  %2833 = vmatpush1.msra.mxu0 0.0
  %2834 = vmatprep.subr.mxu0 0.0
  %2835 = vmatpush1.msra.mxu0 0.0
  %2836 = vmatprep.subr.mxu0 0.0
  %2837 = vmatpush1.msra.mxu0 0.0
  %2838 = vmatprep.subr.mxu0 0.0
  %2839 = vmatpush1.msra.mxu0 0.0
  %2840 = vmatprep.subr.mxu0 0.0
  %2841 = vmatpush1.msra.mxu0 0.0
  %2842 = vmatprep.subr.mxu0 0.0
  %2843 = vmatpush1.msra.mxu0 0.0
  %2844 = vmatprep.subr.mxu0 0.0
  %2845 = vmatpush1.msra.mxu0 0.0
  %2846 = vmatprep.subr.mxu0 0.0
  %2847 = vmatpush1.msra.mxu0 0.0
  %2848 = vmatprep.subr.mxu0 0.0
  %2849 = vmatpush1.msra.mxu0 0.0
  %2850 = vmatprep.subr.mxu0 0.0
  %2851 = vmatpush1.msra.mxu0 0.0
  %2852 = vmatprep.subr.mxu0 0.0
  %2853 = vmatpush1.msra.mxu0 0.0
  %2854 = vmatprep.mubr.f32.mxu0 0.0
  %2855 = vmatmul.mubr.f32.gmra.mrb[0].mxu0 %v1178
  %v2856 = vpop.f32.mrb[0].mxu0
  %v2857 = vadd.f32 0.0, %v2856
  %v2858 = vpop.f32.mrb[0].mxu0
  %2859 = vmatprep.mubr.f32.mxu0 0.0
  %2860 = vmatmul.mubr.f32.gmra.mrb[0].mxu0 %v1180
  %v2861 = vpop.f32.mrb[0].mxu0
  %v2862 = vadd.f32 0.0, %v2861
  %v2863 = vpop.f32.mrb[0].mxu0
  %2864 = vmatprep.mubr.f32.mxu0 0.0
  %2865 = vmatmul.mubr.f32.gmra.mrb[0].mxu0 %v1182
  %v2866 = vpop.f32.mrb[0].mxu0
  %v2867 = vadd.f32 0.0, %v2866
  %v2868 = vpop.f32.mrb[0].mxu0
  %2869 = vmatprep.mubr.f32.mxu0 0.0
  %2870 = vmatmul.mubr.f32.gmra.mrb[0].mxu0 %v1184
  %v2871 = vpop.f32.mrb[0].mxu0
  %v2872 = vadd.f32 0.0, %v2871
  %v2873 = vpop.f32.mrb[0].mxu0
  %2874 = vmatprep.mubr.f32.mxu0 0.0
  %2875 = vmatmul.mubr.f32.gmra.mrb[0].mxu0 %v1186
  %v2876 = vpop.f32.mrb[0].mxu0
  %v2877 = vadd.f32 0.0, %v2876
  %v2878 = vpop.f32.mrb[0].mxu0
  %2879 = vmatprep.mubr.f32.mxu0 0.0
  %2880 = vmatmul.mubr.f32.gmra.mrb[0].mxu0 %v1188
  %v2881 = vpop.f32.mrb[0].mxu0
  %v2882 = vadd.f32 0.0, %v2881
  %v2883 = vpop.f32.mrb[0].mxu0
  %2884 = vmatprep.mubr.f32.mxu0 0.0
  %2885 = vmatmul.mubr.f32.gmra.mrb[0].mxu0 %v1190
  %v2886 = vpop.f32.mrb[0].mxu0
  %v2887 = vadd.f32 0.0, %v2886
  %v2888 = vpop.f32.mrb[0].mxu0
  %2889 = vmatprep.mubr.f32.mxu0 0.0
  %2890 = vmatmul.mubr.f32.gmra.mrb[0].mxu0 %v1192
  %v2891 = vpop.f32.mrb[0].mxu0
  %v2892 = vadd.f32 0.0, %v2891
  %v2893 = vpop.f32.mrb[0].mxu0
  %2894 = vmatprep.mubr.f32.mxu0 0.0
  %2895 = vmatmul.mubr.f32.gmra.mrb[0].mxu0 %v1194
  %v2896 = vpop.f32.mrb[0].mxu0
  %v2897 = vadd.f32 0.0, %v2896
  %v2898 = vpop.f32.mrb[0].mxu0
  %2899 = vmatprep.mubr.f32.mxu0 0.0
  %2900 = vmatmul.mubr.f32.gmra.mrb[0].mxu0 %v1196
  %v2901 = vpop.f32.mrb[0].mxu0
  %v2902 = vadd.f32 0.0, %v2901
  %v2903 = vpop.f32.mrb[0].mxu0
  %2904 = vmatprep.mubr.f32.mxu0 0.0
  %2905 = vmatmul.mubr.f32.gmra.mrb[0].mxu0 %v1198
  %v2906 = vpop.f32.mrb[0].mxu0
  %v2907 = vadd.f32 0.0, %v2906
  %v2908 = vpop.f32.mrb[0].mxu0
  %2909 = vmatprep.mubr.f32.mxu0 0.0
  %2910 = vmatmul.mubr.f32.gmra.mrb[0].mxu0 %v1200
  %v2911 = vpop.f32.mrb[0].mxu0
  %v2912 = vadd.f32 0.0, %v2911
  %v2913 = vpop.f32.mrb[0].mxu0
  %2914 = vmatprep.mubr.f32.mxu0 0.0
  %2915 = vmatmul.mubr.f32.gmra.mrb[0].mxu0 %v2274
  %v2916 = vpop.f32.mrb[0].mxu0
  %v2917 = vadd.f32 0.0, %v2916
  %v2918 = vpop.f32.mrb[0].mxu0
  %2919 = vmatprep.mubr.f32.mxu0 0.0
  %2920 = vmatmul.mubr.f32.gmra.mrb[0].mxu0 %v2276
  %v2921 = vpop.f32.mrb[0].mxu0
  %v2922 = vadd.f32 0.0, %v2921
  %v2923 = vpop.f32.mrb[0].mxu0
  %2924 = vmatprep.mubr.f32.mxu0 0.0
  %2925 = vmatmul.mubr.f32.gmra.mrb[0].mxu0 %v1172
  %v2926 = vpop.f32.mrb[0].mxu0
  %v2927 = vadd.f32 0.0, %v2926
  %v2928 = vpop.f32.mrb[0].mxu0
  %2929 = vmatprep.mubr.f32.mxu0 0.0
  %2930 = vmatmul.mubr.f32.gmra.mrb[0].mxu0 %v1172
  %v2931 = vpop.f32.mrb[0].mxu0
  %v2932 = vadd.f32 0.0, %v2931
  %v2933 = vpop.f32.mrb[0].mxu0
  %2934 = vdwg.mxu0
  %v2935 = vadd.f32 %v2770, %v2857
  %v2936 = vadd.f32 %v2771, %v2862
  %v2937 = vadd.f32 %v2772, %v2867
  %v2938 = vadd.f32 %v2773, %v2872
  %v2939 = vadd.f32 %v2774, %v2877
  %v2940 = vadd.f32 %v2775, %v2882
  %v2941 = vadd.f32 %v2776, %v2887
  %v2942 = vadd.f32 %v2777, %v2892
  %v2943 = vadd.f32 %v2778, %v2897
  %v2944 = vadd.f32 %v2779, %v2902
  %v2945 = vadd.f32 %v2780, %v2907
  %v2946 = vadd.f32 %v2781, %v2912
  %v2947 = vadd.f32 %v2782, %v2917
  %v2948 = vadd.f32 %v2783, %v2922
  %v2949 = vadd.f32 %v2784, %v2927
  %v2950 = vadd.f32 %v2785, %v2932
  %v2951 = vld [vmem:[%s1 + $0x20] sm:$0xf]
  %v2953 = vsel %vm1202, %v2951, 0
  %2955 = vmatprep.subr.mxu0 0.0
  %2956 = vmatpush1.msra.mxu0 %v2953
  %2957 = vmatprep.subr.mxu0 0.0
  %2958 = vmatpush1.msra.mxu0 0.0
  %2959 = vmatprep.subr.mxu0 0.0
  %2960 = vmatpush1.msra.mxu0 0.0
  %2961 = vmatprep.subr.mxu0 0.0
  %2962 = vmatpush1.msra.mxu0 0.0
  %2963 = vmatprep.subr.mxu0 0.0
  %2964 = vmatpush1.msra.mxu0 0.0
  %2965 = vmatprep.subr.mxu0 0.0
  %2966 = vmatpush1.msra.mxu0 0.0
  %2967 = vmatprep.subr.mxu0 0.0
  %2968 = vmatpush1.msra.mxu0 0.0
  %2969 = vmatprep.subr.mxu0 0.0
  %2970 = vmatpush1.msra.mxu0 0.0
  %2971 = vmatprep.subr.mxu0 0.0
  %2972 = vmatpush1.msra.mxu0 0.0
  %2973 = vmatprep.subr.mxu0 0.0
  %2974 = vmatpush1.msra.mxu0 0.0
  %2975 = vmatprep.subr.mxu0 0.0
  %2976 = vmatpush1.msra.mxu0 0.0
  %2977 = vmatprep.subr.mxu0 0.0
  %2978 = vmatpush1.msra.mxu0 0.0
  %2979 = vmatprep.subr.mxu0 0.0
  %2980 = vmatpush1.msra.mxu0 0.0
  %2981 = vmatprep.subr.mxu0 0.0
  %2982 = vmatpush1.msra.mxu0 0.0
  %2983 = vmatprep.subr.mxu0 0.0
  %2984 = vmatpush1.msra.mxu0 0.0
  %2985 = vmatprep.subr.mxu0 0.0
  %2986 = vmatpush1.msra.mxu0 0.0
  %2987 = vmatprep.subr.mxu0 0.0
  %2988 = vmatpush1.msra.mxu0 0.0
  %2989 = vmatprep.subr.mxu0 0.0
  %2990 = vmatpush1.msra.mxu0 0.0
  %2991 = vmatprep.subr.mxu0 0.0
  %2992 = vmatpush1.msra.mxu0 0.0
  %2993 = vmatprep.subr.mxu0 0.0
  %2994 = vmatpush1.msra.mxu0 0.0
  %2995 = vmatprep.subr.mxu0 0.0
  %2996 = vmatpush1.msra.mxu0 0.0
  %2997 = vmatprep.subr.mxu0 0.0
  %2998 = vmatpush1.msra.mxu0 0.0
  %2999 = vmatprep.subr.mxu0 0.0
  %3000 = vmatpush1.msra.mxu0 0.0
  %3001 = vmatprep.subr.mxu0 0.0
  %3002 = vmatpush1.msra.mxu0 0.0
  %3003 = vmatprep.subr.mxu0 0.0
  %3004 = vmatpush1.msra.mxu0 0.0
  %3005 = vmatprep.subr.mxu0 0.0
  %3006 = vmatpush1.msra.mxu0 0.0
  %3007 = vmatprep.subr.mxu0 0.0
  %3008 = vmatpush1.msra.mxu0 0.0
  %3009 = vmatprep.subr.mxu0 0.0
  %3010 = vmatpush1.msra.mxu0 0.0
  %3011 = vmatprep.subr.mxu0 0.0
  %3012 = vmatpush1.msra.mxu0 0.0
  %3013 = vmatprep.subr.mxu0 0.0
  %3014 = vmatpush1.msra.mxu0 0.0
  %3015 = vmatprep.subr.mxu0 0.0
  %3016 = vmatpush1.msra.mxu0 0.0
  %3017 = vmatprep.subr.mxu0 0.0
  %3018 = vmatpush1.msra.mxu0 0.0
  %3019 = vmatprep.mubr.f32.mxu0 0.0
  %3020 = vmatmul.mubr.f32.gmra.mrb[0].mxu0 %v1840
  %v3021 = vpop.f32.mrb[0].mxu0
  %v3022 = vadd.f32 0.0, %v3021
  %v3023 = vpop.f32.mrb[0].mxu0
  %3024 = vmatprep.mubr.f32.mxu0 0.0
  %3025 = vmatmul.mubr.f32.gmra.mrb[0].mxu0 %v1842
  %v3026 = vpop.f32.mrb[0].mxu0
  %v3027 = vadd.f32 0.0, %v3026
  %v3028 = vpop.f32.mrb[0].mxu0
  %3029 = vmatprep.mubr.f32.mxu0 0.0
  %3030 = vmatmul.mubr.f32.gmra.mrb[0].mxu0 %v1844
  %v3031 = vpop.f32.mrb[0].mxu0
  %v3032 = vadd.f32 0.0, %v3031
  %v3033 = vpop.f32.mrb[0].mxu0
  %3034 = vmatprep.mubr.f32.mxu0 0.0
  %3035 = vmatmul.mubr.f32.gmra.mrb[0].mxu0 %v1846
  %v3036 = vpop.f32.mrb[0].mxu0
  %v3037 = vadd.f32 0.0, %v3036
  %v3038 = vpop.f32.mrb[0].mxu0
  %3039 = vmatprep.mubr.f32.mxu0 0.0
  %3040 = vmatmul.mubr.f32.gmra.mrb[0].mxu0 %v1848
  %v3041 = vpop.f32.mrb[0].mxu0
  %v3042 = vadd.f32 0.0, %v3041
  %v3043 = vpop.f32.mrb[0].mxu0
  %3044 = vmatprep.mubr.f32.mxu0 0.0
  %3045 = vmatmul.mubr.f32.gmra.mrb[0].mxu0 %v1850
  %v3046 = vpop.f32.mrb[0].mxu0
  %v3047 = vadd.f32 0.0, %v3046
  %v3048 = vpop.f32.mrb[0].mxu0
  %3049 = vmatprep.mubr.f32.mxu0 0.0
  %3050 = vmatmul.mubr.f32.gmra.mrb[0].mxu0 %v1852
  %v3051 = vpop.f32.mrb[0].mxu0
  %v3052 = vadd.f32 0.0, %v3051
  %v3053 = vpop.f32.mrb[0].mxu0
  %3054 = vmatprep.mubr.f32.mxu0 0.0
  %3055 = vmatmul.mubr.f32.gmra.mrb[0].mxu0 %v1854
  %v3056 = vpop.f32.mrb[0].mxu0
  %v3057 = vadd.f32 0.0, %v3056
  %v3058 = vpop.f32.mrb[0].mxu0
  %3059 = vmatprep.mubr.f32.mxu0 0.0
  %3060 = vmatmul.mubr.f32.gmra.mrb[0].mxu0 %v1856
  %v3061 = vpop.f32.mrb[0].mxu0
  %v3062 = vadd.f32 0.0, %v3061
  %v3063 = vpop.f32.mrb[0].mxu0
  %3064 = vmatprep.mubr.f32.mxu0 0.0
  %3065 = vmatmul.mubr.f32.gmra.mrb[0].mxu0 %v1858
  %v3066 = vpop.f32.mrb[0].mxu0
  %v3067 = vadd.f32 0.0, %v3066
  %v3068 = vpop.f32.mrb[0].mxu0
  %3069 = vmatprep.mubr.f32.mxu0 0.0
  %3070 = vmatmul.mubr.f32.gmra.mrb[0].mxu0 %v1860
  %v3071 = vpop.f32.mrb[0].mxu0
  %v3072 = vadd.f32 0.0, %v3071
  %v3073 = vpop.f32.mrb[0].mxu0
  %3074 = vmatprep.mubr.f32.mxu0 0.0
  %3075 = vmatmul.mubr.f32.gmra.mrb[0].mxu0 %v1862
  %v3076 = vpop.f32.mrb[0].mxu0
  %v3077 = vadd.f32 0.0, %v3076
  %v3078 = vpop.f32.mrb[0].mxu0
  %3079 = vmatprep.mubr.f32.mxu0 0.0
  %3080 = vmatmul.mubr.f32.gmra.mrb[0].mxu0 %v2453
  %v3081 = vpop.f32.mrb[0].mxu0
  %v3082 = vadd.f32 0.0, %v3081
  %v3083 = vpop.f32.mrb[0].mxu0
  %3084 = vmatprep.mubr.f32.mxu0 0.0
  %3085 = vmatmul.mubr.f32.gmra.mrb[0].mxu0 %v2455
  %v3086 = vpop.f32.mrb[0].mxu0
  %v3087 = vadd.f32 0.0, %v3086
  %v3088 = vpop.f32.mrb[0].mxu0
  %3089 = vmatprep.mubr.f32.mxu0 0.0
  %3090 = vmatmul.mubr.f32.gmra.mrb[0].mxu0 %v1172
  %v3091 = vpop.f32.mrb[0].mxu0
  %v3092 = vadd.f32 0.0, %v3091
  %v3093 = vpop.f32.mrb[0].mxu0
  %3094 = vmatprep.mubr.f32.mxu0 0.0
  %3095 = vmatmul.mubr.f32.gmra.mrb[0].mxu0 %v1172
  %v3096 = vpop.f32.mrb[0].mxu0
  %v3097 = vadd.f32 0.0, %v3096
  %v3098 = vpop.f32.mrb[0].mxu0
  %3099 = vdwg.mxu0
  %v3100 = vadd.f32 %v2935, %v3022
  %v3101 = vadd.f32 %v2936, %v3027
  %v3102 = vadd.f32 %v2937, %v3032
  %v3103 = vadd.f32 %v2938, %v3037
  %v3104 = vadd.f32 %v2939, %v3042
  %v3105 = vadd.f32 %v2940, %v3047
  %v3106 = vadd.f32 %v2941, %v3052
  %v3107 = vadd.f32 %v2942, %v3057
  %v3108 = vadd.f32 %v2943, %v3062
  %v3109 = vadd.f32 %v2944, %v3067
  %v3110 = vadd.f32 %v2945, %v3072
  %v3111 = vadd.f32 %v2946, %v3077
  %v3112 = vadd.f32 %v2947, %v3082
  %v3113 = vadd.f32 %v2948, %v3087
  %v3114 = vadd.f32 %v2949, %v3092
  %v3115 = vadd.f32 %v2950, %v3097
  %v3116 = vld [vmem:[%s2] sm:$0x1]
  %v3118 = vlaneseq
  %v3119 = vshrl.u32 %v3118, 7
  %v3120 = vsub.s32 0, %v3119
  %v3121 = vrot.slane %v3116, %v3120
  %v3123 = vadd.f32 %v3100, %v3121
  %v3124 = vadd.f32 %v3101, %v3121
  %v3125 = vadd.f32 %v3102, %v3121
  %v3126 = vadd.f32 %v3103, %v3121
  %v3127 = vadd.f32 %v3104, %v3121
  %v3128 = vadd.f32 %v3105, %v3121
  %v3129 = vadd.f32 %v3106, %v3121
  %v3130 = vadd.f32 %v3107, %v3121
  %v3131 = vadd.f32 %v3108, %v3121
  %v3132 = vadd.f32 %v3109, %v3121
  %v3133 = vadd.f32 %v3110, %v3121
  %v3134 = vadd.f32 %v3111, %v3121
  %v3135 = vadd.f32 %v3112, %v3121
  %v3136 = vadd.f32 %v3113, %v3121
  %v3137 = vadd.f32 %v3114, %v3121
  %v3138 = vadd.f32 %v3115, %v3121
  %vm3139 = vcmask 64512
  %v3140 = vsel %vm3139, %v3123, 0.0
  %v3141 = vsel %vm3139, %v3124, 0.0
  %v3142 = vadd.f32 %v3140, %v3141
  %v3143 = vsel %vm3139, %v3125, 0.0
  %v3144 = vadd.f32 %v3142, %v3143
  %v3145 = vsel %vm3139, %v3126, 0.0
  %v3146 = vadd.f32 %v3144, %v3145
  %v3147 = vsel %vm3139, %v3127, 0.0
  %v3148 = vadd.f32 %v3146, %v3147
  %v3149 = vsel %vm3139, %v3128, 0.0
  %v3150 = vadd.f32 %v3148, %v3149
  %v3151 = vsel %vm3139, %v3129, 0.0
  %v3152 = vadd.f32 %v3150, %v3151
  %v3153 = vsel %vm3139, %v3130, 0.0
  %v3154 = vadd.f32 %v3152, %v3153
  %v3155 = vsel %vm3139, %v3131, 0.0
  %v3156 = vadd.f32 %v3154, %v3155
  %v3157 = vsel %vm3139, %v3132, 0.0
  %v3158 = vadd.f32 %v3156, %v3157
  %v3159 = vsel %vm3139, %v3133, 0.0
  %v3160 = vadd.f32 %v3158, %v3159
  %v3161 = vsel %vm3139, %v3134, 0.0
  %v3162 = vadd.f32 %v3160, %v3161
  %v3163 = vsel %vm3139, %v3135, 0.0
  %v3164 = vadd.f32 %v3162, %v3163
  %v3165 = vsel %vm3139, %v3136, 0.0
  %v3166 = vadd.f32 %v3164, %v3165
  %v3167 = vsel %vm3139, %v3137, 0.0
  %v3168 = vadd.f32 %v3166, %v3167
  %v3169 = vsel %vm3139, %v3138, 0.0
  %v3170 = vadd.f32 %v3168, %v3169
  %v3171 = vrot.slane %v3170, 4
  %v3172 = vadd.f32 %v3170, %v3171
  %v3173 = vrot.slane %v3172, 2
  %v3174 = vadd.f32 %v3172, %v3173
  %v3175 = vrot.slane %v3174, 1
  %v3176 = vadd.f32 %v3174, %v3175
  %v3177 = vrcp.pop 128.0
  %v3178 = vmul.f32 %v3176, %v3177
  %v3179 = vsub.f32 %v3123, %v3178
  %v3180 = vsub.f32 %v3124, %v3178
  %v3181 = vsub.f32 %v3125, %v3178
  %v3182 = vsub.f32 %v3126, %v3178
  %v3183 = vsub.f32 %v3127, %v3178
  %v3184 = vsub.f32 %v3128, %v3178
  %v3185 = vsub.f32 %v3129, %v3178
  %v3186 = vsub.f32 %v3130, %v3178
  %v3187 = vsub.f32 %v3131, %v3178
  %v3188 = vsub.f32 %v3132, %v3178
  %v3189 = vsub.f32 %v3133, %v3178
  %v3190 = vsub.f32 %v3134, %v3178
  %v3191 = vsub.f32 %v3135, %v3178
  %v3192 = vsub.f32 %v3136, %v3178
  %v3193 = vsub.f32 %v3137, %v3178
  %v3194 = vsub.f32 %v3138, %v3178
  %v3195 = vmul.f32 %v3179, %v3179
  %v3196 = vmul.f32 %v3180, %v3180
  %v3197 = vmul.f32 %v3181, %v3181
  %v3198 = vmul.f32 %v3182, %v3182
  %v3199 = vmul.f32 %v3183, %v3183
  %v3200 = vmul.f32 %v3184, %v3184
  %v3201 = vmul.f32 %v3185, %v3185
  %v3202 = vmul.f32 %v3186, %v3186
  %v3203 = vmul.f32 %v3187, %v3187
  %v3204 = vmul.f32 %v3188, %v3188
  %v3205 = vmul.f32 %v3189, %v3189
  %v3206 = vmul.f32 %v3190, %v3190
  %v3207 = vmul.f32 %v3191, %v3191
  %v3208 = vmul.f32 %v3192, %v3192
  %v3209 = vmul.f32 %v3193, %v3193
  %v3210 = vmul.f32 %v3194, %v3194
  %v3211 = vsel %vm3139, %v3195, 0.0
  %v3212 = vsel %vm3139, %v3196, 0.0
  %v3213 = vadd.f32 %v3211, %v3212
  %v3214 = vsel %vm3139, %v3197, 0.0
  %v3215 = vadd.f32 %v3213, %v3214
  %v3216 = vsel %vm3139, %v3198, 0.0
  %v3217 = vadd.f32 %v3215, %v3216
  %v3218 = vsel %vm3139, %v3199, 0.0
  %v3219 = vadd.f32 %v3217, %v3218
  %v3220 = vsel %vm3139, %v3200, 0.0
  %v3221 = vadd.f32 %v3219, %v3220
  %v3222 = vsel %vm3139, %v3201, 0.0
  %v3223 = vadd.f32 %v3221, %v3222
  %v3224 = vsel %vm3139, %v3202, 0.0
  %v3225 = vadd.f32 %v3223, %v3224
  %v3226 = vsel %vm3139, %v3203, 0.0
  %v3227 = vadd.f32 %v3225, %v3226
  %v3228 = vsel %vm3139, %v3204, 0.0
  %v3229 = vadd.f32 %v3227, %v3228
  %v3230 = vsel %vm3139, %v3205, 0.0
  %v3231 = vadd.f32 %v3229, %v3230
  %v3232 = vsel %vm3139, %v3206, 0.0
  %v3233 = vadd.f32 %v3231, %v3232
  %v3234 = vsel %vm3139, %v3207, 0.0
  %v3235 = vadd.f32 %v3233, %v3234
  %v3236 = vsel %vm3139, %v3208, 0.0
  %v3237 = vadd.f32 %v3235, %v3236
  %v3238 = vsel %vm3139, %v3209, 0.0
  %v3239 = vadd.f32 %v3237, %v3238
  %v3240 = vsel %vm3139, %v3210, 0.0
  %v3241 = vadd.f32 %v3239, %v3240
  %v3242 = vrot.slane %v3241, 4
  %v3243 = vadd.f32 %v3241, %v3242
  %v3244 = vrot.slane %v3243, 2
  %v3245 = vadd.f32 %v3243, %v3244
  %v3246 = vrot.slane %v3245, 1
  %v3247 = vadd.f32 %v3245, %v3246
  %v3248 = vmul.f32 %v3247, %v3177
  %v3249 = vld [vmem:[%s3] sm:$0x1]
  %v3250 = vadd.f32 %v3248, 1e-05
  %v3251 = vrsqrt.pop %v3250
  %v3252 = vmul.f32 %v3249, %v3251
  %v3253 = vld [vmem:[%s4] sm:$0x1]
  %v3254 = vmul.f32 %v3178, %v3252
  %v3255 = vsub.f32 %v3253, %v3254
  %v3257 = vlaneseq
  %v3258 = vshrl.u32 %v3257, 7
  %v3259 = vsub.s32 0, %v3258
  %v3260 = vrot.slane %v3252, %v3259
  %v3262 = vmul.f32 %v3123, %v3260
  %v3263 = vmul.f32 %v3124, %v3260
  %v3264 = vmul.f32 %v3125, %v3260
  %v3265 = vmul.f32 %v3126, %v3260
  %v3266 = vmul.f32 %v3127, %v3260
  %v3267 = vmul.f32 %v3128, %v3260
  %v3268 = vmul.f32 %v3129, %v3260
  %v3269 = vmul.f32 %v3130, %v3260
  %v3270 = vmul.f32 %v3131, %v3260
  %v3271 = vmul.f32 %v3132, %v3260
  %v3272 = vmul.f32 %v3133, %v3260
  %v3273 = vmul.f32 %v3134, %v3260
  %v3274 = vmul.f32 %v3135, %v3260
  %v3275 = vmul.f32 %v3136, %v3260
  %v3276 = vmul.f32 %v3137, %v3260
  %v3277 = vmul.f32 %v3138, %v3260
  %v3279 = vlaneseq
  %v3280 = vshrl.u32 %v3279, 7
  %v3281 = vsub.s32 0, %v3280
  %v3282 = vrot.slane %v3255, %v3281
  %v3284 = vadd.f32 %v3262, %v3282
  %v3285 = vadd.f32 %v3263, %v3282
  %v3286 = vadd.f32 %v3264, %v3282
  %v3287 = vadd.f32 %v3265, %v3282
  %v3288 = vadd.f32 %v3266, %v3282
  %v3289 = vadd.f32 %v3267, %v3282
  %v3290 = vadd.f32 %v3268, %v3282
  %v3291 = vadd.f32 %v3269, %v3282
  %v3292 = vadd.f32 %v3270, %v3282
  %v3293 = vadd.f32 %v3271, %v3282
  %v3294 = vadd.f32 %v3272, %v3282
  %v3295 = vadd.f32 %v3273, %v3282
  %v3296 = vadd.f32 %v3274, %v3282
  %v3297 = vadd.f32 %v3275, %v3282
  %v3298 = vadd.f32 %v3276, %v3282
  %v3299 = vadd.f32 %v3277, %v3282
  %v3300 = vmax.f32 %v3284, 0.0
  %v3301 = vmax.f32 %v3285, 0.0
  %v3302 = vmax.f32 %v3286, 0.0
  %v3303 = vmax.f32 %v3287, 0.0
  %v3304 = vmax.f32 %v3288, 0.0
  %v3305 = vmax.f32 %v3289, 0.0
  %v3306 = vmax.f32 %v3290, 0.0
  %v3307 = vmax.f32 %v3291, 0.0
  %v3308 = vmax.f32 %v3292, 0.0
  %v3309 = vmax.f32 %v3293, 0.0
  %v3310 = vmax.f32 %v3294, 0.0
  %v3311 = vmax.f32 %v3295, 0.0
  %v3312 = vmax.f32 %v3296, 0.0
  %v3313 = vmax.f32 %v3297, 0.0
  %v3314 = vmax.f32 %v3298, 0.0
  %v3315 = vmax.f32 %v3299, 0.0
  %v3332 = vcombine.high %v3300, %v3300
  %v3334 = vunpack.c.l.s4 1983009808
  %v3335 = vunpack.c.0.s8 %v3334
  %v3336 = vlaneseq
  %v3337 = vshrl.u32 %v3336, 7
  %v3338 = vsub.s32 %v3335, %v3337
  %v3339 = vrot.slane %v3300, %v3338
  %v3341 = vunpack.c.l.s4 1983009808
  %v3342 = vunpack.c.0.s8 %v3341
  %v3343 = vlaneseq
  %v3344 = vshrl.u32 %v3343, 7
  %v3345 = vsub.s32 %v3342, %v3344
  %v3346 = vrot.slane %v3332, %v3345
  %v3347 = vcombine.high %v3339, %v3339
  %v3348 = vcombine.high %v3346, %v3346
  %v3349 = vcombine.high %v3301, %v3301
  %v3351 = vunpack.c.l.s4 1983009808
  %v3352 = vunpack.c.0.s8 %v3351
  %v3353 = vlaneseq
  %v3354 = vshrl.u32 %v3353, 7
  %v3355 = vsub.s32 %v3352, %v3354
  %v3356 = vrot.slane %v3301, %v3355
  %v3358 = vunpack.c.l.s4 1983009808
  %v3359 = vunpack.c.0.s8 %v3358
  %v3360 = vlaneseq
  %v3361 = vshrl.u32 %v3360, 7
  %v3362 = vsub.s32 %v3359, %v3361
  %v3363 = vrot.slane %v3349, %v3362
  %v3364 = vcombine.high %v3356, %v3356
  %v3365 = vcombine.high %v3363, %v3363
  %v3366 = vcombine.high %v3302, %v3302
  %v3368 = vunpack.c.l.s4 1983009808
  %v3369 = vunpack.c.0.s8 %v3368
  %v3370 = vlaneseq
  %v3371 = vshrl.u32 %v3370, 7
  %v3372 = vsub.s32 %v3369, %v3371
  %v3373 = vrot.slane %v3302, %v3372
  %v3375 = vunpack.c.l.s4 1983009808
  %v3376 = vunpack.c.0.s8 %v3375
  %v3377 = vlaneseq
  %v3378 = vshrl.u32 %v3377, 7
  %v3379 = vsub.s32 %v3376, %v3378
  %v3380 = vrot.slane %v3366, %v3379
  %v3381 = vcombine.high %v3373, %v3373
  %v3382 = vcombine.high %v3380, %v3380
  %v3383 = vcombine.high %v3303, %v3303
  %v3385 = vunpack.c.l.s4 1983009808
  %v3386 = vunpack.c.0.s8 %v3385
  %v3387 = vlaneseq
  %v3388 = vshrl.u32 %v3387, 7
  %v3389 = vsub.s32 %v3386, %v3388
  %v3390 = vrot.slane %v3303, %v3389
  %v3392 = vunpack.c.l.s4 1983009808
  %v3393 = vunpack.c.0.s8 %v3392
  %v3394 = vlaneseq
  %v3395 = vshrl.u32 %v3394, 7
  %v3396 = vsub.s32 %v3393, %v3395
  %v3397 = vrot.slane %v3383, %v3396
  %v3398 = vcombine.high %v3390, %v3390
  %v3399 = vcombine.high %v3397, %v3397
  %v3400 = vcombine.high %v3304, %v3304
  %v3402 = vunpack.c.l.s4 1983009808
  %v3403 = vunpack.c.0.s8 %v3402
  %v3404 = vlaneseq
  %v3405 = vshrl.u32 %v3404, 7
  %v3406 = vsub.s32 %v3403, %v3405
  %v3407 = vrot.slane %v3304, %v3406
  %v3409 = vunpack.c.l.s4 1983009808
  %v3410 = vunpack.c.0.s8 %v3409
  %v3411 = vlaneseq
  %v3412 = vshrl.u32 %v3411, 7
  %v3413 = vsub.s32 %v3410, %v3412
  %v3414 = vrot.slane %v3400, %v3413
  %v3415 = vcombine.high %v3407, %v3407
  %v3416 = vcombine.high %v3414, %v3414
  %v3417 = vcombine.high %v3305, %v3305
  %v3419 = vunpack.c.l.s4 1983009808
  %v3420 = vunpack.c.0.s8 %v3419
  %v3421 = vlaneseq
  %v3422 = vshrl.u32 %v3421, 7
  %v3423 = vsub.s32 %v3420, %v3422
  %v3424 = vrot.slane %v3305, %v3423
  %v3426 = vunpack.c.l.s4 1983009808
  %v3427 = vunpack.c.0.s8 %v3426
  %v3428 = vlaneseq
  %v3429 = vshrl.u32 %v3428, 7
  %v3430 = vsub.s32 %v3427, %v3429
  %v3431 = vrot.slane %v3417, %v3430
  %v3432 = vcombine.high %v3424, %v3424
  %v3433 = vcombine.high %v3431, %v3431
  %v3434 = vcombine.high %v3306, %v3306
  %v3436 = vunpack.c.l.s4 1983009808
  %v3437 = vunpack.c.0.s8 %v3436
  %v3438 = vlaneseq
  %v3439 = vshrl.u32 %v3438, 7
  %v3440 = vsub.s32 %v3437, %v3439
  %v3441 = vrot.slane %v3306, %v3440
  %v3443 = vunpack.c.l.s4 1983009808
  %v3444 = vunpack.c.0.s8 %v3443
  %v3445 = vlaneseq
  %v3446 = vshrl.u32 %v3445, 7
  %v3447 = vsub.s32 %v3444, %v3446
  %v3448 = vrot.slane %v3434, %v3447
  %v3449 = vcombine.high %v3441, %v3441
  %v3450 = vcombine.high %v3448, %v3448
  %v3451 = vcombine.high %v3307, %v3307
  %v3453 = vunpack.c.l.s4 1983009808
  %v3454 = vunpack.c.0.s8 %v3453
  %v3455 = vlaneseq
  %v3456 = vshrl.u32 %v3455, 7
  %v3457 = vsub.s32 %v3454, %v3456
  %v3458 = vrot.slane %v3307, %v3457
  %v3460 = vunpack.c.l.s4 1983009808
  %v3461 = vunpack.c.0.s8 %v3460
  %v3462 = vlaneseq
  %v3463 = vshrl.u32 %v3462, 7
  %v3464 = vsub.s32 %v3461, %v3463
  %v3465 = vrot.slane %v3451, %v3464
  %v3466 = vcombine.high %v3458, %v3458
  %v3467 = vcombine.high %v3465, %v3465
  %v3468 = vcombine.high %v3308, %v3308
  %v3470 = vunpack.c.l.s4 1983009808
  %v3471 = vunpack.c.0.s8 %v3470
  %v3472 = vlaneseq
  %v3473 = vshrl.u32 %v3472, 7
  %v3474 = vsub.s32 %v3471, %v3473
  %v3475 = vrot.slane %v3308, %v3474
  %v3477 = vunpack.c.l.s4 1983009808
  %v3478 = vunpack.c.0.s8 %v3477
  %v3479 = vlaneseq
  %v3480 = vshrl.u32 %v3479, 7
  %v3481 = vsub.s32 %v3478, %v3480
  %v3482 = vrot.slane %v3468, %v3481
  %v3483 = vcombine.high %v3475, %v3475
  %v3484 = vcombine.high %v3482, %v3482
  %v3485 = vcombine.high %v3309, %v3309
  %v3487 = vunpack.c.l.s4 1983009808
  %v3488 = vunpack.c.0.s8 %v3487
  %v3489 = vlaneseq
  %v3490 = vshrl.u32 %v3489, 7
  %v3491 = vsub.s32 %v3488, %v3490
  %v3492 = vrot.slane %v3309, %v3491
  %v3494 = vunpack.c.l.s4 1983009808
  %v3495 = vunpack.c.0.s8 %v3494
  %v3496 = vlaneseq
  %v3497 = vshrl.u32 %v3496, 7
  %v3498 = vsub.s32 %v3495, %v3497
  %v3499 = vrot.slane %v3485, %v3498
  %v3500 = vcombine.high %v3492, %v3492
  %v3501 = vcombine.high %v3499, %v3499
  %v3502 = vcombine.high %v3310, %v3310
  %v3504 = vunpack.c.l.s4 1983009808
  %v3505 = vunpack.c.0.s8 %v3504
  %v3506 = vlaneseq
  %v3507 = vshrl.u32 %v3506, 7
  %v3508 = vsub.s32 %v3505, %v3507
  %v3509 = vrot.slane %v3310, %v3508
  %v3511 = vunpack.c.l.s4 1983009808
  %v3512 = vunpack.c.0.s8 %v3511
  %v3513 = vlaneseq
  %v3514 = vshrl.u32 %v3513, 7
  %v3515 = vsub.s32 %v3512, %v3514
  %v3516 = vrot.slane %v3502, %v3515
  %v3517 = vcombine.high %v3509, %v3509
  %v3518 = vcombine.high %v3516, %v3516
  %v3519 = vcombine.high %v3311, %v3311
  %v3521 = vunpack.c.l.s4 1983009808
  %v3522 = vunpack.c.0.s8 %v3521
  %v3523 = vlaneseq
  %v3524 = vshrl.u32 %v3523, 7
  %v3525 = vsub.s32 %v3522, %v3524
  %v3526 = vrot.slane %v3311, %v3525
  %v3528 = vunpack.c.l.s4 1983009808
  %v3529 = vunpack.c.0.s8 %v3528
  %v3530 = vlaneseq
  %v3531 = vshrl.u32 %v3530, 7
  %v3532 = vsub.s32 %v3529, %v3531
  %v3533 = vrot.slane %v3519, %v3532
  %v3534 = vcombine.high %v3526, %v3526
  %v3535 = vcombine.high %v3533, %v3533
  %v3536 = vcombine.high %v3312, %v3312
  %v3538 = vunpack.c.l.s4 1983009808
  %v3539 = vunpack.c.0.s8 %v3538
  %v3540 = vlaneseq
  %v3541 = vshrl.u32 %v3540, 7
  %v3542 = vsub.s32 %v3539, %v3541
  %v3543 = vrot.slane %v3312, %v3542
  %v3545 = vunpack.c.l.s4 1983009808
  %v3546 = vunpack.c.0.s8 %v3545
  %v3547 = vlaneseq
  %v3548 = vshrl.u32 %v3547, 7
  %v3549 = vsub.s32 %v3546, %v3548
  %v3550 = vrot.slane %v3536, %v3549
  %v3551 = vcombine.high %v3543, %v3543
  %v3552 = vcombine.high %v3550, %v3550
  %v3553 = vcombine.high %v3313, %v3313
  %v3555 = vunpack.c.l.s4 1983009808
  %v3556 = vunpack.c.0.s8 %v3555
  %v3557 = vlaneseq
  %v3558 = vshrl.u32 %v3557, 7
  %v3559 = vsub.s32 %v3556, %v3558
  %v3560 = vrot.slane %v3313, %v3559
  %v3562 = vunpack.c.l.s4 1983009808
  %v3563 = vunpack.c.0.s8 %v3562
  %v3564 = vlaneseq
  %v3565 = vshrl.u32 %v3564, 7
  %v3566 = vsub.s32 %v3563, %v3565
  %v3567 = vrot.slane %v3553, %v3566
  %v3568 = vcombine.high %v3560, %v3560
  %v3569 = vcombine.high %v3567, %v3567
  %v3570 = vcombine.high %v3314, %v3314
  %v3572 = vunpack.c.l.s4 1983009808
  %v3573 = vunpack.c.0.s8 %v3572
  %v3574 = vlaneseq
  %v3575 = vshrl.u32 %v3574, 7
  %v3576 = vsub.s32 %v3573, %v3575
  %v3577 = vrot.slane %v3314, %v3576
  %v3579 = vunpack.c.l.s4 1983009808
  %v3580 = vunpack.c.0.s8 %v3579
  %v3581 = vlaneseq
  %v3582 = vshrl.u32 %v3581, 7
  %v3583 = vsub.s32 %v3580, %v3582
  %v3584 = vrot.slane %v3570, %v3583
  %v3585 = vcombine.high %v3577, %v3577
  %v3586 = vcombine.high %v3584, %v3584
  %v3587 = vcombine.high %v3315, %v3315
  %v3589 = vunpack.c.l.s4 1983009808
  %v3590 = vunpack.c.0.s8 %v3589
  %v3591 = vlaneseq
  %v3592 = vshrl.u32 %v3591, 7
  %v3593 = vsub.s32 %v3590, %v3592
  %v3594 = vrot.slane %v3315, %v3593
  %v3596 = vunpack.c.l.s4 1983009808
  %v3597 = vunpack.c.0.s8 %v3596
  %v3598 = vlaneseq
  %v3599 = vshrl.u32 %v3598, 7
  %v3600 = vsub.s32 %v3597, %v3599
  %v3601 = vrot.slane %v3587, %v3600
  %v3602 = vcombine.high %v3594, %v3594
  %v3603 = vcombine.high %v3601, %v3601
  %v3604 = vld [vmem:[%s5] sm:$0xff]
  %v3605 = vld [vmem:[%s5 + $0x8] sm:$0xff]
  %v3606 = vcombine.low %v3339, %v3347
  %v3607 = vcombine.low %v3346, %v3348
  %v3609 = vunpack.c.l.s4 1983009808
  %v3610 = vunpack.c.0.s8 %v3609
  %v3611 = vlaneseq
  %v3612 = vshrl.u32 %v3611, 7
  %v3613 = vsub.s32 %v3610, %v3612
  %v3614 = vrot.slane %v3606, %v3613
  %v3616 = vunpack.c.l.s4 1983009808
  %v3617 = vunpack.c.0.s8 %v3616
  %v3618 = vlaneseq
  %v3619 = vshrl.u32 %v3618, 7
  %v3620 = vsub.s32 %v3617, %v3619
  %v3621 = vrot.slane %v3607, %v3620
  %v3622 = vcombine.low %v3614, %v3621
  %v3623 = vcombine.low %v3356, %v3364
  %v3624 = vcombine.low %v3363, %v3365
  %v3626 = vunpack.c.l.s4 1983009808
  %v3627 = vunpack.c.0.s8 %v3626
  %v3628 = vlaneseq
  %v3629 = vshrl.u32 %v3628, 7
  %v3630 = vsub.s32 %v3627, %v3629
  %v3631 = vrot.slane %v3623, %v3630
  %v3633 = vunpack.c.l.s4 1983009808
  %v3634 = vunpack.c.0.s8 %v3633
  %v3635 = vlaneseq
  %v3636 = vshrl.u32 %v3635, 7
  %v3637 = vsub.s32 %v3634, %v3636
  %v3638 = vrot.slane %v3624, %v3637
  %v3639 = vcombine.low %v3631, %v3638
  %v3640 = vcombine.low %v3373, %v3381
  %v3641 = vcombine.low %v3380, %v3382
  %v3643 = vunpack.c.l.s4 1983009808
  %v3644 = vunpack.c.0.s8 %v3643
  %v3645 = vlaneseq
  %v3646 = vshrl.u32 %v3645, 7
  %v3647 = vsub.s32 %v3644, %v3646
  %v3648 = vrot.slane %v3640, %v3647
  %v3650 = vunpack.c.l.s4 1983009808
  %v3651 = vunpack.c.0.s8 %v3650
  %v3652 = vlaneseq
  %v3653 = vshrl.u32 %v3652, 7
  %v3654 = vsub.s32 %v3651, %v3653
  %v3655 = vrot.slane %v3641, %v3654
  %v3656 = vcombine.low %v3648, %v3655
  %v3657 = vcombine.low %v3390, %v3398
  %v3658 = vcombine.low %v3397, %v3399
  %v3660 = vunpack.c.l.s4 1983009808
  %v3661 = vunpack.c.0.s8 %v3660
  %v3662 = vlaneseq
  %v3663 = vshrl.u32 %v3662, 7
  %v3664 = vsub.s32 %v3661, %v3663
  %v3665 = vrot.slane %v3657, %v3664
  %v3667 = vunpack.c.l.s4 1983009808
  %v3668 = vunpack.c.0.s8 %v3667
  %v3669 = vlaneseq
  %v3670 = vshrl.u32 %v3669, 7
  %v3671 = vsub.s32 %v3668, %v3670
  %v3672 = vrot.slane %v3658, %v3671
  %v3673 = vcombine.low %v3665, %v3672
  %v3674 = vcombine.low %v3407, %v3415
  %v3675 = vcombine.low %v3414, %v3416
  %v3677 = vunpack.c.l.s4 1983009808
  %v3678 = vunpack.c.0.s8 %v3677
  %v3679 = vlaneseq
  %v3680 = vshrl.u32 %v3679, 7
  %v3681 = vsub.s32 %v3678, %v3680
  %v3682 = vrot.slane %v3674, %v3681
  %v3684 = vunpack.c.l.s4 1983009808
  %v3685 = vunpack.c.0.s8 %v3684
  %v3686 = vlaneseq
  %v3687 = vshrl.u32 %v3686, 7
  %v3688 = vsub.s32 %v3685, %v3687
  %v3689 = vrot.slane %v3675, %v3688
  %v3690 = vcombine.low %v3682, %v3689
  %v3691 = vcombine.low %v3424, %v3432
  %v3692 = vcombine.low %v3431, %v3433
  %v3694 = vunpack.c.l.s4 1983009808
  %v3695 = vunpack.c.0.s8 %v3694
  %v3696 = vlaneseq
  %v3697 = vshrl.u32 %v3696, 7
  %v3698 = vsub.s32 %v3695, %v3697
  %v3699 = vrot.slane %v3691, %v3698
  %v3701 = vunpack.c.l.s4 1983009808
  %v3702 = vunpack.c.0.s8 %v3701
  %v3703 = vlaneseq
  %v3704 = vshrl.u32 %v3703, 7
  %v3705 = vsub.s32 %v3702, %v3704
  %v3706 = vrot.slane %v3692, %v3705
  %v3707 = vcombine.low %v3699, %v3706
  %v3708 = vcombine.low %v3441, %v3449
  %v3709 = vcombine.low %v3448, %v3450
  %v3711 = vunpack.c.l.s4 1983009808
  %v3712 = vunpack.c.0.s8 %v3711
  %v3713 = vlaneseq
  %v3714 = vshrl.u32 %v3713, 7
  %v3715 = vsub.s32 %v3712, %v3714
  %v3716 = vrot.slane %v3708, %v3715
  %v3718 = vunpack.c.l.s4 1983009808
  %v3719 = vunpack.c.0.s8 %v3718
  %v3720 = vlaneseq
  %v3721 = vshrl.u32 %v3720, 7
  %v3722 = vsub.s32 %v3719, %v3721
  %v3723 = vrot.slane %v3709, %v3722
  %v3724 = vcombine.low %v3716, %v3723
  %v3725 = vcombine.low %v3458, %v3466
  %v3726 = vcombine.low %v3465, %v3467
  %v3728 = vunpack.c.l.s4 1983009808
  %v3729 = vunpack.c.0.s8 %v3728
  %v3730 = vlaneseq
  %v3731 = vshrl.u32 %v3730, 7
  %v3732 = vsub.s32 %v3729, %v3731
  %v3733 = vrot.slane %v3725, %v3732
  %v3735 = vunpack.c.l.s4 1983009808
  %v3736 = vunpack.c.0.s8 %v3735
  %v3737 = vlaneseq
  %v3738 = vshrl.u32 %v3737, 7
  %v3739 = vsub.s32 %v3736, %v3738
  %v3740 = vrot.slane %v3726, %v3739
  %v3741 = vcombine.low %v3733, %v3740
  %v3742 = vcombine.low %v3475, %v3483
  %v3743 = vcombine.low %v3482, %v3484
  %v3745 = vunpack.c.l.s4 1983009808
  %v3746 = vunpack.c.0.s8 %v3745
  %v3747 = vlaneseq
  %v3748 = vshrl.u32 %v3747, 7
  %v3749 = vsub.s32 %v3746, %v3748
  %v3750 = vrot.slane %v3742, %v3749
  %v3752 = vunpack.c.l.s4 1983009808
  %v3753 = vunpack.c.0.s8 %v3752
  %v3754 = vlaneseq
  %v3755 = vshrl.u32 %v3754, 7
  %v3756 = vsub.s32 %v3753, %v3755
  %v3757 = vrot.slane %v3743, %v3756
  %v3758 = vcombine.low %v3750, %v3757
  %v3759 = vcombine.low %v3492, %v3500
  %v3760 = vcombine.low %v3499, %v3501
  %v3762 = vunpack.c.l.s4 1983009808
  %v3763 = vunpack.c.0.s8 %v3762
  %v3764 = vlaneseq
  %v3765 = vshrl.u32 %v3764, 7
  %v3766 = vsub.s32 %v3763, %v3765
  %v3767 = vrot.slane %v3759, %v3766
  %v3769 = vunpack.c.l.s4 1983009808
  %v3770 = vunpack.c.0.s8 %v3769
  %v3771 = vlaneseq
  %v3772 = vshrl.u32 %v3771, 7
  %v3773 = vsub.s32 %v3770, %v3772
  %v3774 = vrot.slane %v3760, %v3773
  %v3775 = vcombine.low %v3767, %v3774
  %v3776 = vcombine.low %v3509, %v3517
  %v3777 = vcombine.low %v3516, %v3518
  %v3779 = vunpack.c.l.s4 1983009808
  %v3780 = vunpack.c.0.s8 %v3779
  %v3781 = vlaneseq
  %v3782 = vshrl.u32 %v3781, 7
  %v3783 = vsub.s32 %v3780, %v3782
  %v3784 = vrot.slane %v3776, %v3783
  %v3786 = vunpack.c.l.s4 1983009808
  %v3787 = vunpack.c.0.s8 %v3786
  %v3788 = vlaneseq
  %v3789 = vshrl.u32 %v3788, 7
  %v3790 = vsub.s32 %v3787, %v3789
  %v3791 = vrot.slane %v3777, %v3790
  %v3792 = vcombine.low %v3784, %v3791
  %v3793 = vcombine.low %v3526, %v3534
  %v3794 = vcombine.low %v3533, %v3535
  %v3796 = vunpack.c.l.s4 1983009808
  %v3797 = vunpack.c.0.s8 %v3796
  %v3798 = vlaneseq
  %v3799 = vshrl.u32 %v3798, 7
  %v3800 = vsub.s32 %v3797, %v3799
  %v3801 = vrot.slane %v3793, %v3800
  %v3803 = vunpack.c.l.s4 1983009808
  %v3804 = vunpack.c.0.s8 %v3803
  %v3805 = vlaneseq
  %v3806 = vshrl.u32 %v3805, 7
  %v3807 = vsub.s32 %v3804, %v3806
  %v3808 = vrot.slane %v3794, %v3807
  %v3809 = vcombine.low %v3801, %v3808
  %v3810 = vcombine.low %v3543, %v3551
  %v3811 = vcombine.low %v3550, %v3552
  %v3813 = vunpack.c.l.s4 1983009808
  %v3814 = vunpack.c.0.s8 %v3813
  %v3815 = vlaneseq
  %v3816 = vshrl.u32 %v3815, 7
  %v3817 = vsub.s32 %v3814, %v3816
  %v3818 = vrot.slane %v3810, %v3817
  %v3820 = vunpack.c.l.s4 1983009808
  %v3821 = vunpack.c.0.s8 %v3820
  %v3822 = vlaneseq
  %v3823 = vshrl.u32 %v3822, 7
  %v3824 = vsub.s32 %v3821, %v3823
  %v3825 = vrot.slane %v3811, %v3824
  %v3826 = vcombine.low %v3818, %v3825
  %v3827 = vcombine.low %v3560, %v3568
  %v3828 = vcombine.low %v3567, %v3569
  %v3830 = vunpack.c.l.s4 1983009808
  %v3831 = vunpack.c.0.s8 %v3830
  %v3832 = vlaneseq
  %v3833 = vshrl.u32 %v3832, 7
  %v3834 = vsub.s32 %v3831, %v3833
  %v3835 = vrot.slane %v3827, %v3834
  %v3837 = vunpack.c.l.s4 1983009808
  %v3838 = vunpack.c.0.s8 %v3837
  %v3839 = vlaneseq
  %v3840 = vshrl.u32 %v3839, 7
  %v3841 = vsub.s32 %v3838, %v3840
  %v3842 = vrot.slane %v3828, %v3841
  %v3843 = vcombine.low %v3835, %v3842
  %v3844 = vsel %vm3139, %v932, 0
  %v3846 = vsel %vm3139, %v3622, 0
  %v3848 = vsel %vm3139, %v3639, 0
  %v3850 = vsel %vm3139, %v3656, 0
  %v3852 = vsel %vm3139, %v3673, 0
  %v3854 = vsel %vm3139, %v3690, 0
  %v3856 = vsel %vm3139, %v3707, 0
  %v3858 = vsel %vm3139, %v3724, 0
  %v3860 = vsel %vm3139, %v3741, 0
  %v3862 = vsel %vm3139, %v3758, 0
  %v3864 = vsel %vm3139, %v3775, 0
  %v3866 = vsel %vm3139, %v3792, 0
  %v3868 = vsel %vm3139, %v3809, 0
  %v3870 = vsel %vm3139, %v3826, 0
  %v3872 = vsel %vm3139, %v3843, 0
  %3874 = vmatprep.subr.mxu0 0.0
  %3875 = vmatpush1.msra.mxu0 %v3605
  %3876 = vmatprep.subr.mxu0 0.0
  %3877 = vmatpush1.msra.mxu0 0.0
  %3878 = vmatprep.subr.mxu0 0.0
  %3879 = vmatpush1.msra.mxu0 0.0
  %3880 = vmatprep.subr.mxu0 0.0
  %3881 = vmatpush1.msra.mxu0 0.0
  %3882 = vmatprep.subr.mxu0 0.0
  %3883 = vmatpush1.msra.mxu0 0.0
  %3884 = vmatprep.subr.mxu0 0.0
  %3885 = vmatpush1.msra.mxu0 0.0
  %3886 = vmatprep.subr.mxu0 0.0
  %3887 = vmatpush1.msra.mxu0 0.0
  %3888 = vmatprep.subr.mxu0 0.0
  %3889 = vmatpush1.msra.mxu0 0.0
  %3890 = vmatprep.subr.mxu0 0.0
  %3891 = vmatpush1.msra.mxu0 0.0
  %3892 = vmatprep.subr.mxu0 0.0
  %3893 = vmatpush1.msra.mxu0 0.0
  %3894 = vmatprep.subr.mxu0 0.0
  %3895 = vmatpush1.msra.mxu0 0.0
  %3896 = vmatprep.subr.mxu0 0.0
  %3897 = vmatpush1.msra.mxu0 0.0
  %3898 = vmatprep.subr.mxu0 0.0
  %3899 = vmatpush1.msra.mxu0 0.0
  %3900 = vmatprep.subr.mxu0 0.0
  %3901 = vmatpush1.msra.mxu0 0.0
  %3902 = vmatprep.subr.mxu0 0.0
  %3903 = vmatpush1.msra.mxu0 0.0
  %3904 = vmatprep.subr.mxu0 0.0
  %3905 = vmatpush1.msra.mxu0 0.0
  %3906 = vmatprep.subr.mxu0 0.0
  %3907 = vmatpush1.msra.mxu0 0.0
  %3908 = vmatprep.subr.mxu0 0.0
  %3909 = vmatpush1.msra.mxu0 0.0
  %3910 = vmatprep.subr.mxu0 0.0
  %3911 = vmatpush1.msra.mxu0 0.0
  %3912 = vmatprep.subr.mxu0 0.0
  %3913 = vmatpush1.msra.mxu0 0.0
  %3914 = vmatprep.subr.mxu0 0.0
  %3915 = vmatpush1.msra.mxu0 0.0
  %3916 = vmatprep.subr.mxu0 0.0
  %3917 = vmatpush1.msra.mxu0 0.0
  %3918 = vmatprep.subr.mxu0 0.0
  %3919 = vmatpush1.msra.mxu0 0.0
  %3920 = vmatprep.subr.mxu0 0.0
  %3921 = vmatpush1.msra.mxu0 0.0
  %3922 = vmatprep.subr.mxu0 0.0
  %3923 = vmatpush1.msra.mxu0 0.0
  %3924 = vmatprep.subr.mxu0 0.0
  %3925 = vmatpush1.msra.mxu0 0.0
  %3926 = vmatprep.subr.mxu0 0.0
  %3927 = vmatpush1.msra.mxu0 0.0
  %3928 = vmatprep.subr.mxu0 0.0
  %3929 = vmatpush1.msra.mxu0 0.0
  %3930 = vmatprep.subr.mxu0 0.0
  %3931 = vmatpush1.msra.mxu0 0.0
  %3932 = vmatprep.subr.mxu0 0.0
  %3933 = vmatpush1.msra.mxu0 0.0
  %3934 = vmatprep.subr.mxu0 0.0
  %3935 = vmatpush1.msra.mxu0 0.0
  %3936 = vmatprep.subr.mxu0 0.0
  %3937 = vmatpush1.msra.mxu0 0.0
  %3938 = vmatprep.mubr.f32.mxu0 0.0
  %3939 = vmatmul.mubr.f32.gmra.mrb[0].mxu0 %v3844
  %v3940 = vpop.f32.mrb[0].mxu0
  %v3941 = vadd.f32 0.0, %v3940
  %v3942 = vpop.f32.mrb[0].mxu0
  %3943 = vmatprep.mubr.f32.mxu0 0.0
  %3944 = vmatmul.mubr.f32.gmra.mrb[0].mxu0 %v3844
  %v3945 = vpop.f32.mrb[0].mxu0
  %v3946 = vadd.f32 0.0, %v3945
  %v3947 = vpop.f32.mrb[0].mxu0
  %3948 = vmatprep.mubr.f32.mxu0 0.0
  %3949 = vmatmul.mubr.f32.gmra.mrb[0].mxu0 %v3846
  %v3950 = vpop.f32.mrb[0].mxu0
  %v3951 = vadd.f32 0.0, %v3950
  %v3952 = vpop.f32.mrb[0].mxu0
  %3953 = vmatprep.mubr.f32.mxu0 0.0
  %3954 = vmatmul.mubr.f32.gmra.mrb[0].mxu0 %v3848
  %v3955 = vpop.f32.mrb[0].mxu0
  %v3956 = vadd.f32 0.0, %v3955
  %v3957 = vpop.f32.mrb[0].mxu0
  %3958 = vmatprep.mubr.f32.mxu0 0.0
  %3959 = vmatmul.mubr.f32.gmra.mrb[0].mxu0 %v3850
  %v3960 = vpop.f32.mrb[0].mxu0
  %v3961 = vadd.f32 0.0, %v3960
  %v3962 = vpop.f32.mrb[0].mxu0
  %3963 = vmatprep.mubr.f32.mxu0 0.0
  %3964 = vmatmul.mubr.f32.gmra.mrb[0].mxu0 %v3852
  %v3965 = vpop.f32.mrb[0].mxu0
  %v3966 = vadd.f32 0.0, %v3965
  %v3967 = vpop.f32.mrb[0].mxu0
  %3968 = vmatprep.mubr.f32.mxu0 0.0
  %3969 = vmatmul.mubr.f32.gmra.mrb[0].mxu0 %v3854
  %v3970 = vpop.f32.mrb[0].mxu0
  %v3971 = vadd.f32 0.0, %v3970
  %v3972 = vpop.f32.mrb[0].mxu0
  %3973 = vmatprep.mubr.f32.mxu0 0.0
  %3974 = vmatmul.mubr.f32.gmra.mrb[0].mxu0 %v3856
  %v3975 = vpop.f32.mrb[0].mxu0
  %v3976 = vadd.f32 0.0, %v3975
  %v3977 = vpop.f32.mrb[0].mxu0
  %3978 = vmatprep.mubr.f32.mxu0 0.0
  %3979 = vmatmul.mubr.f32.gmra.mrb[0].mxu0 %v3858
  %v3980 = vpop.f32.mrb[0].mxu0
  %v3981 = vadd.f32 0.0, %v3980
  %v3982 = vpop.f32.mrb[0].mxu0
  %3983 = vmatprep.mubr.f32.mxu0 0.0
  %3984 = vmatmul.mubr.f32.gmra.mrb[0].mxu0 %v3860
  %v3985 = vpop.f32.mrb[0].mxu0
  %v3986 = vadd.f32 0.0, %v3985
  %v3987 = vpop.f32.mrb[0].mxu0
  %3988 = vmatprep.mubr.f32.mxu0 0.0
  %3989 = vmatmul.mubr.f32.gmra.mrb[0].mxu0 %v3862
  %v3990 = vpop.f32.mrb[0].mxu0
  %v3991 = vadd.f32 0.0, %v3990
  %v3992 = vpop.f32.mrb[0].mxu0
  %3993 = vmatprep.mubr.f32.mxu0 0.0
  %3994 = vmatmul.mubr.f32.gmra.mrb[0].mxu0 %v3864
  %v3995 = vpop.f32.mrb[0].mxu0
  %v3996 = vadd.f32 0.0, %v3995
  %v3997 = vpop.f32.mrb[0].mxu0
  %3998 = vmatprep.mubr.f32.mxu0 0.0
  %3999 = vmatmul.mubr.f32.gmra.mrb[0].mxu0 %v3866
  %v4000 = vpop.f32.mrb[0].mxu0
  %v4001 = vadd.f32 0.0, %v4000
  %v4002 = vpop.f32.mrb[0].mxu0
  %4003 = vmatprep.mubr.f32.mxu0 0.0
  %4004 = vmatmul.mubr.f32.gmra.mrb[0].mxu0 %v3868
  %v4005 = vpop.f32.mrb[0].mxu0
  %v4006 = vadd.f32 0.0, %v4005
  %v4007 = vpop.f32.mrb[0].mxu0
  %4008 = vmatprep.mubr.f32.mxu0 0.0
  %4009 = vmatmul.mubr.f32.gmra.mrb[0].mxu0 %v3870
  %v4010 = vpop.f32.mrb[0].mxu0
  %v4011 = vadd.f32 0.0, %v4010
  %v4012 = vpop.f32.mrb[0].mxu0
  %4013 = vmatprep.mubr.f32.mxu0 0.0
  %4014 = vmatmul.mubr.f32.gmra.mrb[0].mxu0 %v3872
  %v4015 = vpop.f32.mrb[0].mxu0
  %v4016 = vadd.f32 0.0, %v4015
  %v4017 = vpop.f32.mrb[0].mxu0
  %4018 = vdwg.mxu0
  %v4019 = vcombine.low 0.0, %v3339
  %v4020 = vcombine.low %v3347, %v3346
  %v4022 = vunpack.c.l.s4 1983009808
  %v4023 = vunpack.c.0.s8 %v4022
  %v4024 = vlaneseq
  %v4025 = vshrl.u32 %v4024, 7
  %v4026 = vsub.s32 %v4023, %v4025
  %v4027 = vrot.slane %v4019, %v4026
  %v4029 = vunpack.c.l.s4 1983009808
  %v4030 = vunpack.c.0.s8 %v4029
  %v4031 = vlaneseq
  %v4032 = vshrl.u32 %v4031, 7
  %v4033 = vsub.s32 %v4030, %v4032
  %v4034 = vrot.slane %v4020, %v4033
  %v4035 = vcombine.low %v4027, %v4034
  %v4036 = vcombine.low %v3348, %v3356
  %v4037 = vcombine.low %v3364, %v3363
  %v4039 = vunpack.c.l.s4 1983009808
  %v4040 = vunpack.c.0.s8 %v4039
  %v4041 = vlaneseq
  %v4042 = vshrl.u32 %v4041, 7
  %v4043 = vsub.s32 %v4040, %v4042
  %v4044 = vrot.slane %v4036, %v4043
  %v4046 = vunpack.c.l.s4 1983009808
  %v4047 = vunpack.c.0.s8 %v4046
  %v4048 = vlaneseq
  %v4049 = vshrl.u32 %v4048, 7
  %v4050 = vsub.s32 %v4047, %v4049
  %v4051 = vrot.slane %v4037, %v4050
  %v4052 = vcombine.low %v4044, %v4051
  %v4053 = vcombine.low 0.0, %v3373
  %v4054 = vcombine.low %v3381, %v3380
  %v4056 = vunpack.c.l.s4 1983009808
  %v4057 = vunpack.c.0.s8 %v4056
  %v4058 = vlaneseq
  %v4059 = vshrl.u32 %v4058, 7
  %v4060 = vsub.s32 %v4057, %v4059
  %v4061 = vrot.slane %v4053, %v4060
  %v4063 = vunpack.c.l.s4 1983009808
  %v4064 = vunpack.c.0.s8 %v4063
  %v4065 = vlaneseq
  %v4066 = vshrl.u32 %v4065, 7
  %v4067 = vsub.s32 %v4064, %v4066
  %v4068 = vrot.slane %v4054, %v4067
  %v4069 = vcombine.low %v4061, %v4068
  %v4070 = vcombine.low %v3382, %v3390
  %v4071 = vcombine.low %v3398, %v3397
  %v4073 = vunpack.c.l.s4 1983009808
  %v4074 = vunpack.c.0.s8 %v4073
  %v4075 = vlaneseq
  %v4076 = vshrl.u32 %v4075, 7
  %v4077 = vsub.s32 %v4074, %v4076
  %v4078 = vrot.slane %v4070, %v4077
  %v4080 = vunpack.c.l.s4 1983009808
  %v4081 = vunpack.c.0.s8 %v4080
  %v4082 = vlaneseq
  %v4083 = vshrl.u32 %v4082, 7
  %v4084 = vsub.s32 %v4081, %v4083
  %v4085 = vrot.slane %v4071, %v4084
  %v4086 = vcombine.low %v4078, %v4085
  %v4087 = vcombine.low 0.0, %v3407
  %v4088 = vcombine.low %v3415, %v3414
  %v4090 = vunpack.c.l.s4 1983009808
  %v4091 = vunpack.c.0.s8 %v4090
  %v4092 = vlaneseq
  %v4093 = vshrl.u32 %v4092, 7
  %v4094 = vsub.s32 %v4091, %v4093
  %v4095 = vrot.slane %v4087, %v4094
  %v4097 = vunpack.c.l.s4 1983009808
  %v4098 = vunpack.c.0.s8 %v4097
  %v4099 = vlaneseq
  %v4100 = vshrl.u32 %v4099, 7
  %v4101 = vsub.s32 %v4098, %v4100
  %v4102 = vrot.slane %v4088, %v4101
  %v4103 = vcombine.low %v4095, %v4102
  %v4104 = vcombine.low %v3416, %v3424
  %v4105 = vcombine.low %v3432, %v3431
  %v4107 = vunpack.c.l.s4 1983009808
  %v4108 = vunpack.c.0.s8 %v4107
  %v4109 = vlaneseq
  %v4110 = vshrl.u32 %v4109, 7
  %v4111 = vsub.s32 %v4108, %v4110
  %v4112 = vrot.slane %v4104, %v4111
  %v4114 = vunpack.c.l.s4 1983009808
  %v4115 = vunpack.c.0.s8 %v4114
  %v4116 = vlaneseq
  %v4117 = vshrl.u32 %v4116, 7
  %v4118 = vsub.s32 %v4115, %v4117
  %v4119 = vrot.slane %v4105, %v4118
  %v4120 = vcombine.low %v4112, %v4119
  %v4121 = vcombine.low 0.0, %v3441
  %v4122 = vcombine.low %v3449, %v3448
  %v4124 = vunpack.c.l.s4 1983009808
  %v4125 = vunpack.c.0.s8 %v4124
  %v4126 = vlaneseq
  %v4127 = vshrl.u32 %v4126, 7
  %v4128 = vsub.s32 %v4125, %v4127
  %v4129 = vrot.slane %v4121, %v4128
  %v4131 = vunpack.c.l.s4 1983009808
  %v4132 = vunpack.c.0.s8 %v4131
  %v4133 = vlaneseq
  %v4134 = vshrl.u32 %v4133, 7
  %v4135 = vsub.s32 %v4132, %v4134
  %v4136 = vrot.slane %v4122, %v4135
  %v4137 = vcombine.low %v4129, %v4136
  %v4138 = vcombine.low %v3450, %v3458
  %v4139 = vcombine.low %v3466, %v3465
  %v4141 = vunpack.c.l.s4 1983009808
  %v4142 = vunpack.c.0.s8 %v4141
  %v4143 = vlaneseq
  %v4144 = vshrl.u32 %v4143, 7
  %v4145 = vsub.s32 %v4142, %v4144
  %v4146 = vrot.slane %v4138, %v4145
  %v4148 = vunpack.c.l.s4 1983009808
  %v4149 = vunpack.c.0.s8 %v4148
  %v4150 = vlaneseq
  %v4151 = vshrl.u32 %v4150, 7
  %v4152 = vsub.s32 %v4149, %v4151
  %v4153 = vrot.slane %v4139, %v4152
  %v4154 = vcombine.low %v4146, %v4153
  %v4155 = vcombine.low 0.0, %v3475
  %v4156 = vcombine.low %v3483, %v3482
  %v4158 = vunpack.c.l.s4 1983009808
  %v4159 = vunpack.c.0.s8 %v4158
  %v4160 = vlaneseq
  %v4161 = vshrl.u32 %v4160, 7
  %v4162 = vsub.s32 %v4159, %v4161
  %v4163 = vrot.slane %v4155, %v4162
  %v4165 = vunpack.c.l.s4 1983009808
  %v4166 = vunpack.c.0.s8 %v4165
  %v4167 = vlaneseq
  %v4168 = vshrl.u32 %v4167, 7
  %v4169 = vsub.s32 %v4166, %v4168
  %v4170 = vrot.slane %v4156, %v4169
  %v4171 = vcombine.low %v4163, %v4170
  %v4172 = vcombine.low %v3484, %v3492
  %v4173 = vcombine.low %v3500, %v3499
  %v4175 = vunpack.c.l.s4 1983009808
  %v4176 = vunpack.c.0.s8 %v4175
  %v4177 = vlaneseq
  %v4178 = vshrl.u32 %v4177, 7
  %v4179 = vsub.s32 %v4176, %v4178
  %v4180 = vrot.slane %v4172, %v4179
  %v4182 = vunpack.c.l.s4 1983009808
  %v4183 = vunpack.c.0.s8 %v4182
  %v4184 = vlaneseq
  %v4185 = vshrl.u32 %v4184, 7
  %v4186 = vsub.s32 %v4183, %v4185
  %v4187 = vrot.slane %v4173, %v4186
  %v4188 = vcombine.low %v4180, %v4187
  %v4189 = vcombine.low 0.0, %v3509
  %v4190 = vcombine.low %v3517, %v3516
  %v4192 = vunpack.c.l.s4 1983009808
  %v4193 = vunpack.c.0.s8 %v4192
  %v4194 = vlaneseq
  %v4195 = vshrl.u32 %v4194, 7
  %v4196 = vsub.s32 %v4193, %v4195
  %v4197 = vrot.slane %v4189, %v4196
  %v4199 = vunpack.c.l.s4 1983009808
  %v4200 = vunpack.c.0.s8 %v4199
  %v4201 = vlaneseq
  %v4202 = vshrl.u32 %v4201, 7
  %v4203 = vsub.s32 %v4200, %v4202
  %v4204 = vrot.slane %v4190, %v4203
  %v4205 = vcombine.low %v4197, %v4204
  %v4206 = vcombine.low %v3518, %v3526
  %v4207 = vcombine.low %v3534, %v3533
  %v4209 = vunpack.c.l.s4 1983009808
  %v4210 = vunpack.c.0.s8 %v4209
  %v4211 = vlaneseq
  %v4212 = vshrl.u32 %v4211, 7
  %v4213 = vsub.s32 %v4210, %v4212
  %v4214 = vrot.slane %v4206, %v4213
  %v4216 = vunpack.c.l.s4 1983009808
  %v4217 = vunpack.c.0.s8 %v4216
  %v4218 = vlaneseq
  %v4219 = vshrl.u32 %v4218, 7
  %v4220 = vsub.s32 %v4217, %v4219
  %v4221 = vrot.slane %v4207, %v4220
  %v4222 = vcombine.low %v4214, %v4221
  %v4223 = vcombine.low 0.0, %v3543
  %v4224 = vcombine.low %v3551, %v3550
  %v4226 = vunpack.c.l.s4 1983009808
  %v4227 = vunpack.c.0.s8 %v4226
  %v4228 = vlaneseq
  %v4229 = vshrl.u32 %v4228, 7
  %v4230 = vsub.s32 %v4227, %v4229
  %v4231 = vrot.slane %v4223, %v4230
  %v4233 = vunpack.c.l.s4 1983009808
  %v4234 = vunpack.c.0.s8 %v4233
  %v4235 = vlaneseq
  %v4236 = vshrl.u32 %v4235, 7
  %v4237 = vsub.s32 %v4234, %v4236
  %v4238 = vrot.slane %v4224, %v4237
  %v4239 = vcombine.low %v4231, %v4238
  %v4240 = vcombine.low %v3552, %v3560
  %v4241 = vcombine.low %v3568, %v3567
  %v4243 = vunpack.c.l.s4 1983009808
  %v4244 = vunpack.c.0.s8 %v4243
  %v4245 = vlaneseq
  %v4246 = vshrl.u32 %v4245, 7
  %v4247 = vsub.s32 %v4244, %v4246
  %v4248 = vrot.slane %v4240, %v4247
  %v4250 = vunpack.c.l.s4 1983009808
  %v4251 = vunpack.c.0.s8 %v4250
  %v4252 = vlaneseq
  %v4253 = vshrl.u32 %v4252, 7
  %v4254 = vsub.s32 %v4251, %v4253
  %v4255 = vrot.slane %v4241, %v4254
  %v4256 = vcombine.low %v4248, %v4255
  %v4257 = vsel %vm3139, %v4035, 0
  %v4259 = vsel %vm3139, %v4052, 0
  %v4261 = vsel %vm3139, %v4069, 0
  %v4263 = vsel %vm3139, %v4086, 0
  %v4265 = vsel %vm3139, %v4103, 0
  %v4267 = vsel %vm3139, %v4120, 0
  %v4269 = vsel %vm3139, %v4137, 0
  %v4271 = vsel %vm3139, %v4154, 0
  %v4273 = vsel %vm3139, %v4171, 0
  %v4275 = vsel %vm3139, %v4188, 0
  %v4277 = vsel %vm3139, %v4205, 0
  %v4279 = vsel %vm3139, %v4222, 0
  %v4281 = vsel %vm3139, %v4239, 0
  %v4283 = vsel %vm3139, %v4256, 0
  %4285 = vmatprep.subr.mxu0 0.0
  %4286 = vmatpush1.msra.mxu0 %v3604
  %4287 = vmatprep.subr.mxu0 0.0
  %4288 = vmatpush1.msra.mxu0 0.0
  %4289 = vmatprep.subr.mxu0 0.0
  %4290 = vmatpush1.msra.mxu0 0.0
  %4291 = vmatprep.subr.mxu0 0.0
  %4292 = vmatpush1.msra.mxu0 0.0
  %4293 = vmatprep.subr.mxu0 0.0
  %4294 = vmatpush1.msra.mxu0 0.0
  %4295 = vmatprep.subr.mxu0 0.0
  %4296 = vmatpush1.msra.mxu0 0.0
  %4297 = vmatprep.subr.mxu0 0.0
  %4298 = vmatpush1.msra.mxu0 0.0
  %4299 = vmatprep.subr.mxu0 0.0
  %4300 = vmatpush1.msra.mxu0 0.0
  %4301 = vmatprep.subr.mxu0 0.0
  %4302 = vmatpush1.msra.mxu0 0.0
  %4303 = vmatprep.subr.mxu0 0.0
  %4304 = vmatpush1.msra.mxu0 0.0
  %4305 = vmatprep.subr.mxu0 0.0
  %4306 = vmatpush1.msra.mxu0 0.0
  %4307 = vmatprep.subr.mxu0 0.0
  %4308 = vmatpush1.msra.mxu0 0.0
  %4309 = vmatprep.subr.mxu0 0.0
  %4310 = vmatpush1.msra.mxu0 0.0
  %4311 = vmatprep.subr.mxu0 0.0
  %4312 = vmatpush1.msra.mxu0 0.0
  %4313 = vmatprep.subr.mxu0 0.0
  %4314 = vmatpush1.msra.mxu0 0.0
  %4315 = vmatprep.subr.mxu0 0.0
  %4316 = vmatpush1.msra.mxu0 0.0
  %4317 = vmatprep.subr.mxu0 0.0
  %4318 = vmatpush1.msra.mxu0 0.0
  %4319 = vmatprep.subr.mxu0 0.0
  %4320 = vmatpush1.msra.mxu0 0.0
  %4321 = vmatprep.subr.mxu0 0.0
  %4322 = vmatpush1.msra.mxu0 0.0
  %4323 = vmatprep.subr.mxu0 0.0
  %4324 = vmatpush1.msra.mxu0 0.0
  %4325 = vmatprep.subr.mxu0 0.0
  %4326 = vmatpush1.msra.mxu0 0.0
  %4327 = vmatprep.subr.mxu0 0.0
  %4328 = vmatpush1.msra.mxu0 0.0
  %4329 = vmatprep.subr.mxu0 0.0
  %4330 = vmatpush1.msra.mxu0 0.0
  %4331 = vmatprep.subr.mxu0 0.0
  %4332 = vmatpush1.msra.mxu0 0.0
  %4333 = vmatprep.subr.mxu0 0.0
  %4334 = vmatpush1.msra.mxu0 0.0
  %4335 = vmatprep.subr.mxu0 0.0
  %4336 = vmatpush1.msra.mxu0 0.0
  %4337 = vmatprep.subr.mxu0 0.0
  %4338 = vmatpush1.msra.mxu0 0.0
  %4339 = vmatprep.subr.mxu0 0.0
  %4340 = vmatpush1.msra.mxu0 0.0
  %4341 = vmatprep.subr.mxu0 0.0
  %4342 = vmatpush1.msra.mxu0 0.0
  %4343 = vmatprep.subr.mxu0 0.0
  %4344 = vmatpush1.msra.mxu0 0.0
  %4345 = vmatprep.subr.mxu0 0.0
  %4346 = vmatpush1.msra.mxu0 0.0
  %4347 = vmatprep.subr.mxu0 0.0
  %4348 = vmatpush1.msra.mxu0 0.0
  %4349 = vmatprep.mubr.f32.mxu0 0.0
  %4350 = vmatmul.mubr.f32.gmra.mrb[0].mxu0 %v3844
  %v4351 = vpop.f32.mrb[0].mxu0
  %v4352 = vadd.f32 %v3941, %v4351
  %v4353 = vpop.f32.mrb[0].mxu0
  %4354 = vmatprep.mubr.f32.mxu0 0.0
  %4355 = vmatmul.mubr.f32.gmra.mrb[0].mxu0 %v3844
  %v4356 = vpop.f32.mrb[0].mxu0
  %v4357 = vadd.f32 %v3946, %v4356
  %v4358 = vpop.f32.mrb[0].mxu0
  %4359 = vmatprep.mubr.f32.mxu0 0.0
  %4360 = vmatmul.mubr.f32.gmra.mrb[0].mxu0 %v4257
  %v4361 = vpop.f32.mrb[0].mxu0
  %v4362 = vadd.f32 %v3951, %v4361
  %v4363 = vpop.f32.mrb[0].mxu0
  %4364 = vmatprep.mubr.f32.mxu0 0.0
  %4365 = vmatmul.mubr.f32.gmra.mrb[0].mxu0 %v4259
  %v4366 = vpop.f32.mrb[0].mxu0
  %v4367 = vadd.f32 %v3956, %v4366
  %v4368 = vpop.f32.mrb[0].mxu0
  %4369 = vmatprep.mubr.f32.mxu0 0.0
  %4370 = vmatmul.mubr.f32.gmra.mrb[0].mxu0 %v4261
  %v4371 = vpop.f32.mrb[0].mxu0
  %v4372 = vadd.f32 %v3961, %v4371
  %v4373 = vpop.f32.mrb[0].mxu0
  %4374 = vmatprep.mubr.f32.mxu0 0.0
  %4375 = vmatmul.mubr.f32.gmra.mrb[0].mxu0 %v4263
  %v4376 = vpop.f32.mrb[0].mxu0
  %v4377 = vadd.f32 %v3966, %v4376
  %v4378 = vpop.f32.mrb[0].mxu0
  %4379 = vmatprep.mubr.f32.mxu0 0.0
  %4380 = vmatmul.mubr.f32.gmra.mrb[0].mxu0 %v4265
  %v4381 = vpop.f32.mrb[0].mxu0
  %v4382 = vadd.f32 %v3971, %v4381
  %v4383 = vpop.f32.mrb[0].mxu0
  %4384 = vmatprep.mubr.f32.mxu0 0.0
  %4385 = vmatmul.mubr.f32.gmra.mrb[0].mxu0 %v4267
  %v4386 = vpop.f32.mrb[0].mxu0
  %v4387 = vadd.f32 %v3976, %v4386
  %v4388 = vpop.f32.mrb[0].mxu0
  %4389 = vmatprep.mubr.f32.mxu0 0.0
  %4390 = vmatmul.mubr.f32.gmra.mrb[0].mxu0 %v4269
  %v4391 = vpop.f32.mrb[0].mxu0
  %v4392 = vadd.f32 %v3981, %v4391
  %v4393 = vpop.f32.mrb[0].mxu0
  %4394 = vmatprep.mubr.f32.mxu0 0.0
  %4395 = vmatmul.mubr.f32.gmra.mrb[0].mxu0 %v4271
  %v4396 = vpop.f32.mrb[0].mxu0
  %v4397 = vadd.f32 %v3986, %v4396
  %v4398 = vpop.f32.mrb[0].mxu0
  %4399 = vmatprep.mubr.f32.mxu0 0.0
  %4400 = vmatmul.mubr.f32.gmra.mrb[0].mxu0 %v4273
  %v4401 = vpop.f32.mrb[0].mxu0
  %v4402 = vadd.f32 %v3991, %v4401
  %v4403 = vpop.f32.mrb[0].mxu0
  %4404 = vmatprep.mubr.f32.mxu0 0.0
  %4405 = vmatmul.mubr.f32.gmra.mrb[0].mxu0 %v4275
  %v4406 = vpop.f32.mrb[0].mxu0
  %v4407 = vadd.f32 %v3996, %v4406
  %v4408 = vpop.f32.mrb[0].mxu0
  %4409 = vmatprep.mubr.f32.mxu0 0.0
  %4410 = vmatmul.mubr.f32.gmra.mrb[0].mxu0 %v4277
  %v4411 = vpop.f32.mrb[0].mxu0
  %v4412 = vadd.f32 %v4001, %v4411
  %v4413 = vpop.f32.mrb[0].mxu0
  %4414 = vmatprep.mubr.f32.mxu0 0.0
  %4415 = vmatmul.mubr.f32.gmra.mrb[0].mxu0 %v4279
  %v4416 = vpop.f32.mrb[0].mxu0
  %v4417 = vadd.f32 %v4006, %v4416
  %v4418 = vpop.f32.mrb[0].mxu0
  %4419 = vmatprep.mubr.f32.mxu0 0.0
  %4420 = vmatmul.mubr.f32.gmra.mrb[0].mxu0 %v4281
  %v4421 = vpop.f32.mrb[0].mxu0
  %v4422 = vadd.f32 %v4011, %v4421
  %v4423 = vpop.f32.mrb[0].mxu0
  %4424 = vmatprep.mubr.f32.mxu0 0.0
  %4425 = vmatmul.mubr.f32.gmra.mrb[0].mxu0 %v4283
  %v4426 = vpop.f32.mrb[0].mxu0
  %v4427 = vadd.f32 %v4016, %v4426
  %v4428 = vpop.f32.mrb[0].mxu0
  %4429 = vdwg.mxu0
  %v4430 = vld [vmem:[%s5 + $0x10] sm:$0xff]
  %v4431 = vcombine.low %v4034, %v4044
  %v4432 = vcombine.low %v3365, 0.0
  %v4434 = vunpack.c.l.s4 1983009808
  %v4435 = vunpack.c.0.s8 %v4434
  %v4436 = vlaneseq
  %v4437 = vshrl.u32 %v4436, 7
  %v4438 = vsub.s32 %v4435, %v4437
  %v4439 = vrot.slane %v4432, %v4438
  %v4440 = vcombine.low %v4051, %v4439
  %v4441 = vcombine.low %v4068, %v4078
  %v4442 = vcombine.low %v3399, 0.0
  %v4444 = vunpack.c.l.s4 1983009808
  %v4445 = vunpack.c.0.s8 %v4444
  %v4446 = vlaneseq
  %v4447 = vshrl.u32 %v4446, 7
  %v4448 = vsub.s32 %v4445, %v4447
  %v4449 = vrot.slane %v4442, %v4448
  %v4450 = vcombine.low %v4085, %v4449
  %v4451 = vcombine.low %v4102, %v4112
  %v4452 = vcombine.low %v3433, 0.0
  %v4454 = vunpack.c.l.s4 1983009808
  %v4455 = vunpack.c.0.s8 %v4454
  %v4456 = vlaneseq
  %v4457 = vshrl.u32 %v4456, 7
  %v4458 = vsub.s32 %v4455, %v4457
  %v4459 = vrot.slane %v4452, %v4458
  %v4460 = vcombine.low %v4119, %v4459
  %v4461 = vcombine.low %v4136, %v4146
  %v4462 = vcombine.low %v3467, 0.0
  %v4464 = vunpack.c.l.s4 1983009808
  %v4465 = vunpack.c.0.s8 %v4464
  %v4466 = vlaneseq
  %v4467 = vshrl.u32 %v4466, 7
  %v4468 = vsub.s32 %v4465, %v4467
  %v4469 = vrot.slane %v4462, %v4468
  %v4470 = vcombine.low %v4153, %v4469
  %v4471 = vcombine.low %v4170, %v4180
  %v4472 = vcombine.low %v3501, 0.0
  %v4474 = vunpack.c.l.s4 1983009808
  %v4475 = vunpack.c.0.s8 %v4474
  %v4476 = vlaneseq
  %v4477 = vshrl.u32 %v4476, 7
  %v4478 = vsub.s32 %v4475, %v4477
  %v4479 = vrot.slane %v4472, %v4478
  %v4480 = vcombine.low %v4187, %v4479
  %v4481 = vcombine.low %v4204, %v4214
  %v4482 = vcombine.low %v3535, 0.0
  %v4484 = vunpack.c.l.s4 1983009808
  %v4485 = vunpack.c.0.s8 %v4484
  %v4486 = vlaneseq
  %v4487 = vshrl.u32 %v4486, 7
  %v4488 = vsub.s32 %v4485, %v4487
  %v4489 = vrot.slane %v4482, %v4488
  %v4490 = vcombine.low %v4221, %v4489
  %v4491 = vcombine.low %v4238, %v4248
  %v4492 = vcombine.low %v3569, 0.0
  %v4494 = vunpack.c.l.s4 1983009808
  %v4495 = vunpack.c.0.s8 %v4494
  %v4496 = vlaneseq
  %v4497 = vshrl.u32 %v4496, 7
  %v4498 = vsub.s32 %v4495, %v4497
  %v4499 = vrot.slane %v4492, %v4498
  %v4500 = vcombine.low %v4255, %v4499
  %v4501 = vsel %vm3139, %v4431, 0
  %v4503 = vsel %vm3139, %v4440, 0
  %v4505 = vsel %vm3139, %v4441, 0
  %v4507 = vsel %vm3139, %v4450, 0
  %v4509 = vsel %vm3139, %v4451, 0
  %v4511 = vsel %vm3139, %v4460, 0
  %v4513 = vsel %vm3139, %v4461, 0
  %v4515 = vsel %vm3139, %v4470, 0
  %v4517 = vsel %vm3139, %v4471, 0
  %v4519 = vsel %vm3139, %v4480, 0
  %v4521 = vsel %vm3139, %v4481, 0
  %v4523 = vsel %vm3139, %v4490, 0
  %v4525 = vsel %vm3139, %v4491, 0
  %v4527 = vsel %vm3139, %v4500, 0
  %4529 = vmatprep.subr.mxu0 0.0
  %4530 = vmatpush1.msra.mxu0 %v4430
  %4531 = vmatprep.subr.mxu0 0.0
  %4532 = vmatpush1.msra.mxu0 0.0
  %4533 = vmatprep.subr.mxu0 0.0
  %4534 = vmatpush1.msra.mxu0 0.0
  %4535 = vmatprep.subr.mxu0 0.0
  %4536 = vmatpush1.msra.mxu0 0.0
  %4537 = vmatprep.subr.mxu0 0.0
  %4538 = vmatpush1.msra.mxu0 0.0
  %4539 = vmatprep.subr.mxu0 0.0
  %4540 = vmatpush1.msra.mxu0 0.0
  %4541 = vmatprep.subr.mxu0 0.0
  %4542 = vmatpush1.msra.mxu0 0.0
  %4543 = vmatprep.subr.mxu0 0.0
  %4544 = vmatpush1.msra.mxu0 0.0
  %4545 = vmatprep.subr.mxu0 0.0
  %4546 = vmatpush1.msra.mxu0 0.0
  %4547 = vmatprep.subr.mxu0 0.0
  %4548 = vmatpush1.msra.mxu0 0.0
  %4549 = vmatprep.subr.mxu0 0.0
  %4550 = vmatpush1.msra.mxu0 0.0
  %4551 = vmatprep.subr.mxu0 0.0
  %4552 = vmatpush1.msra.mxu0 0.0
  %4553 = vmatprep.subr.mxu0 0.0
  %4554 = vmatpush1.msra.mxu0 0.0
  %4555 = vmatprep.subr.mxu0 0.0
  %4556 = vmatpush1.msra.mxu0 0.0
  %4557 = vmatprep.subr.mxu0 0.0
  %4558 = vmatpush1.msra.mxu0 0.0
  %4559 = vmatprep.subr.mxu0 0.0
  %4560 = vmatpush1.msra.mxu0 0.0
  %4561 = vmatprep.subr.mxu0 0.0
  %4562 = vmatpush1.msra.mxu0 0.0
  %4563 = vmatprep.subr.mxu0 0.0
  %4564 = vmatpush1.msra.mxu0 0.0
  %4565 = vmatprep.subr.mxu0 0.0
  %4566 = vmatpush1.msra.mxu0 0.0
  %4567 = vmatprep.subr.mxu0 0.0
  %4568 = vmatpush1.msra.mxu0 0.0
  %4569 = vmatprep.subr.mxu0 0.0
  %4570 = vmatpush1.msra.mxu0 0.0
  %4571 = vmatprep.subr.mxu0 0.0
  %4572 = vmatpush1.msra.mxu0 0.0
  %4573 = vmatprep.subr.mxu0 0.0
  %4574 = vmatpush1.msra.mxu0 0.0
  %4575 = vmatprep.subr.mxu0 0.0
  %4576 = vmatpush1.msra.mxu0 0.0
  %4577 = vmatprep.subr.mxu0 0.0
  %4578 = vmatpush1.msra.mxu0 0.0
  %4579 = vmatprep.subr.mxu0 0.0
  %4580 = vmatpush1.msra.mxu0 0.0
  %4581 = vmatprep.subr.mxu0 0.0
  %4582 = vmatpush1.msra.mxu0 0.0
  %4583 = vmatprep.subr.mxu0 0.0
  %4584 = vmatpush1.msra.mxu0 0.0
  %4585 = vmatprep.subr.mxu0 0.0
  %4586 = vmatpush1.msra.mxu0 0.0
  %4587 = vmatprep.subr.mxu0 0.0
  %4588 = vmatpush1.msra.mxu0 0.0
  %4589 = vmatprep.subr.mxu0 0.0
  %4590 = vmatpush1.msra.mxu0 0.0
  %4591 = vmatprep.subr.mxu0 0.0
  %4592 = vmatpush1.msra.mxu0 0.0
  %4593 = vmatprep.mubr.f32.mxu0 0.0
  %4594 = vmatmul.mubr.f32.gmra.mrb[0].mxu0 %v3844
  %v4595 = vpop.f32.mrb[0].mxu0
  %v4596 = vadd.f32 0.0, %v4595
  %v4597 = vpop.f32.mrb[0].mxu0
  %4598 = vmatprep.mubr.f32.mxu0 0.0
  %4599 = vmatmul.mubr.f32.gmra.mrb[0].mxu0 %v3844
  %v4600 = vpop.f32.mrb[0].mxu0
  %v4601 = vadd.f32 0.0, %v4600
  %v4602 = vpop.f32.mrb[0].mxu0
  %4603 = vmatprep.mubr.f32.mxu0 0.0
  %4604 = vmatmul.mubr.f32.gmra.mrb[0].mxu0 %v4501
  %v4605 = vpop.f32.mrb[0].mxu0
  %v4606 = vadd.f32 0.0, %v4605
  %v4607 = vpop.f32.mrb[0].mxu0
  %4608 = vmatprep.mubr.f32.mxu0 0.0
  %4609 = vmatmul.mubr.f32.gmra.mrb[0].mxu0 %v4503
  %v4610 = vpop.f32.mrb[0].mxu0
  %v4611 = vadd.f32 0.0, %v4610
  %v4612 = vpop.f32.mrb[0].mxu0
  %4613 = vmatprep.mubr.f32.mxu0 0.0
  %4614 = vmatmul.mubr.f32.gmra.mrb[0].mxu0 %v4505
  %v4615 = vpop.f32.mrb[0].mxu0
  %v4616 = vadd.f32 0.0, %v4615
  %v4617 = vpop.f32.mrb[0].mxu0
  %4618 = vmatprep.mubr.f32.mxu0 0.0
  %4619 = vmatmul.mubr.f32.gmra.mrb[0].mxu0 %v4507
  %v4620 = vpop.f32.mrb[0].mxu0
  %v4621 = vadd.f32 0.0, %v4620
  %v4622 = vpop.f32.mrb[0].mxu0
  %4623 = vmatprep.mubr.f32.mxu0 0.0
  %4624 = vmatmul.mubr.f32.gmra.mrb[0].mxu0 %v4509
  %v4625 = vpop.f32.mrb[0].mxu0
  %v4626 = vadd.f32 0.0, %v4625
  %v4627 = vpop.f32.mrb[0].mxu0
  %4628 = vmatprep.mubr.f32.mxu0 0.0
  %4629 = vmatmul.mubr.f32.gmra.mrb[0].mxu0 %v4511
  %v4630 = vpop.f32.mrb[0].mxu0
  %v4631 = vadd.f32 0.0, %v4630
  %v4632 = vpop.f32.mrb[0].mxu0
  %4633 = vmatprep.mubr.f32.mxu0 0.0
  %4634 = vmatmul.mubr.f32.gmra.mrb[0].mxu0 %v4513
  %v4635 = vpop.f32.mrb[0].mxu0
  %v4636 = vadd.f32 0.0, %v4635
  %v4637 = vpop.f32.mrb[0].mxu0
  %4638 = vmatprep.mubr.f32.mxu0 0.0
  %4639 = vmatmul.mubr.f32.gmra.mrb[0].mxu0 %v4515
  %v4640 = vpop.f32.mrb[0].mxu0
  %v4641 = vadd.f32 0.0, %v4640
  %v4642 = vpop.f32.mrb[0].mxu0
  %4643 = vmatprep.mubr.f32.mxu0 0.0
  %4644 = vmatmul.mubr.f32.gmra.mrb[0].mxu0 %v4517
  %v4645 = vpop.f32.mrb[0].mxu0
  %v4646 = vadd.f32 0.0, %v4645
  %v4647 = vpop.f32.mrb[0].mxu0
  %4648 = vmatprep.mubr.f32.mxu0 0.0
  %4649 = vmatmul.mubr.f32.gmra.mrb[0].mxu0 %v4519
  %v4650 = vpop.f32.mrb[0].mxu0
  %v4651 = vadd.f32 0.0, %v4650
  %v4652 = vpop.f32.mrb[0].mxu0
  %4653 = vmatprep.mubr.f32.mxu0 0.0
  %4654 = vmatmul.mubr.f32.gmra.mrb[0].mxu0 %v4521
  %v4655 = vpop.f32.mrb[0].mxu0
  %v4656 = vadd.f32 0.0, %v4655
  %v4657 = vpop.f32.mrb[0].mxu0
  %4658 = vmatprep.mubr.f32.mxu0 0.0
  %4659 = vmatmul.mubr.f32.gmra.mrb[0].mxu0 %v4523
  %v4660 = vpop.f32.mrb[0].mxu0
  %v4661 = vadd.f32 0.0, %v4660
  %v4662 = vpop.f32.mrb[0].mxu0
  %4663 = vmatprep.mubr.f32.mxu0 0.0
  %4664 = vmatmul.mubr.f32.gmra.mrb[0].mxu0 %v4525
  %v4665 = vpop.f32.mrb[0].mxu0
  %v4666 = vadd.f32 0.0, %v4665
  %v4667 = vpop.f32.mrb[0].mxu0
  %4668 = vmatprep.mubr.f32.mxu0 0.0
  %4669 = vmatmul.mubr.f32.gmra.mrb[0].mxu0 %v4527
  %v4670 = vpop.f32.mrb[0].mxu0
  %v4671 = vadd.f32 0.0, %v4670
  %v4672 = vpop.f32.mrb[0].mxu0
  %4673 = vdwg.mxu0
  %v4674 = vadd.f32 %v4352, %v4596
  %v4675 = vadd.f32 %v4357, %v4601
  %v4676 = vadd.f32 %v4362, %v4606
  %v4677 = vadd.f32 %v4367, %v4611
  %v4678 = vadd.f32 %v4372, %v4616
  %v4679 = vadd.f32 %v4377, %v4621
  %v4680 = vadd.f32 %v4382, %v4626
  %v4681 = vadd.f32 %v4387, %v4631
  %v4682 = vadd.f32 %v4392, %v4636
  %v4683 = vadd.f32 %v4397, %v4641
  %v4684 = vadd.f32 %v4402, %v4646
  %v4685 = vadd.f32 %v4407, %v4651
  %v4686 = vadd.f32 %v4412, %v4656
  %v4687 = vadd.f32 %v4417, %v4661
  %v4688 = vadd.f32 %v4422, %v4666
  %v4689 = vadd.f32 %v4427, %v4671
  %v4690 = vld [vmem:[%s5 + $0x18] sm:$0xff]
  %v4691 = vcombine.low 0.0, %v3577
  %v4692 = vcombine.low %v3585, %v3584
  %v4694 = vunpack.c.l.s4 1983009808
  %v4695 = vunpack.c.0.s8 %v4694
  %v4696 = vlaneseq
  %v4697 = vshrl.u32 %v4696, 7
  %v4698 = vsub.s32 %v4695, %v4697
  %v4699 = vrot.slane %v4691, %v4698
  %v4701 = vunpack.c.l.s4 1983009808
  %v4702 = vunpack.c.0.s8 %v4701
  %v4703 = vlaneseq
  %v4704 = vshrl.u32 %v4703, 7
  %v4705 = vsub.s32 %v4702, %v4704
  %v4706 = vrot.slane %v4692, %v4705
  %v4707 = vcombine.low %v4699, %v4706
  %v4708 = vcombine.low %v3586, %v3594
  %v4709 = vcombine.low %v3602, %v3601
  %v4711 = vunpack.c.l.s4 1983009808
  %v4712 = vunpack.c.0.s8 %v4711
  %v4713 = vlaneseq
  %v4714 = vshrl.u32 %v4713, 7
  %v4715 = vsub.s32 %v4712, %v4714
  %v4716 = vrot.slane %v4708, %v4715
  %v4718 = vunpack.c.l.s4 1983009808
  %v4719 = vunpack.c.0.s8 %v4718
  %v4720 = vlaneseq
  %v4721 = vshrl.u32 %v4720, 7
  %v4722 = vsub.s32 %v4719, %v4721
  %v4723 = vrot.slane %v4709, %v4722
  %v4724 = vcombine.low %v4716, %v4723
  %v4725 = vsel %vm3139, %v4707, 0
  %v4727 = vsel %vm3139, %v4724, 0
  %4729 = vmatprep.subr.mxu0 0.0
  %4730 = vmatpush1.msra.mxu0 %v4690
  %4731 = vmatprep.subr.mxu0 0.0
  %4732 = vmatpush1.msra.mxu0 0.0
  %4733 = vmatprep.subr.mxu0 0.0
  %4734 = vmatpush1.msra.mxu0 0.0
  %4735 = vmatprep.subr.mxu0 0.0
  %4736 = vmatpush1.msra.mxu0 0.0
  %4737 = vmatprep.subr.mxu0 0.0
  %4738 = vmatpush1.msra.mxu0 0.0
  %4739 = vmatprep.subr.mxu0 0.0
  %4740 = vmatpush1.msra.mxu0 0.0
  %4741 = vmatprep.subr.mxu0 0.0
  %4742 = vmatpush1.msra.mxu0 0.0
  %4743 = vmatprep.subr.mxu0 0.0
  %4744 = vmatpush1.msra.mxu0 0.0
  %4745 = vmatprep.subr.mxu0 0.0
  %4746 = vmatpush1.msra.mxu0 0.0
  %4747 = vmatprep.subr.mxu0 0.0
  %4748 = vmatpush1.msra.mxu0 0.0
  %4749 = vmatprep.subr.mxu0 0.0
  %4750 = vmatpush1.msra.mxu0 0.0
  %4751 = vmatprep.subr.mxu0 0.0
  %4752 = vmatpush1.msra.mxu0 0.0
  %4753 = vmatprep.subr.mxu0 0.0
  %4754 = vmatpush1.msra.mxu0 0.0
  %4755 = vmatprep.subr.mxu0 0.0
  %4756 = vmatpush1.msra.mxu0 0.0
  %4757 = vmatprep.subr.mxu0 0.0
  %4758 = vmatpush1.msra.mxu0 0.0
  %4759 = vmatprep.subr.mxu0 0.0
  %4760 = vmatpush1.msra.mxu0 0.0
  %4761 = vmatprep.subr.mxu0 0.0
  %4762 = vmatpush1.msra.mxu0 0.0
  %4763 = vmatprep.subr.mxu0 0.0
  %4764 = vmatpush1.msra.mxu0 0.0
  %4765 = vmatprep.subr.mxu0 0.0
  %4766 = vmatpush1.msra.mxu0 0.0
  %4767 = vmatprep.subr.mxu0 0.0
  %4768 = vmatpush1.msra.mxu0 0.0
  %4769 = vmatprep.subr.mxu0 0.0
  %4770 = vmatpush1.msra.mxu0 0.0
  %4771 = vmatprep.subr.mxu0 0.0
  %4772 = vmatpush1.msra.mxu0 0.0
  %4773 = vmatprep.subr.mxu0 0.0
  %4774 = vmatpush1.msra.mxu0 0.0
  %4775 = vmatprep.subr.mxu0 0.0
  %4776 = vmatpush1.msra.mxu0 0.0
  %4777 = vmatprep.subr.mxu0 0.0
  %4778 = vmatpush1.msra.mxu0 0.0
  %4779 = vmatprep.subr.mxu0 0.0
  %4780 = vmatpush1.msra.mxu0 0.0
  %4781 = vmatprep.subr.mxu0 0.0
  %4782 = vmatpush1.msra.mxu0 0.0
  %4783 = vmatprep.subr.mxu0 0.0
  %4784 = vmatpush1.msra.mxu0 0.0
  %4785 = vmatprep.subr.mxu0 0.0
  %4786 = vmatpush1.msra.mxu0 0.0
  %4787 = vmatprep.subr.mxu0 0.0
  %4788 = vmatpush1.msra.mxu0 0.0
  %4789 = vmatprep.subr.mxu0 0.0
  %4790 = vmatpush1.msra.mxu0 0.0
  %4791 = vmatprep.subr.mxu0 0.0
  %4792 = vmatpush1.msra.mxu0 0.0
  %4793 = vmatprep.mubr.f32.mxu0 0.0
  %4794 = vmatmul.mubr.f32.gmra.mrb[0].mxu0 %v4257
  %v4795 = vpop.f32.mrb[0].mxu0
  %v4796 = vadd.f32 0.0, %v4795
  %v4797 = vpop.f32.mrb[0].mxu0
  %4798 = vmatprep.mubr.f32.mxu0 0.0
  %4799 = vmatmul.mubr.f32.gmra.mrb[0].mxu0 %v4259
  %v4800 = vpop.f32.mrb[0].mxu0
  %v4801 = vadd.f32 0.0, %v4800
  %v4802 = vpop.f32.mrb[0].mxu0
  %4803 = vmatprep.mubr.f32.mxu0 0.0
  %4804 = vmatmul.mubr.f32.gmra.mrb[0].mxu0 %v4261
  %v4805 = vpop.f32.mrb[0].mxu0
  %v4806 = vadd.f32 0.0, %v4805
  %v4807 = vpop.f32.mrb[0].mxu0
  %4808 = vmatprep.mubr.f32.mxu0 0.0
  %4809 = vmatmul.mubr.f32.gmra.mrb[0].mxu0 %v4263
  %v4810 = vpop.f32.mrb[0].mxu0
  %v4811 = vadd.f32 0.0, %v4810
  %v4812 = vpop.f32.mrb[0].mxu0
  %4813 = vmatprep.mubr.f32.mxu0 0.0
  %4814 = vmatmul.mubr.f32.gmra.mrb[0].mxu0 %v4265
  %v4815 = vpop.f32.mrb[0].mxu0
  %v4816 = vadd.f32 0.0, %v4815
  %v4817 = vpop.f32.mrb[0].mxu0
  %4818 = vmatprep.mubr.f32.mxu0 0.0
  %4819 = vmatmul.mubr.f32.gmra.mrb[0].mxu0 %v4267
  %v4820 = vpop.f32.mrb[0].mxu0
  %v4821 = vadd.f32 0.0, %v4820
  %v4822 = vpop.f32.mrb[0].mxu0
  %4823 = vmatprep.mubr.f32.mxu0 0.0
  %4824 = vmatmul.mubr.f32.gmra.mrb[0].mxu0 %v4269
  %v4825 = vpop.f32.mrb[0].mxu0
  %v4826 = vadd.f32 0.0, %v4825
  %v4827 = vpop.f32.mrb[0].mxu0
  %4828 = vmatprep.mubr.f32.mxu0 0.0
  %4829 = vmatmul.mubr.f32.gmra.mrb[0].mxu0 %v4271
  %v4830 = vpop.f32.mrb[0].mxu0
  %v4831 = vadd.f32 0.0, %v4830
  %v4832 = vpop.f32.mrb[0].mxu0
  %4833 = vmatprep.mubr.f32.mxu0 0.0
  %4834 = vmatmul.mubr.f32.gmra.mrb[0].mxu0 %v4273
  %v4835 = vpop.f32.mrb[0].mxu0
  %v4836 = vadd.f32 0.0, %v4835
  %v4837 = vpop.f32.mrb[0].mxu0
  %4838 = vmatprep.mubr.f32.mxu0 0.0
  %4839 = vmatmul.mubr.f32.gmra.mrb[0].mxu0 %v4275
  %v4840 = vpop.f32.mrb[0].mxu0
  %v4841 = vadd.f32 0.0, %v4840
  %v4842 = vpop.f32.mrb[0].mxu0
  %4843 = vmatprep.mubr.f32.mxu0 0.0
  %4844 = vmatmul.mubr.f32.gmra.mrb[0].mxu0 %v4277
  %v4845 = vpop.f32.mrb[0].mxu0
  %v4846 = vadd.f32 0.0, %v4845
  %v4847 = vpop.f32.mrb[0].mxu0
  %4848 = vmatprep.mubr.f32.mxu0 0.0
  %4849 = vmatmul.mubr.f32.gmra.mrb[0].mxu0 %v4279
  %v4850 = vpop.f32.mrb[0].mxu0
  %v4851 = vadd.f32 0.0, %v4850
  %v4852 = vpop.f32.mrb[0].mxu0
  %4853 = vmatprep.mubr.f32.mxu0 0.0
  %4854 = vmatmul.mubr.f32.gmra.mrb[0].mxu0 %v4281
  %v4855 = vpop.f32.mrb[0].mxu0
  %v4856 = vadd.f32 0.0, %v4855
  %v4857 = vpop.f32.mrb[0].mxu0
  %4858 = vmatprep.mubr.f32.mxu0 0.0
  %4859 = vmatmul.mubr.f32.gmra.mrb[0].mxu0 %v4283
  %v4860 = vpop.f32.mrb[0].mxu0
  %v4861 = vadd.f32 0.0, %v4860
  %v4862 = vpop.f32.mrb[0].mxu0
  %4863 = vmatprep.mubr.f32.mxu0 0.0
  %4864 = vmatmul.mubr.f32.gmra.mrb[0].mxu0 %v4725
  %v4865 = vpop.f32.mrb[0].mxu0
  %v4866 = vadd.f32 0.0, %v4865
  %v4867 = vpop.f32.mrb[0].mxu0
  %4868 = vmatprep.mubr.f32.mxu0 0.0
  %4869 = vmatmul.mubr.f32.gmra.mrb[0].mxu0 %v4727
  %v4870 = vpop.f32.mrb[0].mxu0
  %v4871 = vadd.f32 0.0, %v4870
  %v4872 = vpop.f32.mrb[0].mxu0
  %4873 = vdwg.mxu0
  %v4874 = vadd.f32 %v4674, %v4796
  %v4875 = vadd.f32 %v4675, %v4801
  %v4876 = vadd.f32 %v4676, %v4806
  %v4877 = vadd.f32 %v4677, %v4811
  %v4878 = vadd.f32 %v4678, %v4816
  %v4879 = vadd.f32 %v4679, %v4821
  %v4880 = vadd.f32 %v4680, %v4826
  %v4881 = vadd.f32 %v4681, %v4831
  %v4882 = vadd.f32 %v4682, %v4836
  %v4883 = vadd.f32 %v4683, %v4841
  %v4884 = vadd.f32 %v4684, %v4846
  %v4885 = vadd.f32 %v4685, %v4851
  %v4886 = vadd.f32 %v4686, %v4856
  %v4887 = vadd.f32 %v4687, %v4861
  %v4888 = vadd.f32 %v4688, %v4866
  %v4889 = vadd.f32 %v4689, %v4871
  %v4890 = vld [vmem:[%s5 + $0x20] sm:$0xff]
  %v4891 = vcombine.low %v3577, %v3585
  %v4892 = vcombine.low %v3584, %v3586
  %v4894 = vunpack.c.l.s4 1983009808
  %v4895 = vunpack.c.0.s8 %v4894
  %v4896 = vlaneseq
  %v4897 = vshrl.u32 %v4896, 7
  %v4898 = vsub.s32 %v4895, %v4897
  %v4899 = vrot.slane %v4891, %v4898
  %v4901 = vunpack.c.l.s4 1983009808
  %v4902 = vunpack.c.0.s8 %v4901
  %v4903 = vlaneseq
  %v4904 = vshrl.u32 %v4903, 7
  %v4905 = vsub.s32 %v4902, %v4904
  %v4906 = vrot.slane %v4892, %v4905
  %v4907 = vcombine.low %v4899, %v4906
  %v4908 = vcombine.low %v3594, %v3602
  %v4909 = vcombine.low %v3601, %v3603
  %v4911 = vunpack.c.l.s4 1983009808
  %v4912 = vunpack.c.0.s8 %v4911
  %v4913 = vlaneseq
  %v4914 = vshrl.u32 %v4913, 7
  %v4915 = vsub.s32 %v4912, %v4914
  %v4916 = vrot.slane %v4908, %v4915
  %v4918 = vunpack.c.l.s4 1983009808
  %v4919 = vunpack.c.0.s8 %v4918
  %v4920 = vlaneseq
  %v4921 = vshrl.u32 %v4920, 7
  %v4922 = vsub.s32 %v4919, %v4921
  %v4923 = vrot.slane %v4909, %v4922
  %v4924 = vcombine.low %v4916, %v4923
  %v4925 = vsel %vm3139, %v4907, 0
  %v4927 = vsel %vm3139, %v4924, 0
  %4929 = vmatprep.subr.mxu0 0.0
  %4930 = vmatpush1.msra.mxu0 %v4890
  %4931 = vmatprep.subr.mxu0 0.0
  %4932 = vmatpush1.msra.mxu0 0.0
  %4933 = vmatprep.subr.mxu0 0.0
  %4934 = vmatpush1.msra.mxu0 0.0
  %4935 = vmatprep.subr.mxu0 0.0
  %4936 = vmatpush1.msra.mxu0 0.0
  %4937 = vmatprep.subr.mxu0 0.0
  %4938 = vmatpush1.msra.mxu0 0.0
  %4939 = vmatprep.subr.mxu0 0.0
  %4940 = vmatpush1.msra.mxu0 0.0
  %4941 = vmatprep.subr.mxu0 0.0
  %4942 = vmatpush1.msra.mxu0 0.0
  %4943 = vmatprep.subr.mxu0 0.0
  %4944 = vmatpush1.msra.mxu0 0.0
  %4945 = vmatprep.subr.mxu0 0.0
  %4946 = vmatpush1.msra.mxu0 0.0
  %4947 = vmatprep.subr.mxu0 0.0
  %4948 = vmatpush1.msra.mxu0 0.0
  %4949 = vmatprep.subr.mxu0 0.0
  %4950 = vmatpush1.msra.mxu0 0.0
  %4951 = vmatprep.subr.mxu0 0.0
  %4952 = vmatpush1.msra.mxu0 0.0
  %4953 = vmatprep.subr.mxu0 0.0
  %4954 = vmatpush1.msra.mxu0 0.0
  %4955 = vmatprep.subr.mxu0 0.0
  %4956 = vmatpush1.msra.mxu0 0.0
  %4957 = vmatprep.subr.mxu0 0.0
  %4958 = vmatpush1.msra.mxu0 0.0
  %4959 = vmatprep.subr.mxu0 0.0
  %4960 = vmatpush1.msra.mxu0 0.0
  %4961 = vmatprep.subr.mxu0 0.0
  %4962 = vmatpush1.msra.mxu0 0.0
  %4963 = vmatprep.subr.mxu0 0.0
  %4964 = vmatpush1.msra.mxu0 0.0
  %4965 = vmatprep.subr.mxu0 0.0
  %4966 = vmatpush1.msra.mxu0 0.0
  %4967 = vmatprep.subr.mxu0 0.0
  %4968 = vmatpush1.msra.mxu0 0.0
  %4969 = vmatprep.subr.mxu0 0.0
  %4970 = vmatpush1.msra.mxu0 0.0
  %4971 = vmatprep.subr.mxu0 0.0
  %4972 = vmatpush1.msra.mxu0 0.0
  %4973 = vmatprep.subr.mxu0 0.0
  %4974 = vmatpush1.msra.mxu0 0.0
  %4975 = vmatprep.subr.mxu0 0.0
  %4976 = vmatpush1.msra.mxu0 0.0
  %4977 = vmatprep.subr.mxu0 0.0
  %4978 = vmatpush1.msra.mxu0 0.0
  %4979 = vmatprep.subr.mxu0 0.0
  %4980 = vmatpush1.msra.mxu0 0.0
  %4981 = vmatprep.subr.mxu0 0.0
  %4982 = vmatpush1.msra.mxu0 0.0
  %4983 = vmatprep.subr.mxu0 0.0
  %4984 = vmatpush1.msra.mxu0 0.0
  %4985 = vmatprep.subr.mxu0 0.0
  %4986 = vmatpush1.msra.mxu0 0.0
  %4987 = vmatprep.subr.mxu0 0.0
  %4988 = vmatpush1.msra.mxu0 0.0
  %4989 = vmatprep.subr.mxu0 0.0
  %4990 = vmatpush1.msra.mxu0 0.0
  %4991 = vmatprep.subr.mxu0 0.0
  %4992 = vmatpush1.msra.mxu0 0.0
  %4993 = vmatprep.mubr.f32.mxu0 0.0
  %4994 = vmatmul.mubr.f32.gmra.mrb[0].mxu0 %v3846
  %v4995 = vpop.f32.mrb[0].mxu0
  %v4996 = vadd.f32 0.0, %v4995
  %v4997 = vpop.f32.mrb[0].mxu0
  %4998 = vmatprep.mubr.f32.mxu0 0.0
  %4999 = vmatmul.mubr.f32.gmra.mrb[0].mxu0 %v3848
  %v5000 = vpop.f32.mrb[0].mxu0
  %v5001 = vadd.f32 0.0, %v5000
  %v5002 = vpop.f32.mrb[0].mxu0
  %5003 = vmatprep.mubr.f32.mxu0 0.0
  %5004 = vmatmul.mubr.f32.gmra.mrb[0].mxu0 %v3850
  %v5005 = vpop.f32.mrb[0].mxu0
  %v5006 = vadd.f32 0.0, %v5005
  %v5007 = vpop.f32.mrb[0].mxu0
  %5008 = vmatprep.mubr.f32.mxu0 0.0
  %5009 = vmatmul.mubr.f32.gmra.mrb[0].mxu0 %v3852
  %v5010 = vpop.f32.mrb[0].mxu0
  %v5011 = vadd.f32 0.0, %v5010
  %v5012 = vpop.f32.mrb[0].mxu0
  %5013 = vmatprep.mubr.f32.mxu0 0.0
  %5014 = vmatmul.mubr.f32.gmra.mrb[0].mxu0 %v3854
  %v5015 = vpop.f32.mrb[0].mxu0
  %v5016 = vadd.f32 0.0, %v5015
  %v5017 = vpop.f32.mrb[0].mxu0
  %5018 = vmatprep.mubr.f32.mxu0 0.0
  %5019 = vmatmul.mubr.f32.gmra.mrb[0].mxu0 %v3856
  %v5020 = vpop.f32.mrb[0].mxu0
  %v5021 = vadd.f32 0.0, %v5020
  %v5022 = vpop.f32.mrb[0].mxu0
  %5023 = vmatprep.mubr.f32.mxu0 0.0
  %5024 = vmatmul.mubr.f32.gmra.mrb[0].mxu0 %v3858
  %v5025 = vpop.f32.mrb[0].mxu0
  %v5026 = vadd.f32 0.0, %v5025
  %v5027 = vpop.f32.mrb[0].mxu0
  %5028 = vmatprep.mubr.f32.mxu0 0.0
  %5029 = vmatmul.mubr.f32.gmra.mrb[0].mxu0 %v3860
  %v5030 = vpop.f32.mrb[0].mxu0
  %v5031 = vadd.f32 0.0, %v5030
  %v5032 = vpop.f32.mrb[0].mxu0
  %5033 = vmatprep.mubr.f32.mxu0 0.0
  %5034 = vmatmul.mubr.f32.gmra.mrb[0].mxu0 %v3862
  %v5035 = vpop.f32.mrb[0].mxu0
  %v5036 = vadd.f32 0.0, %v5035
  %v5037 = vpop.f32.mrb[0].mxu0
  %5038 = vmatprep.mubr.f32.mxu0 0.0
  %5039 = vmatmul.mubr.f32.gmra.mrb[0].mxu0 %v3864
  %v5040 = vpop.f32.mrb[0].mxu0
  %v5041 = vadd.f32 0.0, %v5040
  %v5042 = vpop.f32.mrb[0].mxu0
  %5043 = vmatprep.mubr.f32.mxu0 0.0
  %5044 = vmatmul.mubr.f32.gmra.mrb[0].mxu0 %v3866
  %v5045 = vpop.f32.mrb[0].mxu0
  %v5046 = vadd.f32 0.0, %v5045
  %v5047 = vpop.f32.mrb[0].mxu0
  %5048 = vmatprep.mubr.f32.mxu0 0.0
  %5049 = vmatmul.mubr.f32.gmra.mrb[0].mxu0 %v3868
  %v5050 = vpop.f32.mrb[0].mxu0
  %v5051 = vadd.f32 0.0, %v5050
  %v5052 = vpop.f32.mrb[0].mxu0
  %5053 = vmatprep.mubr.f32.mxu0 0.0
  %5054 = vmatmul.mubr.f32.gmra.mrb[0].mxu0 %v3870
  %v5055 = vpop.f32.mrb[0].mxu0
  %v5056 = vadd.f32 0.0, %v5055
  %v5057 = vpop.f32.mrb[0].mxu0
  %5058 = vmatprep.mubr.f32.mxu0 0.0
  %5059 = vmatmul.mubr.f32.gmra.mrb[0].mxu0 %v3872
  %v5060 = vpop.f32.mrb[0].mxu0
  %v5061 = vadd.f32 0.0, %v5060
  %v5062 = vpop.f32.mrb[0].mxu0
  %5063 = vmatprep.mubr.f32.mxu0 0.0
  %5064 = vmatmul.mubr.f32.gmra.mrb[0].mxu0 %v4925
  %v5065 = vpop.f32.mrb[0].mxu0
  %v5066 = vadd.f32 0.0, %v5065
  %v5067 = vpop.f32.mrb[0].mxu0
  %5068 = vmatprep.mubr.f32.mxu0 0.0
  %5069 = vmatmul.mubr.f32.gmra.mrb[0].mxu0 %v4927
  %v5070 = vpop.f32.mrb[0].mxu0
  %v5071 = vadd.f32 0.0, %v5070
  %v5072 = vpop.f32.mrb[0].mxu0
  %5073 = vdwg.mxu0
  %v5074 = vadd.f32 %v4874, %v4996
  %v5075 = vadd.f32 %v4875, %v5001
  %v5076 = vadd.f32 %v4876, %v5006
  %v5077 = vadd.f32 %v4877, %v5011
  %v5078 = vadd.f32 %v4878, %v5016
  %v5079 = vadd.f32 %v4879, %v5021
  %v5080 = vadd.f32 %v4880, %v5026
  %v5081 = vadd.f32 %v4881, %v5031
  %v5082 = vadd.f32 %v4882, %v5036
  %v5083 = vadd.f32 %v4883, %v5041
  %v5084 = vadd.f32 %v4884, %v5046
  %v5085 = vadd.f32 %v4885, %v5051
  %v5086 = vadd.f32 %v4886, %v5056
  %v5087 = vadd.f32 %v4887, %v5061
  %v5088 = vadd.f32 %v4888, %v5066
  %v5089 = vadd.f32 %v4889, %v5071
  %v5090 = vld [vmem:[%s5 + $0x28] sm:$0xff]
  %v5091 = vcombine.low %v4706, %v4716
  %v5092 = vcombine.low %v3603, 0.0
  %v5094 = vunpack.c.l.s4 1983009808
  %v5095 = vunpack.c.0.s8 %v5094
  %v5096 = vlaneseq
  %v5097 = vshrl.u32 %v5096, 7
  %v5098 = vsub.s32 %v5095, %v5097
  %v5099 = vrot.slane %v5092, %v5098
  %v5100 = vcombine.low %v4723, %v5099
  %v5101 = vsel %vm3139, %v5091, 0
  %v5103 = vsel %vm3139, %v5100, 0
  %5105 = vmatprep.subr.mxu0 0.0
  %5106 = vmatpush1.msra.mxu0 %v5090
  %5107 = vmatprep.subr.mxu0 0.0
  %5108 = vmatpush1.msra.mxu0 0.0
  %5109 = vmatprep.subr.mxu0 0.0
  %5110 = vmatpush1.msra.mxu0 0.0
  %5111 = vmatprep.subr.mxu0 0.0
  %5112 = vmatpush1.msra.mxu0 0.0
  %5113 = vmatprep.subr.mxu0 0.0
  %5114 = vmatpush1.msra.mxu0 0.0
  %5115 = vmatprep.subr.mxu0 0.0
  %5116 = vmatpush1.msra.mxu0 0.0
  %5117 = vmatprep.subr.mxu0 0.0
  %5118 = vmatpush1.msra.mxu0 0.0
  %5119 = vmatprep.subr.mxu0 0.0
  %5120 = vmatpush1.msra.mxu0 0.0
  %5121 = vmatprep.subr.mxu0 0.0
  %5122 = vmatpush1.msra.mxu0 0.0
  %5123 = vmatprep.subr.mxu0 0.0
  %5124 = vmatpush1.msra.mxu0 0.0
  %5125 = vmatprep.subr.mxu0 0.0
  %5126 = vmatpush1.msra.mxu0 0.0
  %5127 = vmatprep.subr.mxu0 0.0
  %5128 = vmatpush1.msra.mxu0 0.0
  %5129 = vmatprep.subr.mxu0 0.0
  %5130 = vmatpush1.msra.mxu0 0.0
  %5131 = vmatprep.subr.mxu0 0.0
  %5132 = vmatpush1.msra.mxu0 0.0
  %5133 = vmatprep.subr.mxu0 0.0
  %5134 = vmatpush1.msra.mxu0 0.0
  %5135 = vmatprep.subr.mxu0 0.0
  %5136 = vmatpush1.msra.mxu0 0.0
  %5137 = vmatprep.subr.mxu0 0.0
  %5138 = vmatpush1.msra.mxu0 0.0
  %5139 = vmatprep.subr.mxu0 0.0
  %5140 = vmatpush1.msra.mxu0 0.0
  %5141 = vmatprep.subr.mxu0 0.0
  %5142 = vmatpush1.msra.mxu0 0.0
  %5143 = vmatprep.subr.mxu0 0.0
  %5144 = vmatpush1.msra.mxu0 0.0
  %5145 = vmatprep.subr.mxu0 0.0
  %5146 = vmatpush1.msra.mxu0 0.0
  %5147 = vmatprep.subr.mxu0 0.0
  %5148 = vmatpush1.msra.mxu0 0.0
  %5149 = vmatprep.subr.mxu0 0.0
  %5150 = vmatpush1.msra.mxu0 0.0
  %5151 = vmatprep.subr.mxu0 0.0
  %5152 = vmatpush1.msra.mxu0 0.0
  %5153 = vmatprep.subr.mxu0 0.0
  %5154 = vmatpush1.msra.mxu0 0.0
  %5155 = vmatprep.subr.mxu0 0.0
  %5156 = vmatpush1.msra.mxu0 0.0
  %5157 = vmatprep.subr.mxu0 0.0
  %5158 = vmatpush1.msra.mxu0 0.0
  %5159 = vmatprep.subr.mxu0 0.0
  %5160 = vmatpush1.msra.mxu0 0.0
  %5161 = vmatprep.subr.mxu0 0.0
  %5162 = vmatpush1.msra.mxu0 0.0
  %5163 = vmatprep.subr.mxu0 0.0
  %5164 = vmatpush1.msra.mxu0 0.0
  %5165 = vmatprep.subr.mxu0 0.0
  %5166 = vmatpush1.msra.mxu0 0.0
  %5167 = vmatprep.subr.mxu0 0.0
  %5168 = vmatpush1.msra.mxu0 0.0
  %5169 = vmatprep.mubr.f32.mxu0 0.0
  %5170 = vmatmul.mubr.f32.gmra.mrb[0].mxu0 %v4501
  %v5171 = vpop.f32.mrb[0].mxu0
  %v5172 = vadd.f32 0.0, %v5171
  %v5173 = vpop.f32.mrb[0].mxu0
  %5174 = vmatprep.mubr.f32.mxu0 0.0
  %5175 = vmatmul.mubr.f32.gmra.mrb[0].mxu0 %v4503
  %v5176 = vpop.f32.mrb[0].mxu0
  %v5177 = vadd.f32 0.0, %v5176
  %v5178 = vpop.f32.mrb[0].mxu0
  %5179 = vmatprep.mubr.f32.mxu0 0.0
  %5180 = vmatmul.mubr.f32.gmra.mrb[0].mxu0 %v4505
  %v5181 = vpop.f32.mrb[0].mxu0
  %v5182 = vadd.f32 0.0, %v5181
  %v5183 = vpop.f32.mrb[0].mxu0
  %5184 = vmatprep.mubr.f32.mxu0 0.0
  %5185 = vmatmul.mubr.f32.gmra.mrb[0].mxu0 %v4507
  %v5186 = vpop.f32.mrb[0].mxu0
  %v5187 = vadd.f32 0.0, %v5186
  %v5188 = vpop.f32.mrb[0].mxu0
  %5189 = vmatprep.mubr.f32.mxu0 0.0
  %5190 = vmatmul.mubr.f32.gmra.mrb[0].mxu0 %v4509
  %v5191 = vpop.f32.mrb[0].mxu0
  %v5192 = vadd.f32 0.0, %v5191
  %v5193 = vpop.f32.mrb[0].mxu0
  %5194 = vmatprep.mubr.f32.mxu0 0.0
  %5195 = vmatmul.mubr.f32.gmra.mrb[0].mxu0 %v4511
  %v5196 = vpop.f32.mrb[0].mxu0
  %v5197 = vadd.f32 0.0, %v5196
  %v5198 = vpop.f32.mrb[0].mxu0
  %5199 = vmatprep.mubr.f32.mxu0 0.0
  %5200 = vmatmul.mubr.f32.gmra.mrb[0].mxu0 %v4513
  %v5201 = vpop.f32.mrb[0].mxu0
  %v5202 = vadd.f32 0.0, %v5201
  %v5203 = vpop.f32.mrb[0].mxu0
  %5204 = vmatprep.mubr.f32.mxu0 0.0
  %5205 = vmatmul.mubr.f32.gmra.mrb[0].mxu0 %v4515
  %v5206 = vpop.f32.mrb[0].mxu0
  %v5207 = vadd.f32 0.0, %v5206
  %v5208 = vpop.f32.mrb[0].mxu0
  %5209 = vmatprep.mubr.f32.mxu0 0.0
  %5210 = vmatmul.mubr.f32.gmra.mrb[0].mxu0 %v4517
  %v5211 = vpop.f32.mrb[0].mxu0
  %v5212 = vadd.f32 0.0, %v5211
  %v5213 = vpop.f32.mrb[0].mxu0
  %5214 = vmatprep.mubr.f32.mxu0 0.0
  %5215 = vmatmul.mubr.f32.gmra.mrb[0].mxu0 %v4519
  %v5216 = vpop.f32.mrb[0].mxu0
  %v5217 = vadd.f32 0.0, %v5216
  %v5218 = vpop.f32.mrb[0].mxu0
  %5219 = vmatprep.mubr.f32.mxu0 0.0
  %5220 = vmatmul.mubr.f32.gmra.mrb[0].mxu0 %v4521
  %v5221 = vpop.f32.mrb[0].mxu0
  %v5222 = vadd.f32 0.0, %v5221
  %v5223 = vpop.f32.mrb[0].mxu0
  %5224 = vmatprep.mubr.f32.mxu0 0.0
  %5225 = vmatmul.mubr.f32.gmra.mrb[0].mxu0 %v4523
  %v5226 = vpop.f32.mrb[0].mxu0
  %v5227 = vadd.f32 0.0, %v5226
  %v5228 = vpop.f32.mrb[0].mxu0
  %5229 = vmatprep.mubr.f32.mxu0 0.0
  %5230 = vmatmul.mubr.f32.gmra.mrb[0].mxu0 %v4525
  %v5231 = vpop.f32.mrb[0].mxu0
  %v5232 = vadd.f32 0.0, %v5231
  %v5233 = vpop.f32.mrb[0].mxu0
  %5234 = vmatprep.mubr.f32.mxu0 0.0
  %5235 = vmatmul.mubr.f32.gmra.mrb[0].mxu0 %v4527
  %v5236 = vpop.f32.mrb[0].mxu0
  %v5237 = vadd.f32 0.0, %v5236
  %v5238 = vpop.f32.mrb[0].mxu0
  %5239 = vmatprep.mubr.f32.mxu0 0.0
  %5240 = vmatmul.mubr.f32.gmra.mrb[0].mxu0 %v5101
  %v5241 = vpop.f32.mrb[0].mxu0
  %v5242 = vadd.f32 0.0, %v5241
  %v5243 = vpop.f32.mrb[0].mxu0
  %5244 = vmatprep.mubr.f32.mxu0 0.0
  %5245 = vmatmul.mubr.f32.gmra.mrb[0].mxu0 %v5103
  %v5246 = vpop.f32.mrb[0].mxu0
  %v5247 = vadd.f32 0.0, %v5246
  %v5248 = vpop.f32.mrb[0].mxu0
  %5249 = vdwg.mxu0
  %v5250 = vadd.f32 %v5074, %v5172
  %v5251 = vadd.f32 %v5075, %v5177
  %v5252 = vadd.f32 %v5076, %v5182
  %v5253 = vadd.f32 %v5077, %v5187
  %v5254 = vadd.f32 %v5078, %v5192
  %v5255 = vadd.f32 %v5079, %v5197
  %v5256 = vadd.f32 %v5080, %v5202
  %v5257 = vadd.f32 %v5081, %v5207
  %v5258 = vadd.f32 %v5082, %v5212
  %v5259 = vadd.f32 %v5083, %v5217
  %v5260 = vadd.f32 %v5084, %v5222
  %v5261 = vadd.f32 %v5085, %v5227
  %v5262 = vadd.f32 %v5086, %v5232
  %v5263 = vadd.f32 %v5087, %v5237
  %v5264 = vadd.f32 %v5088, %v5242
  %v5265 = vadd.f32 %v5089, %v5247
  %v5266 = vld [vmem:[%s5 + $0x30] sm:$0xff]
  %5267 = vmatprep.subr.mxu0 0.0
  %5268 = vmatpush1.msra.mxu0 %v5266
  %5269 = vmatprep.subr.mxu0 0.0
  %5270 = vmatpush1.msra.mxu0 0.0
  %5271 = vmatprep.subr.mxu0 0.0
  %5272 = vmatpush1.msra.mxu0 0.0
  %5273 = vmatprep.subr.mxu0 0.0
  %5274 = vmatpush1.msra.mxu0 0.0
  %5275 = vmatprep.subr.mxu0 0.0
  %5276 = vmatpush1.msra.mxu0 0.0
  %5277 = vmatprep.subr.mxu0 0.0
  %5278 = vmatpush1.msra.mxu0 0.0
  %5279 = vmatprep.subr.mxu0 0.0
  %5280 = vmatpush1.msra.mxu0 0.0
  %5281 = vmatprep.subr.mxu0 0.0
  %5282 = vmatpush1.msra.mxu0 0.0
  %5283 = vmatprep.subr.mxu0 0.0
  %5284 = vmatpush1.msra.mxu0 0.0
  %5285 = vmatprep.subr.mxu0 0.0
  %5286 = vmatpush1.msra.mxu0 0.0
  %5287 = vmatprep.subr.mxu0 0.0
  %5288 = vmatpush1.msra.mxu0 0.0
  %5289 = vmatprep.subr.mxu0 0.0
  %5290 = vmatpush1.msra.mxu0 0.0
  %5291 = vmatprep.subr.mxu0 0.0
  %5292 = vmatpush1.msra.mxu0 0.0
  %5293 = vmatprep.subr.mxu0 0.0
  %5294 = vmatpush1.msra.mxu0 0.0
  %5295 = vmatprep.subr.mxu0 0.0
  %5296 = vmatpush1.msra.mxu0 0.0
  %5297 = vmatprep.subr.mxu0 0.0
  %5298 = vmatpush1.msra.mxu0 0.0
  %5299 = vmatprep.subr.mxu0 0.0
  %5300 = vmatpush1.msra.mxu0 0.0
  %5301 = vmatprep.subr.mxu0 0.0
  %5302 = vmatpush1.msra.mxu0 0.0
  %5303 = vmatprep.subr.mxu0 0.0
  %5304 = vmatpush1.msra.mxu0 0.0
  %5305 = vmatprep.subr.mxu0 0.0
  %5306 = vmatpush1.msra.mxu0 0.0
  %5307 = vmatprep.subr.mxu0 0.0
  %5308 = vmatpush1.msra.mxu0 0.0
  %5309 = vmatprep.subr.mxu0 0.0
  %5310 = vmatpush1.msra.mxu0 0.0
  %5311 = vmatprep.subr.mxu0 0.0
  %5312 = vmatpush1.msra.mxu0 0.0
  %5313 = vmatprep.subr.mxu0 0.0
  %5314 = vmatpush1.msra.mxu0 0.0
  %5315 = vmatprep.subr.mxu0 0.0
  %5316 = vmatpush1.msra.mxu0 0.0
  %5317 = vmatprep.subr.mxu0 0.0
  %5318 = vmatpush1.msra.mxu0 0.0
  %5319 = vmatprep.subr.mxu0 0.0
  %5320 = vmatpush1.msra.mxu0 0.0
  %5321 = vmatprep.subr.mxu0 0.0
  %5322 = vmatpush1.msra.mxu0 0.0
  %5323 = vmatprep.subr.mxu0 0.0
  %5324 = vmatpush1.msra.mxu0 0.0
  %5325 = vmatprep.subr.mxu0 0.0
  %5326 = vmatpush1.msra.mxu0 0.0
  %5327 = vmatprep.subr.mxu0 0.0
  %5328 = vmatpush1.msra.mxu0 0.0
  %5329 = vmatprep.subr.mxu0 0.0
  %5330 = vmatpush1.msra.mxu0 0.0
  %5331 = vmatprep.mubr.f32.mxu0 0.0
  %5332 = vmatmul.mubr.f32.gmra.mrb[0].mxu0 %v4261
  %v5333 = vpop.f32.mrb[0].mxu0
  %v5334 = vadd.f32 0.0, %v5333
  %v5335 = vpop.f32.mrb[0].mxu0
  %5336 = vmatprep.mubr.f32.mxu0 0.0
  %5337 = vmatmul.mubr.f32.gmra.mrb[0].mxu0 %v4263
  %v5338 = vpop.f32.mrb[0].mxu0
  %v5339 = vadd.f32 0.0, %v5338
  %v5340 = vpop.f32.mrb[0].mxu0
  %5341 = vmatprep.mubr.f32.mxu0 0.0
  %5342 = vmatmul.mubr.f32.gmra.mrb[0].mxu0 %v4265
  %v5343 = vpop.f32.mrb[0].mxu0
  %v5344 = vadd.f32 0.0, %v5343
  %v5345 = vpop.f32.mrb[0].mxu0
  %5346 = vmatprep.mubr.f32.mxu0 0.0
  %5347 = vmatmul.mubr.f32.gmra.mrb[0].mxu0 %v4267
  %v5348 = vpop.f32.mrb[0].mxu0
  %v5349 = vadd.f32 0.0, %v5348
  %v5350 = vpop.f32.mrb[0].mxu0
  %5351 = vmatprep.mubr.f32.mxu0 0.0
  %5352 = vmatmul.mubr.f32.gmra.mrb[0].mxu0 %v4269
  %v5353 = vpop.f32.mrb[0].mxu0
  %v5354 = vadd.f32 0.0, %v5353
  %v5355 = vpop.f32.mrb[0].mxu0
  %5356 = vmatprep.mubr.f32.mxu0 0.0
  %5357 = vmatmul.mubr.f32.gmra.mrb[0].mxu0 %v4271
  %v5358 = vpop.f32.mrb[0].mxu0
  %v5359 = vadd.f32 0.0, %v5358
  %v5360 = vpop.f32.mrb[0].mxu0
  %5361 = vmatprep.mubr.f32.mxu0 0.0
  %5362 = vmatmul.mubr.f32.gmra.mrb[0].mxu0 %v4273
  %v5363 = vpop.f32.mrb[0].mxu0
  %v5364 = vadd.f32 0.0, %v5363
  %v5365 = vpop.f32.mrb[0].mxu0
  %5366 = vmatprep.mubr.f32.mxu0 0.0
  %5367 = vmatmul.mubr.f32.gmra.mrb[0].mxu0 %v4275
  %v5368 = vpop.f32.mrb[0].mxu0
  %v5369 = vadd.f32 0.0, %v5368
  %v5370 = vpop.f32.mrb[0].mxu0
  %5371 = vmatprep.mubr.f32.mxu0 0.0
  %5372 = vmatmul.mubr.f32.gmra.mrb[0].mxu0 %v4277
  %v5373 = vpop.f32.mrb[0].mxu0
  %v5374 = vadd.f32 0.0, %v5373
  %v5375 = vpop.f32.mrb[0].mxu0
  %5376 = vmatprep.mubr.f32.mxu0 0.0
  %5377 = vmatmul.mubr.f32.gmra.mrb[0].mxu0 %v4279
  %v5378 = vpop.f32.mrb[0].mxu0
  %v5379 = vadd.f32 0.0, %v5378
  %v5380 = vpop.f32.mrb[0].mxu0
  %5381 = vmatprep.mubr.f32.mxu0 0.0
  %5382 = vmatmul.mubr.f32.gmra.mrb[0].mxu0 %v4281
  %v5383 = vpop.f32.mrb[0].mxu0
  %v5384 = vadd.f32 0.0, %v5383
  %v5385 = vpop.f32.mrb[0].mxu0
  %5386 = vmatprep.mubr.f32.mxu0 0.0
  %5387 = vmatmul.mubr.f32.gmra.mrb[0].mxu0 %v4283
  %v5388 = vpop.f32.mrb[0].mxu0
  %v5389 = vadd.f32 0.0, %v5388
  %v5390 = vpop.f32.mrb[0].mxu0
  %5391 = vmatprep.mubr.f32.mxu0 0.0
  %5392 = vmatmul.mubr.f32.gmra.mrb[0].mxu0 %v4725
  %v5393 = vpop.f32.mrb[0].mxu0
  %v5394 = vadd.f32 0.0, %v5393
  %v5395 = vpop.f32.mrb[0].mxu0
  %5396 = vmatprep.mubr.f32.mxu0 0.0
  %5397 = vmatmul.mubr.f32.gmra.mrb[0].mxu0 %v4727
  %v5398 = vpop.f32.mrb[0].mxu0
  %v5399 = vadd.f32 0.0, %v5398
  %v5400 = vpop.f32.mrb[0].mxu0
  %5401 = vmatprep.mubr.f32.mxu0 0.0
  %5402 = vmatmul.mubr.f32.gmra.mrb[0].mxu0 %v3844
  %v5403 = vpop.f32.mrb[0].mxu0
  %v5404 = vadd.f32 0.0, %v5403
  %v5405 = vpop.f32.mrb[0].mxu0
  %5406 = vmatprep.mubr.f32.mxu0 0.0
  %5407 = vmatmul.mubr.f32.gmra.mrb[0].mxu0 %v3844
  %v5408 = vpop.f32.mrb[0].mxu0
  %v5409 = vadd.f32 0.0, %v5408
  %v5410 = vpop.f32.mrb[0].mxu0
  %5411 = vdwg.mxu0
  %v5412 = vadd.f32 %v5250, %v5334
  %v5413 = vadd.f32 %v5251, %v5339
  %v5414 = vadd.f32 %v5252, %v5344
  %v5415 = vadd.f32 %v5253, %v5349
  %v5416 = vadd.f32 %v5254, %v5354
  %v5417 = vadd.f32 %v5255, %v5359
  %v5418 = vadd.f32 %v5256, %v5364
  %v5419 = vadd.f32 %v5257, %v5369
  %v5420 = vadd.f32 %v5258, %v5374
  %v5421 = vadd.f32 %v5259, %v5379
  %v5422 = vadd.f32 %v5260, %v5384
  %v5423 = vadd.f32 %v5261, %v5389
  %v5424 = vadd.f32 %v5262, %v5394
  %v5425 = vadd.f32 %v5263, %v5399
  %v5426 = vadd.f32 %v5264, %v5404
  %v5427 = vadd.f32 %v5265, %v5409
  %v5428 = vld [vmem:[%s5 + $0x38] sm:$0xff]
  %5429 = vmatprep.subr.mxu0 0.0
  %5430 = vmatpush1.msra.mxu0 %v5428
  %5431 = vmatprep.subr.mxu0 0.0
  %5432 = vmatpush1.msra.mxu0 0.0
  %5433 = vmatprep.subr.mxu0 0.0
  %5434 = vmatpush1.msra.mxu0 0.0
  %5435 = vmatprep.subr.mxu0 0.0
  %5436 = vmatpush1.msra.mxu0 0.0
  %5437 = vmatprep.subr.mxu0 0.0
  %5438 = vmatpush1.msra.mxu0 0.0
  %5439 = vmatprep.subr.mxu0 0.0
  %5440 = vmatpush1.msra.mxu0 0.0
  %5441 = vmatprep.subr.mxu0 0.0
  %5442 = vmatpush1.msra.mxu0 0.0
  %5443 = vmatprep.subr.mxu0 0.0
  %5444 = vmatpush1.msra.mxu0 0.0
  %5445 = vmatprep.subr.mxu0 0.0
  %5446 = vmatpush1.msra.mxu0 0.0
  %5447 = vmatprep.subr.mxu0 0.0
  %5448 = vmatpush1.msra.mxu0 0.0
  %5449 = vmatprep.subr.mxu0 0.0
  %5450 = vmatpush1.msra.mxu0 0.0
  %5451 = vmatprep.subr.mxu0 0.0
  %5452 = vmatpush1.msra.mxu0 0.0
  %5453 = vmatprep.subr.mxu0 0.0
  %5454 = vmatpush1.msra.mxu0 0.0
  %5455 = vmatprep.subr.mxu0 0.0
  %5456 = vmatpush1.msra.mxu0 0.0
  %5457 = vmatprep.subr.mxu0 0.0
  %5458 = vmatpush1.msra.mxu0 0.0
  %5459 = vmatprep.subr.mxu0 0.0
  %5460 = vmatpush1.msra.mxu0 0.0
  %5461 = vmatprep.subr.mxu0 0.0
  %5462 = vmatpush1.msra.mxu0 0.0
  %5463 = vmatprep.subr.mxu0 0.0
  %5464 = vmatpush1.msra.mxu0 0.0
  %5465 = vmatprep.subr.mxu0 0.0
  %5466 = vmatpush1.msra.mxu0 0.0
  %5467 = vmatprep.subr.mxu0 0.0
  %5468 = vmatpush1.msra.mxu0 0.0
  %5469 = vmatprep.subr.mxu0 0.0
  %5470 = vmatpush1.msra.mxu0 0.0
  %5471 = vmatprep.subr.mxu0 0.0
  %5472 = vmatpush1.msra.mxu0 0.0
  %5473 = vmatprep.subr.mxu0 0.0
  %5474 = vmatpush1.msra.mxu0 0.0
  %5475 = vmatprep.subr.mxu0 0.0
  %5476 = vmatpush1.msra.mxu0 0.0
  %5477 = vmatprep.subr.mxu0 0.0
  %5478 = vmatpush1.msra.mxu0 0.0
  %5479 = vmatprep.subr.mxu0 0.0
  %5480 = vmatpush1.msra.mxu0 0.0
  %5481 = vmatprep.subr.mxu0 0.0
  %5482 = vmatpush1.msra.mxu0 0.0
  %5483 = vmatprep.subr.mxu0 0.0
  %5484 = vmatpush1.msra.mxu0 0.0
  %5485 = vmatprep.subr.mxu0 0.0
  %5486 = vmatpush1.msra.mxu0 0.0
  %5487 = vmatprep.subr.mxu0 0.0
  %5488 = vmatpush1.msra.mxu0 0.0
  %5489 = vmatprep.subr.mxu0 0.0
  %5490 = vmatpush1.msra.mxu0 0.0
  %5491 = vmatprep.subr.mxu0 0.0
  %5492 = vmatpush1.msra.mxu0 0.0
  %5493 = vmatprep.mubr.f32.mxu0 0.0
  %5494 = vmatmul.mubr.f32.gmra.mrb[0].mxu0 %v3850
  %v5495 = vpop.f32.mrb[0].mxu0
  %v5496 = vadd.f32 0.0, %v5495
  %v5497 = vpop.f32.mrb[0].mxu0
  %5498 = vmatprep.mubr.f32.mxu0 0.0
  %5499 = vmatmul.mubr.f32.gmra.mrb[0].mxu0 %v3852
  %v5500 = vpop.f32.mrb[0].mxu0
  %v5501 = vadd.f32 0.0, %v5500
  %v5502 = vpop.f32.mrb[0].mxu0
  %5503 = vmatprep.mubr.f32.mxu0 0.0
  %5504 = vmatmul.mubr.f32.gmra.mrb[0].mxu0 %v3854
  %v5505 = vpop.f32.mrb[0].mxu0
  %v5506 = vadd.f32 0.0, %v5505
  %v5507 = vpop.f32.mrb[0].mxu0
  %5508 = vmatprep.mubr.f32.mxu0 0.0
  %5509 = vmatmul.mubr.f32.gmra.mrb[0].mxu0 %v3856
  %v5510 = vpop.f32.mrb[0].mxu0
  %v5511 = vadd.f32 0.0, %v5510
  %v5512 = vpop.f32.mrb[0].mxu0
  %5513 = vmatprep.mubr.f32.mxu0 0.0
  %5514 = vmatmul.mubr.f32.gmra.mrb[0].mxu0 %v3858
  %v5515 = vpop.f32.mrb[0].mxu0
  %v5516 = vadd.f32 0.0, %v5515
  %v5517 = vpop.f32.mrb[0].mxu0
  %5518 = vmatprep.mubr.f32.mxu0 0.0
  %5519 = vmatmul.mubr.f32.gmra.mrb[0].mxu0 %v3860
  %v5520 = vpop.f32.mrb[0].mxu0
  %v5521 = vadd.f32 0.0, %v5520
  %v5522 = vpop.f32.mrb[0].mxu0
  %5523 = vmatprep.mubr.f32.mxu0 0.0
  %5524 = vmatmul.mubr.f32.gmra.mrb[0].mxu0 %v3862
  %v5525 = vpop.f32.mrb[0].mxu0
  %v5526 = vadd.f32 0.0, %v5525
  %v5527 = vpop.f32.mrb[0].mxu0
  %5528 = vmatprep.mubr.f32.mxu0 0.0
  %5529 = vmatmul.mubr.f32.gmra.mrb[0].mxu0 %v3864
  %v5530 = vpop.f32.mrb[0].mxu0
  %v5531 = vadd.f32 0.0, %v5530
  %v5532 = vpop.f32.mrb[0].mxu0
  %5533 = vmatprep.mubr.f32.mxu0 0.0
  %5534 = vmatmul.mubr.f32.gmra.mrb[0].mxu0 %v3866
  %v5535 = vpop.f32.mrb[0].mxu0
  %v5536 = vadd.f32 0.0, %v5535
  %v5537 = vpop.f32.mrb[0].mxu0
  %5538 = vmatprep.mubr.f32.mxu0 0.0
  %5539 = vmatmul.mubr.f32.gmra.mrb[0].mxu0 %v3868
  %v5540 = vpop.f32.mrb[0].mxu0
  %v5541 = vadd.f32 0.0, %v5540
  %v5542 = vpop.f32.mrb[0].mxu0
  %5543 = vmatprep.mubr.f32.mxu0 0.0
  %5544 = vmatmul.mubr.f32.gmra.mrb[0].mxu0 %v3870
  %v5545 = vpop.f32.mrb[0].mxu0
  %v5546 = vadd.f32 0.0, %v5545
  %v5547 = vpop.f32.mrb[0].mxu0
  %5548 = vmatprep.mubr.f32.mxu0 0.0
  %5549 = vmatmul.mubr.f32.gmra.mrb[0].mxu0 %v3872
  %v5550 = vpop.f32.mrb[0].mxu0
  %v5551 = vadd.f32 0.0, %v5550
  %v5552 = vpop.f32.mrb[0].mxu0
  %5553 = vmatprep.mubr.f32.mxu0 0.0
  %5554 = vmatmul.mubr.f32.gmra.mrb[0].mxu0 %v4925
  %v5555 = vpop.f32.mrb[0].mxu0
  %v5556 = vadd.f32 0.0, %v5555
  %v5557 = vpop.f32.mrb[0].mxu0
  %5558 = vmatprep.mubr.f32.mxu0 0.0
  %5559 = vmatmul.mubr.f32.gmra.mrb[0].mxu0 %v4927
  %v5560 = vpop.f32.mrb[0].mxu0
  %v5561 = vadd.f32 0.0, %v5560
  %v5562 = vpop.f32.mrb[0].mxu0
  %5563 = vmatprep.mubr.f32.mxu0 0.0
  %5564 = vmatmul.mubr.f32.gmra.mrb[0].mxu0 %v3844
  %v5565 = vpop.f32.mrb[0].mxu0
  %v5566 = vadd.f32 0.0, %v5565
  %v5567 = vpop.f32.mrb[0].mxu0
  %5568 = vmatprep.mubr.f32.mxu0 0.0
  %5569 = vmatmul.mubr.f32.gmra.mrb[0].mxu0 %v3844
  %v5570 = vpop.f32.mrb[0].mxu0
  %v5571 = vadd.f32 0.0, %v5570
  %v5572 = vpop.f32.mrb[0].mxu0
  %5573 = vdwg.mxu0
  %v5574 = vadd.f32 %v5412, %v5496
  %v5575 = vadd.f32 %v5413, %v5501
  %v5576 = vadd.f32 %v5414, %v5506
  %v5577 = vadd.f32 %v5415, %v5511
  %v5578 = vadd.f32 %v5416, %v5516
  %v5579 = vadd.f32 %v5417, %v5521
  %v5580 = vadd.f32 %v5418, %v5526
  %v5581 = vadd.f32 %v5419, %v5531
  %v5582 = vadd.f32 %v5420, %v5536
  %v5583 = vadd.f32 %v5421, %v5541
  %v5584 = vadd.f32 %v5422, %v5546
  %v5585 = vadd.f32 %v5423, %v5551
  %v5586 = vadd.f32 %v5424, %v5556
  %v5587 = vadd.f32 %v5425, %v5561
  %v5588 = vadd.f32 %v5426, %v5566
  %v5589 = vadd.f32 %v5427, %v5571
  %v5590 = vld [vmem:[%s5 + $0x40] sm:$0xff]
  %5591 = vmatprep.subr.mxu0 0.0
  %5592 = vmatpush1.msra.mxu0 %v5590
  %5593 = vmatprep.subr.mxu0 0.0
  %5594 = vmatpush1.msra.mxu0 0.0
  %5595 = vmatprep.subr.mxu0 0.0
  %5596 = vmatpush1.msra.mxu0 0.0
  %5597 = vmatprep.subr.mxu0 0.0
  %5598 = vmatpush1.msra.mxu0 0.0
  %5599 = vmatprep.subr.mxu0 0.0
  %5600 = vmatpush1.msra.mxu0 0.0
  %5601 = vmatprep.subr.mxu0 0.0
  %5602 = vmatpush1.msra.mxu0 0.0
  %5603 = vmatprep.subr.mxu0 0.0
  %5604 = vmatpush1.msra.mxu0 0.0
  %5605 = vmatprep.subr.mxu0 0.0
  %5606 = vmatpush1.msra.mxu0 0.0
  %5607 = vmatprep.subr.mxu0 0.0
  %5608 = vmatpush1.msra.mxu0 0.0
  %5609 = vmatprep.subr.mxu0 0.0
  %5610 = vmatpush1.msra.mxu0 0.0
  %5611 = vmatprep.subr.mxu0 0.0
  %5612 = vmatpush1.msra.mxu0 0.0
  %5613 = vmatprep.subr.mxu0 0.0
  %5614 = vmatpush1.msra.mxu0 0.0
  %5615 = vmatprep.subr.mxu0 0.0
  %5616 = vmatpush1.msra.mxu0 0.0
  %5617 = vmatprep.subr.mxu0 0.0
  %5618 = vmatpush1.msra.mxu0 0.0
  %5619 = vmatprep.subr.mxu0 0.0
  %5620 = vmatpush1.msra.mxu0 0.0
  %5621 = vmatprep.subr.mxu0 0.0
  %5622 = vmatpush1.msra.mxu0 0.0
  %5623 = vmatprep.subr.mxu0 0.0
  %5624 = vmatpush1.msra.mxu0 0.0
  %5625 = vmatprep.subr.mxu0 0.0
  %5626 = vmatpush1.msra.mxu0 0.0
  %5627 = vmatprep.subr.mxu0 0.0
  %5628 = vmatpush1.msra.mxu0 0.0
  %5629 = vmatprep.subr.mxu0 0.0
  %5630 = vmatpush1.msra.mxu0 0.0
  %5631 = vmatprep.subr.mxu0 0.0
  %5632 = vmatpush1.msra.mxu0 0.0
  %5633 = vmatprep.subr.mxu0 0.0
  %5634 = vmatpush1.msra.mxu0 0.0
  %5635 = vmatprep.subr.mxu0 0.0
  %5636 = vmatpush1.msra.mxu0 0.0
  %5637 = vmatprep.subr.mxu0 0.0
  %5638 = vmatpush1.msra.mxu0 0.0
  %5639 = vmatprep.subr.mxu0 0.0
  %5640 = vmatpush1.msra.mxu0 0.0
  %5641 = vmatprep.subr.mxu0 0.0
  %5642 = vmatpush1.msra.mxu0 0.0
  %5643 = vmatprep.subr.mxu0 0.0
  %5644 = vmatpush1.msra.mxu0 0.0
  %5645 = vmatprep.subr.mxu0 0.0
  %5646 = vmatpush1.msra.mxu0 0.0
  %5647 = vmatprep.subr.mxu0 0.0
  %5648 = vmatpush1.msra.mxu0 0.0
  %5649 = vmatprep.subr.mxu0 0.0
  %5650 = vmatpush1.msra.mxu0 0.0
  %5651 = vmatprep.subr.mxu0 0.0
  %5652 = vmatpush1.msra.mxu0 0.0
  %5653 = vmatprep.subr.mxu0 0.0
  %5654 = vmatpush1.msra.mxu0 0.0
  %5655 = vmatprep.mubr.f32.mxu0 0.0
  %5656 = vmatmul.mubr.f32.gmra.mrb[0].mxu0 %v4505
  %v5657 = vpop.f32.mrb[0].mxu0
  %v5658 = vadd.f32 0.0, %v5657
  %v5659 = vpop.f32.mrb[0].mxu0
  %5660 = vmatprep.mubr.f32.mxu0 0.0
  %5661 = vmatmul.mubr.f32.gmra.mrb[0].mxu0 %v4507
  %v5662 = vpop.f32.mrb[0].mxu0
  %v5663 = vadd.f32 0.0, %v5662
  %v5664 = vpop.f32.mrb[0].mxu0
  %5665 = vmatprep.mubr.f32.mxu0 0.0
  %5666 = vmatmul.mubr.f32.gmra.mrb[0].mxu0 %v4509
  %v5667 = vpop.f32.mrb[0].mxu0
  %v5668 = vadd.f32 0.0, %v5667
  %v5669 = vpop.f32.mrb[0].mxu0
  %5670 = vmatprep.mubr.f32.mxu0 0.0
  %5671 = vmatmul.mubr.f32.gmra.mrb[0].mxu0 %v4511
  %v5672 = vpop.f32.mrb[0].mxu0
  %v5673 = vadd.f32 0.0, %v5672
  %v5674 = vpop.f32.mrb[0].mxu0
  %5675 = vmatprep.mubr.f32.mxu0 0.0
  %5676 = vmatmul.mubr.f32.gmra.mrb[0].mxu0 %v4513
  %v5677 = vpop.f32.mrb[0].mxu0
  %v5678 = vadd.f32 0.0, %v5677
  %v5679 = vpop.f32.mrb[0].mxu0
  %5680 = vmatprep.mubr.f32.mxu0 0.0
  %5681 = vmatmul.mubr.f32.gmra.mrb[0].mxu0 %v4515
  %v5682 = vpop.f32.mrb[0].mxu0
  %v5683 = vadd.f32 0.0, %v5682
  %v5684 = vpop.f32.mrb[0].mxu0
  %5685 = vmatprep.mubr.f32.mxu0 0.0
  %5686 = vmatmul.mubr.f32.gmra.mrb[0].mxu0 %v4517
  %v5687 = vpop.f32.mrb[0].mxu0
  %v5688 = vadd.f32 0.0, %v5687
  %v5689 = vpop.f32.mrb[0].mxu0
  %5690 = vmatprep.mubr.f32.mxu0 0.0
  %5691 = vmatmul.mubr.f32.gmra.mrb[0].mxu0 %v4519
  %v5692 = vpop.f32.mrb[0].mxu0
  %v5693 = vadd.f32 0.0, %v5692
  %v5694 = vpop.f32.mrb[0].mxu0
  %5695 = vmatprep.mubr.f32.mxu0 0.0
  %5696 = vmatmul.mubr.f32.gmra.mrb[0].mxu0 %v4521
  %v5697 = vpop.f32.mrb[0].mxu0
  %v5698 = vadd.f32 0.0, %v5697
  %v5699 = vpop.f32.mrb[0].mxu0
  %5700 = vmatprep.mubr.f32.mxu0 0.0
  %5701 = vmatmul.mubr.f32.gmra.mrb[0].mxu0 %v4523
  %v5702 = vpop.f32.mrb[0].mxu0
  %v5703 = vadd.f32 0.0, %v5702
  %v5704 = vpop.f32.mrb[0].mxu0
  %5705 = vmatprep.mubr.f32.mxu0 0.0
  %5706 = vmatmul.mubr.f32.gmra.mrb[0].mxu0 %v4525
  %v5707 = vpop.f32.mrb[0].mxu0
  %v5708 = vadd.f32 0.0, %v5707
  %v5709 = vpop.f32.mrb[0].mxu0
  %5710 = vmatprep.mubr.f32.mxu0 0.0
  %5711 = vmatmul.mubr.f32.gmra.mrb[0].mxu0 %v4527
  %v5712 = vpop.f32.mrb[0].mxu0
  %v5713 = vadd.f32 0.0, %v5712
  %v5714 = vpop.f32.mrb[0].mxu0
  %5715 = vmatprep.mubr.f32.mxu0 0.0
  %5716 = vmatmul.mubr.f32.gmra.mrb[0].mxu0 %v5101
  %v5717 = vpop.f32.mrb[0].mxu0
  %v5718 = vadd.f32 0.0, %v5717
  %v5719 = vpop.f32.mrb[0].mxu0
  %5720 = vmatprep.mubr.f32.mxu0 0.0
  %5721 = vmatmul.mubr.f32.gmra.mrb[0].mxu0 %v5103
  %v5722 = vpop.f32.mrb[0].mxu0
  %v5723 = vadd.f32 0.0, %v5722
  %v5724 = vpop.f32.mrb[0].mxu0
  %5725 = vmatprep.mubr.f32.mxu0 0.0
  %5726 = vmatmul.mubr.f32.gmra.mrb[0].mxu0 %v3844
  %v5727 = vpop.f32.mrb[0].mxu0
  %v5728 = vadd.f32 0.0, %v5727
  %v5729 = vpop.f32.mrb[0].mxu0
  %5730 = vmatprep.mubr.f32.mxu0 0.0
  %5731 = vmatmul.mubr.f32.gmra.mrb[0].mxu0 %v3844
  %v5732 = vpop.f32.mrb[0].mxu0
  %v5733 = vadd.f32 0.0, %v5732
  %v5734 = vpop.f32.mrb[0].mxu0
  %5735 = vdwg.mxu0
  %v5736 = vadd.f32 %v5574, %v5658
  %v5737 = vadd.f32 %v5575, %v5663
  %v5738 = vadd.f32 %v5576, %v5668
  %v5739 = vadd.f32 %v5577, %v5673
  %v5740 = vadd.f32 %v5578, %v5678
  %v5741 = vadd.f32 %v5579, %v5683
  %v5742 = vadd.f32 %v5580, %v5688
  %v5743 = vadd.f32 %v5581, %v5693
  %v5744 = vadd.f32 %v5582, %v5698
  %v5745 = vadd.f32 %v5583, %v5703
  %v5746 = vadd.f32 %v5584, %v5708
  %v5747 = vadd.f32 %v5585, %v5713
  %v5748 = vadd.f32 %v5586, %v5718
  %v5749 = vadd.f32 %v5587, %v5723
  %v5750 = vadd.f32 %v5588, %v5728
  %v5751 = vadd.f32 %v5589, %v5733
  %v5752 = vld [vmem:[%s6] sm:$0x1]
  %v5754 = vlaneseq
  %v5755 = vshrl.u32 %v5754, 7
  %v5756 = vsub.s32 0, %v5755
  %v5757 = vrot.slane %v5752, %v5756
  %v5759 = vadd.f32 %v5736, %v5757
  %v5760 = vadd.f32 %v5737, %v5757
  %v5761 = vadd.f32 %v5738, %v5757
  %v5762 = vadd.f32 %v5739, %v5757
  %v5763 = vadd.f32 %v5740, %v5757
  %v5764 = vadd.f32 %v5741, %v5757
  %v5765 = vadd.f32 %v5742, %v5757
  %v5766 = vadd.f32 %v5743, %v5757
  %v5767 = vadd.f32 %v5744, %v5757
  %v5768 = vadd.f32 %v5745, %v5757
  %v5769 = vadd.f32 %v5746, %v5757
  %v5770 = vadd.f32 %v5747, %v5757
  %v5771 = vadd.f32 %v5748, %v5757
  %v5772 = vadd.f32 %v5749, %v5757
  %v5773 = vadd.f32 %v5750, %v5757
  %v5774 = vadd.f32 %v5751, %v5757
  %v5775 = vsel %vm3139, %v5759, 0.0
  %v5776 = vsel %vm3139, %v5760, 0.0
  %v5777 = vadd.f32 %v5775, %v5776
  %v5778 = vsel %vm3139, %v5761, 0.0
  %v5779 = vadd.f32 %v5777, %v5778
  %v5780 = vsel %vm3139, %v5762, 0.0
  %v5781 = vadd.f32 %v5779, %v5780
  %v5782 = vsel %vm3139, %v5763, 0.0
  %v5783 = vadd.f32 %v5781, %v5782
  %v5784 = vsel %vm3139, %v5764, 0.0
  %v5785 = vadd.f32 %v5783, %v5784
  %v5786 = vsel %vm3139, %v5765, 0.0
  %v5787 = vadd.f32 %v5785, %v5786
  %v5788 = vsel %vm3139, %v5766, 0.0
  %v5789 = vadd.f32 %v5787, %v5788
  %v5790 = vsel %vm3139, %v5767, 0.0
  %v5791 = vadd.f32 %v5789, %v5790
  %v5792 = vsel %vm3139, %v5768, 0.0
  %v5793 = vadd.f32 %v5791, %v5792
  %v5794 = vsel %vm3139, %v5769, 0.0
  %v5795 = vadd.f32 %v5793, %v5794
  %v5796 = vsel %vm3139, %v5770, 0.0
  %v5797 = vadd.f32 %v5795, %v5796
  %v5798 = vsel %vm3139, %v5771, 0.0
  %v5799 = vadd.f32 %v5797, %v5798
  %v5800 = vsel %vm3139, %v5772, 0.0
  %v5801 = vadd.f32 %v5799, %v5800
  %v5802 = vsel %vm3139, %v5773, 0.0
  %v5803 = vadd.f32 %v5801, %v5802
  %v5804 = vsel %vm3139, %v5774, 0.0
  %v5805 = vadd.f32 %v5803, %v5804
  %v5806 = vrot.slane %v5805, 4
  %v5807 = vadd.f32 %v5805, %v5806
  %v5808 = vrot.slane %v5807, 2
  %v5809 = vadd.f32 %v5807, %v5808
  %v5810 = vrot.slane %v5809, 1
  %v5811 = vadd.f32 %v5809, %v5810
  %v5812 = vmul.f32 %v5811, %v3177
  %v5813 = vsub.f32 %v5759, %v5812
  %v5814 = vsub.f32 %v5760, %v5812
  %v5815 = vsub.f32 %v5761, %v5812
  %v5816 = vsub.f32 %v5762, %v5812
  %v5817 = vsub.f32 %v5763, %v5812
  %v5818 = vsub.f32 %v5764, %v5812
  %v5819 = vsub.f32 %v5765, %v5812
  %v5820 = vsub.f32 %v5766, %v5812
  %v5821 = vsub.f32 %v5767, %v5812
  %v5822 = vsub.f32 %v5768, %v5812
  %v5823 = vsub.f32 %v5769, %v5812
  %v5824 = vsub.f32 %v5770, %v5812
  %v5825 = vsub.f32 %v5771, %v5812
  %v5826 = vsub.f32 %v5772, %v5812
  %v5827 = vsub.f32 %v5773, %v5812
  %v5828 = vsub.f32 %v5774, %v5812
  %v5829 = vmul.f32 %v5813, %v5813
  %v5830 = vmul.f32 %v5814, %v5814
  %v5831 = vmul.f32 %v5815, %v5815
  %v5832 = vmul.f32 %v5816, %v5816
  %v5833 = vmul.f32 %v5817, %v5817
  %v5834 = vmul.f32 %v5818, %v5818
  %v5835 = vmul.f32 %v5819, %v5819
  %v5836 = vmul.f32 %v5820, %v5820
  %v5837 = vmul.f32 %v5821, %v5821
  %v5838 = vmul.f32 %v5822, %v5822
  %v5839 = vmul.f32 %v5823, %v5823
  %v5840 = vmul.f32 %v5824, %v5824
  %v5841 = vmul.f32 %v5825, %v5825
  %v5842 = vmul.f32 %v5826, %v5826
  %v5843 = vmul.f32 %v5827, %v5827
  %v5844 = vmul.f32 %v5828, %v5828
  %v5845 = vsel %vm3139, %v5829, 0.0
  %v5846 = vsel %vm3139, %v5830, 0.0
  %v5847 = vadd.f32 %v5845, %v5846
  %v5848 = vsel %vm3139, %v5831, 0.0
  %v5849 = vadd.f32 %v5847, %v5848
  %v5850 = vsel %vm3139, %v5832, 0.0
  %v5851 = vadd.f32 %v5849, %v5850
  %v5852 = vsel %vm3139, %v5833, 0.0
  %v5853 = vadd.f32 %v5851, %v5852
  %v5854 = vsel %vm3139, %v5834, 0.0
  %v5855 = vadd.f32 %v5853, %v5854
  %v5856 = vsel %vm3139, %v5835, 0.0
  %v5857 = vadd.f32 %v5855, %v5856
  %v5858 = vsel %vm3139, %v5836, 0.0
  %v5859 = vadd.f32 %v5857, %v5858
  %v5860 = vsel %vm3139, %v5837, 0.0
  %v5861 = vadd.f32 %v5859, %v5860
  %v5862 = vsel %vm3139, %v5838, 0.0
  %v5863 = vadd.f32 %v5861, %v5862
  %v5864 = vsel %vm3139, %v5839, 0.0
  %v5865 = vadd.f32 %v5863, %v5864
  %v5866 = vsel %vm3139, %v5840, 0.0
  %v5867 = vadd.f32 %v5865, %v5866
  %v5868 = vsel %vm3139, %v5841, 0.0
  %v5869 = vadd.f32 %v5867, %v5868
  %v5870 = vsel %vm3139, %v5842, 0.0
  %v5871 = vadd.f32 %v5869, %v5870
  %v5872 = vsel %vm3139, %v5843, 0.0
  %v5873 = vadd.f32 %v5871, %v5872
  %v5874 = vsel %vm3139, %v5844, 0.0
  %v5875 = vadd.f32 %v5873, %v5874
  %v5876 = vrot.slane %v5875, 4
  %v5877 = vadd.f32 %v5875, %v5876
  %v5878 = vrot.slane %v5877, 2
  %v5879 = vadd.f32 %v5877, %v5878
  %v5880 = vrot.slane %v5879, 1
  %v5881 = vadd.f32 %v5879, %v5880
  %v5882 = vmul.f32 %v5881, %v3177
  %v5883 = vld [vmem:[%s7] sm:$0x1]
  %v5884 = vadd.f32 %v5882, 1e-05
  %v5885 = vrsqrt.pop %v5884
  %v5886 = vmul.f32 %v5883, %v5885
  %v5887 = vld [vmem:[%s8] sm:$0x1]
  %v5888 = vmul.f32 %v5812, %v5886
  %v5889 = vsub.f32 %v5887, %v5888
  %v5891 = vlaneseq
  %v5892 = vshrl.u32 %v5891, 7
  %v5893 = vsub.s32 0, %v5892
  %v5894 = vrot.slane %v5886, %v5893
  %v5896 = vmul.f32 %v5759, %v5894
  %v5897 = vmul.f32 %v5760, %v5894
  %v5898 = vmul.f32 %v5761, %v5894
  %v5899 = vmul.f32 %v5762, %v5894
  %v5900 = vmul.f32 %v5763, %v5894
  %v5901 = vmul.f32 %v5764, %v5894
  %v5902 = vmul.f32 %v5765, %v5894
  %v5903 = vmul.f32 %v5766, %v5894
  %v5904 = vmul.f32 %v5767, %v5894
  %v5905 = vmul.f32 %v5768, %v5894
  %v5906 = vmul.f32 %v5769, %v5894
  %v5907 = vmul.f32 %v5770, %v5894
  %v5908 = vmul.f32 %v5771, %v5894
  %v5909 = vmul.f32 %v5772, %v5894
  %v5910 = vmul.f32 %v5773, %v5894
  %v5911 = vmul.f32 %v5774, %v5894
  %v5913 = vlaneseq
  %v5914 = vshrl.u32 %v5913, 7
  %v5915 = vsub.s32 0, %v5914
  %v5916 = vrot.slane %v5889, %v5915
  %v5918 = vadd.f32 %v5896, %v5916
  %v5919 = vadd.f32 %v5897, %v5916
  %v5920 = vadd.f32 %v5898, %v5916
  %v5921 = vadd.f32 %v5899, %v5916
  %v5922 = vadd.f32 %v5900, %v5916
  %v5923 = vadd.f32 %v5901, %v5916
  %v5924 = vadd.f32 %v5902, %v5916
  %v5925 = vadd.f32 %v5903, %v5916
  %v5926 = vadd.f32 %v5904, %v5916
  %v5927 = vadd.f32 %v5905, %v5916
  %v5928 = vadd.f32 %v5906, %v5916
  %v5929 = vadd.f32 %v5907, %v5916
  %v5930 = vadd.f32 %v5908, %v5916
  %v5931 = vadd.f32 %v5909, %v5916
  %v5932 = vadd.f32 %v5910, %v5916
  %v5933 = vadd.f32 %v5911, %v5916
  %v5934 = vmax.f32 %v5918, 0.0
  %v5935 = vmax.f32 %v5919, 0.0
  %v5936 = vmax.f32 %v5920, 0.0
  %v5937 = vmax.f32 %v5921, 0.0
  %v5938 = vmax.f32 %v5922, 0.0
  %v5939 = vmax.f32 %v5923, 0.0
  %v5940 = vmax.f32 %v5924, 0.0
  %v5941 = vmax.f32 %v5925, 0.0
  %v5942 = vmax.f32 %v5926, 0.0
  %v5943 = vmax.f32 %v5927, 0.0
  %v5944 = vmax.f32 %v5928, 0.0
  %v5945 = vmax.f32 %v5929, 0.0
  %v5946 = vmax.f32 %v5930, 0.0
  %v5947 = vmax.f32 %v5931, 0.0
  %v5948 = vmax.f32 %v5932, 0.0
  %v5949 = vmax.f32 %v5933, 0.0
  %5950 = vst.msk [vmem:[%s9] sm:$0xff] %vm3139, %v5934
  %5951 = vst.msk [vmem:[%s9 + $0x8] sm:$0xff] %vm3139, %v5935
  %5952 = vst.msk [vmem:[%s9 + $0x10] sm:$0xff] %vm3139, %v5936
  %5953 = vst.msk [vmem:[%s9 + $0x18] sm:$0xff] %vm3139, %v5937
  %5954 = vst.msk [vmem:[%s9 + $0x20] sm:$0xff] %vm3139, %v5938
  %5955 = vst.msk [vmem:[%s9 + $0x28] sm:$0xff] %vm3139, %v5939
  %5956 = vst.msk [vmem:[%s9 + $0x30] sm:$0xff] %vm3139, %v5940
  %5957 = vst.msk [vmem:[%s9 + $0x38] sm:$0xff] %vm3139, %v5941
  %5958 = vst.msk [vmem:[%s9 + $0x40] sm:$0xff] %vm3139, %v5942
  %5959 = vst.msk [vmem:[%s9 + $0x48] sm:$0xff] %vm3139, %v5943
  %5960 = vst.msk [vmem:[%s9 + $0x50] sm:$0xff] %vm3139, %v5944
  %5961 = vst.msk [vmem:[%s9 + $0x58] sm:$0xff] %vm3139, %v5945
  %5962 = vst.msk [vmem:[%s9 + $0x60] sm:$0xff] %vm3139, %v5946
  %5963 = vst.msk [vmem:[%s9 + $0x68] sm:$0xff] %vm3139, %v5947
  %5964 = vst.msk [vmem:[%s9 + $0x70] sm:$0xff] %vm3139, %v5948
  %5965 = vst.msk [vmem:[%s9 + $0x78] sm:$0xff] %vm3139, %v5949
  // Predicated region
  $region38: #{tpu_custom_call.1} parent=0 // pred_check
    _
  $region39: #{tpu_custom_call.1} parent=0 // pred_check_branch
    %5967 = sbr.rel (0) target = $region41
  $region40: #{tpu_custom_call.1} parent=0 // pred_region
    _
  $region41: #{tpu_custom_call.1} parent=0 // pred_fallthru
    _
  // Predicated region
  $region42: #{tpu_custom_call.1} parent=0 // pred_check
    _
  $region43: #{tpu_custom_call.1} parent=0 // pred_check_branch
    %5969 = sbr.rel (0) target = $region45
  $region44: #{tpu_custom_call.1} parent=0 // pred_region
    _
  $region45: #{tpu_custom_call.1} parent=0 // pred_fallthru
    _

</llo_original>
